<compile_context>
chip_gen: v5e
topology: v5e:2x2
jax: 0.10.0
libtpu: 0.0.40
codegen_flags: <defaults>
</compile_context>

<pallas_src>
import jax
import jax.numpy as jnp
from jax.experimental import pallas as pl
from jax.experimental.pallas import tpu as pltpu

BN_EPS = 1e-5

# Static lane-aligned offsets inside the packed (1, 2432) parameter vector.
_OFF_G1, _OFF_BE1 = 0, 512          # width 512
_OFF_G2, _OFF_BE2 = 1024, 1280      # width 256
_OFF_G3, _OFF_BE3 = 1536, 1792      # width 256
_OFF_G4, _OFF_BE4 = 2048, 2176      # width 128
_OFF_B5 = 2304                      # width 128 (b5 replicated across lanes)
_PACK_LEN = 2432                    # 19 * 128


def _domain_classifier_kernel(
    x_ref, w1_ref, p_ref,                 # VMEM inputs (auto-DMA)
    w2_hbm, w3_hbm, w4_hbm, w5_hbm,       # HBM inputs (manual DMA)
    o_ref,                                # VMEM output (B, 128)
    w2_v, w3_v, w4_v, w5_v, sem,          # scratch
):
    # Kick off HBM->VMEM fetch of the later-layer weights so their transfer
    # overlaps with the layer-1 matmul + BatchNorm.
    c2 = pltpu.make_async_copy(w2_hbm, w2_v, sem.at[0]); c2.start()
    c3 = pltpu.make_async_copy(w3_hbm, w3_v, sem.at[1]); c3.start()
    c4 = pltpu.make_async_copy(w4_hbm, w4_v, sem.at[2]); c4.start()
    c5 = pltpu.make_async_copy(w5_hbm, w5_v, sem.at[3]); c5.start()

    def linear(h_f32, w_ref):
        # bf16 x bf16 MXU matmul, f32 accumulation.
        return jnp.dot(h_f32.astype(jnp.bfloat16), w_ref[...],
                       preferred_element_type=jnp.float32)

    def bn_relu(h, g_off, b_off, n):
        g = p_ref[:, g_off:g_off + n]      # (1, n)
        be = p_ref[:, b_off:b_off + n]     # (1, n)
        # BatchNorm1d in training mode: per-batch mean and *biased* variance.
        mean = jnp.mean(h, axis=0, keepdims=True)
        var = jnp.mean(jnp.square(h - mean), axis=0, keepdims=True)
        hn = (h - mean) * jax.lax.rsqrt(var + BN_EPS)
        return jnp.maximum(hn * g + be, 0.0)

    h = x_ref[...]                                        # (B, 2048) f32
    h = bn_relu(linear(h, w1_ref), _OFF_G1, _OFF_BE1, 512)   # (B, 512)
    c2.wait()
    h = bn_relu(linear(h, w2_v), _OFF_G2, _OFF_BE2, 256)     # (B, 256)
    c3.wait()
    h = bn_relu(linear(h, w3_v), _OFF_G3, _OFF_BE3, 256)     # (B, 256)
    c4.wait()
    h = bn_relu(linear(h, w4_v), _OFF_G4, _OFF_BE4, 128)     # (B, 128)
    c5.wait()
    # Final Linear(128, 1), padded to 128 output lanes (cols 1..127 are zero
    # weights; bias broadcast over all lanes).  Lane-dense store; the wrapper
    # keeps only column 0.
    out = linear(h, w5_v) + p_ref[:, _OFF_B5:_OFF_B5 + 128]
    o_ref[...] = out.astype(o_ref.dtype)


def init_params(key):
    """Parameters matching the nn.Module shapes.

    Linear weights are stored transposed, i.e. (in_features, out_features),
    in bfloat16.  Linear biases b1..b4 are omitted because they are exactly
    cancelled by the following training-mode BatchNorm1d.
    """
    dims = [(512 * 2 * 2, 512), (512, 256), (256, 256), (256, 128), (128, 1)]
    params = {}
    for i, (fan_in, fan_out) in enumerate(dims, start=1):
        kw, kb, key = jax.random.split(key, 3)
        bound = 1.0 / float(fan_in) ** 0.5
        w = jax.random.uniform(kw, (fan_in, fan_out), jnp.float32, -bound, bound)
        params[f"w{i}"] = w.astype(jnp.bfloat16)
        if i < 5:
            params[f"g{i}"] = jnp.ones((1, fan_out), jnp.float32)
            params[f"be{i}"] = jnp.zeros((1, fan_out), jnp.float32)
        else:
            params["b5"] = jax.random.uniform(kb, (1, fan_out), jnp.float32,
                                              -bound, bound)
    return params


def _pack_small_params(p):
    """Concatenate all tiny per-feature vectors into one (1, 2432) f32 slab."""
    packed = jnp.concatenate(
        [p["g1"], p["be1"], p["g2"], p["be2"], p["g3"], p["be3"],
         p["g4"], p["be4"], jnp.broadcast_to(p["b5"], (1, 128))],
        axis=1,
    ).astype(jnp.float32)
    assert packed.shape == (1, _PACK_LEN)
    return packed


@jax.jit
def domain_classifier_forward(x_nchw, params):
    # Glue: flatten (B, 512, 2, 2) -> (B, 2048), row-major == torch.flatten(x, 1)
    B = x_nchw.shape[0]
    x = x_nchw.reshape(B, -1).astype(jnp.float32)

    packed = _pack_small_params(params)
    w5p = jnp.pad(params["w5"], ((0, 0), (0, 127)))   # (128, 128) bf16, cols 1.. = 0

    vmem = pl.BlockSpec(memory_space=pltpu.MemorySpace.VMEM)
    hbm = pl.BlockSpec(memory_space=pl.ANY)

    out = pl.pallas_call(
        _domain_classifier_kernel,
        out_shape=jax.ShapeDtypeStruct((B, 128), jnp.float32),
        in_specs=[vmem, vmem, vmem, hbm, hbm, hbm, hbm],
        out_specs=vmem,
        scratch_shapes=[
            pltpu.VMEM((512, 256), jnp.bfloat16),
            pltpu.VMEM((256, 256), jnp.bfloat16),
            pltpu.VMEM((256, 128), jnp.bfloat16),
            pltpu.VMEM((128, 128), jnp.bfloat16),
            pltpu.SemaphoreType.DMA((4,)),
        ],
        compiler_params=pltpu.CompilerParams(vmem_limit_bytes=16 << 20),
    )(x, params["w1"], packed, params["w2"], params["w3"], params["w4"], w5p)

    return out[:, :1]


def _reference_forward(x_nchw, params):
    """Pure-JAX reference using the same bf16 weights / f32 accumulation."""
    B = x_nchw.shape[0]
    h = x_nchw.reshape(B, -1).astype(jnp.float32)
    for i in range(1, 5):
        h = jnp.dot(h.astype(jnp.bfloat16), params[f"w{i}"],
                    preferred_element_type=jnp.float32)
        mean = jnp.mean(h, axis=0, keepdims=True)
        var = jnp.mean(jnp.square(h - mean), axis=0, keepdims=True)
        h = (h - mean) * jax.lax.rsqrt(var + BN_EPS)
        h = jnp.maximum(h * params[f"g{i}"] + params[f"be{i}"], 0.0)
    out = jnp.dot(h.astype(jnp.bfloat16), params["w5"],
                  preferred_element_type=jnp.float32)
    return out + params["b5"]


if __name__ == "__main__":
    key = jax.random.PRNGKey(0)
    kx, kp = jax.random.split(key)

    # Input implied by Linear(512 * 2 * 2, 512): (B, 512, 2, 2) in NCHW.
    B = 8
    x = jax.random.normal(kx, (B, 512, 2, 2), dtype=jnp.float32)
    params = init_params(kp)

    out = jax.block_until_ready(domain_classifier_forward(x, params))
    ref = _reference_forward(x, params)

    assert out.shape == (B, 1), out.shape
    assert jnp.allclose(out, ref, atol=5e-3, rtol=5e-3), (
        f"max abs diff {jnp.max(jnp.abs(out - ref))}"
    )
    print("KERNEL_OK")
</pallas_src>

<mosaic_0001>
module attributes {stable_mosaic.version = 11 : i64} {
  func.func @_domain_classifier_kernel(%arg0: memref<8x2048xf32, #tpu.memory_space<vmem>>, %arg1: memref<2048x512xbf16, #tpu.memory_space<vmem>>, %arg2: memref<1x2432xf32, #tpu.memory_space<vmem>>, %arg3: memref<512x256xbf16, #tpu.memory_space<any>>, %arg4: memref<256x256xbf16, #tpu.memory_space<any>>, %arg5: memref<256x128xbf16, #tpu.memory_space<any>>, %arg6: memref<128x128xbf16, #tpu.memory_space<any>>, %arg7: memref<8x128xf32, #tpu.memory_space<vmem>>, %arg8: memref<512x256xbf16, #tpu.memory_space<vmem>>, %arg9: memref<256x256xbf16, #tpu.memory_space<vmem>>, %arg10: memref<256x128xbf16, #tpu.memory_space<vmem>>, %arg11: memref<128x128xbf16, #tpu.memory_space<vmem>>, %arg12: memref<4x!tpu.dma_semaphore, #tpu.memory_space<semaphore_mem>>) attributes {dimension_semantics = [], scalar_prefetch = 0 : i64, scratch_operands = 5 : i64, tpu.core_type = #tpu.core_type<tc>} {
    %c0_i32 = arith.constant 0 : i32
    %0 = tpu.memref_slice %arg12[%c0_i32] : memref<4x!tpu.dma_semaphore, #tpu.memory_space<semaphore_mem>> -> memref<1x!tpu.dma_semaphore, #tpu.memory_space<semaphore_mem>>
    %1 = tpu.memref_squeeze %0 : memref<1x!tpu.dma_semaphore, #tpu.memory_space<semaphore_mem>> -> memref<!tpu.dma_semaphore, #tpu.memory_space<semaphore_mem>>
    tpu.enqueue_dma source(%arg3 : memref<512x256xbf16, #tpu.memory_space<any>>) target(%arg8 : memref<512x256xbf16, #tpu.memory_space<vmem>>) target_semaphore(%1 : memref<!tpu.dma_semaphore, #tpu.memory_space<semaphore_mem>>)
    %c1_i32 = arith.constant 1 : i32
    %2 = tpu.memref_slice %arg12[%c1_i32] : memref<4x!tpu.dma_semaphore, #tpu.memory_space<semaphore_mem>> -> memref<1x!tpu.dma_semaphore, #tpu.memory_space<semaphore_mem>>
    %3 = tpu.memref_squeeze %2 : memref<1x!tpu.dma_semaphore, #tpu.memory_space<semaphore_mem>> -> memref<!tpu.dma_semaphore, #tpu.memory_space<semaphore_mem>>
    tpu.enqueue_dma source(%arg4 : memref<256x256xbf16, #tpu.memory_space<any>>) target(%arg9 : memref<256x256xbf16, #tpu.memory_space<vmem>>) target_semaphore(%3 : memref<!tpu.dma_semaphore, #tpu.memory_space<semaphore_mem>>)
    %c2_i32 = arith.constant 2 : i32
    %4 = tpu.memref_slice %arg12[%c2_i32] : memref<4x!tpu.dma_semaphore, #tpu.memory_space<semaphore_mem>> -> memref<1x!tpu.dma_semaphore, #tpu.memory_space<semaphore_mem>>
    %5 = tpu.memref_squeeze %4 : memref<1x!tpu.dma_semaphore, #tpu.memory_space<semaphore_mem>> -> memref<!tpu.dma_semaphore, #tpu.memory_space<semaphore_mem>>
    tpu.enqueue_dma source(%arg5 : memref<256x128xbf16, #tpu.memory_space<any>>) target(%arg10 : memref<256x128xbf16, #tpu.memory_space<vmem>>) target_semaphore(%5 : memref<!tpu.dma_semaphore, #tpu.memory_space<semaphore_mem>>)
    %c3_i32 = arith.constant 3 : i32
    %6 = tpu.memref_slice %arg12[%c3_i32] : memref<4x!tpu.dma_semaphore, #tpu.memory_space<semaphore_mem>> -> memref<1x!tpu.dma_semaphore, #tpu.memory_space<semaphore_mem>>
    %7 = tpu.memref_squeeze %6 : memref<1x!tpu.dma_semaphore, #tpu.memory_space<semaphore_mem>> -> memref<!tpu.dma_semaphore, #tpu.memory_space<semaphore_mem>>
    tpu.enqueue_dma source(%arg6 : memref<128x128xbf16, #tpu.memory_space<any>>) target(%arg11 : memref<128x128xbf16, #tpu.memory_space<vmem>>) target_semaphore(%7 : memref<!tpu.dma_semaphore, #tpu.memory_space<semaphore_mem>>)
    %c0 = arith.constant 0 : index
    %c0_0 = arith.constant 0 : index
    %8 = vector.load %arg0[%c0, %c0_0] : memref<8x2048xf32, #tpu.memory_space<vmem>>, vector<8x2048xf32>
    %9 = arith.truncf %8 : vector<8x2048xf32> to vector<8x2048xbf16>
    %c0_1 = arith.constant 0 : index
    %c0_2 = arith.constant 0 : index
    %10 = vector.load %arg1[%c0_1, %c0_2] : memref<2048x512xbf16, #tpu.memory_space<vmem>>, vector<2048x512xbf16>
    %cst = arith.constant dense<0.000000e+00> : vector<8x512xf32>
    %11 = tpu.matmul %9, %10, %cst {dimension_numbers = #tpu.dot_dimension_numbers<[1], [0], [0], [1], [0, 0, 1, 1], [], []>} : vector<8x2048xbf16>, vector<2048x512xbf16>, vector<8x512xf32> -> vector<8x512xf32>
    %c0_3 = arith.constant 0 : index
    %c0_4 = arith.constant 0 : index
    %12 = vector.load %arg2[%c0_3, %c0_4] : memref<1x2432xf32, #tpu.memory_space<vmem>>, vector<1x512xf32>
    %c0_5 = arith.constant 0 : index
    %c512 = arith.constant 512 : index
    %13 = vector.load %arg2[%c0_5, %c512] : memref<1x2432xf32, #tpu.memory_space<vmem>>, vector<1x512xf32>
    %cst_6 = arith.constant dense<0.000000e+00> : vector<512xf32>
    %14 = vector.multi_reduction <add>, %11, %cst_6 [0] : vector<8x512xf32> to vector<512xf32>
    %15 = vector.shape_cast %14 : vector<512xf32> to vector<1x512xf32>
    %cst_7 = arith.constant 8.000000e+00 : f32
    %16 = vector.broadcast %cst_7 : f32 to vector<1x512xf32>
    %17 = arith.divf %15, %16 : vector<1x512xf32>
    %18 = vector.broadcast %17 : vector<1x512xf32> to vector<8x512xf32>
    %19 = arith.subf %11, %18 : vector<8x512xf32>
    %20 = arith.mulf %19, %19 : vector<8x512xf32>
    %cst_8 = arith.constant dense<0.000000e+00> : vector<512xf32>
    %21 = vector.multi_reduction <add>, %20, %cst_8 [0] : vector<8x512xf32> to vector<512xf32>
    %22 = vector.shape_cast %21 : vector<512xf32> to vector<1x512xf32>
    %cst_9 = arith.constant 8.000000e+00 : f32
    %23 = vector.broadcast %cst_9 : f32 to vector<1x512xf32>
    %24 = arith.divf %22, %23 : vector<1x512xf32>
    %25 = vector.broadcast %17 : vector<1x512xf32> to vector<8x512xf32>
    %26 = arith.subf %11, %25 : vector<8x512xf32>
    %cst_10 = arith.constant 9.99999974E-6 : f32
    %27 = vector.broadcast %cst_10 : f32 to vector<1x512xf32>
    %28 = arith.addf %24, %27 : vector<1x512xf32>
    %29 = math.rsqrt %28 : vector<1x512xf32>
    %30 = vector.broadcast %29 : vector<1x512xf32> to vector<8x512xf32>
    %31 = arith.mulf %26, %30 : vector<8x512xf32>
    %32 = vector.broadcast %12 : vector<1x512xf32> to vector<8x512xf32>
    %33 = arith.mulf %31, %32 : vector<8x512xf32>
    %34 = vector.broadcast %13 : vector<1x512xf32> to vector<8x512xf32>
    %35 = arith.addf %33, %34 : vector<8x512xf32>
    %cst_11 = arith.constant 0.000000e+00 : f32
    %36 = vector.broadcast %cst_11 : f32 to vector<8x512xf32>
    %37 = arith.maximumf %35, %36 : vector<8x512xf32>
    %c0_i32_12 = arith.constant 0 : i32
    %38 = tpu.memref_slice %arg12[%c0_i32_12] : memref<4x!tpu.dma_semaphore, #tpu.memory_space<semaphore_mem>> -> memref<1x!tpu.dma_semaphore, #tpu.memory_space<semaphore_mem>>
    %39 = tpu.memref_squeeze %38 : memref<1x!tpu.dma_semaphore, #tpu.memory_space<semaphore_mem>> -> memref<!tpu.dma_semaphore, #tpu.memory_space<semaphore_mem>>
    tpu.wait_dma2 semaphore(%39 : memref<!tpu.dma_semaphore, #tpu.memory_space<semaphore_mem>>) src(%arg3 : memref<512x256xbf16, #tpu.memory_space<any>>) dst(%arg8 : memref<512x256xbf16, #tpu.memory_space<vmem>>)
    %40 = arith.truncf %37 : vector<8x512xf32> to vector<8x512xbf16>
    %c0_13 = arith.constant 0 : index
    %c0_14 = arith.constant 0 : index
    %41 = vector.load %arg8[%c0_13, %c0_14] : memref<512x256xbf16, #tpu.memory_space<vmem>>, vector<512x256xbf16>
    %cst_15 = arith.constant dense<0.000000e+00> : vector<8x256xf32>
    %42 = tpu.matmul %40, %41, %cst_15 {dimension_numbers = #tpu.dot_dimension_numbers<[1], [0], [0], [1], [0, 0, 1, 1], [], []>} : vector<8x512xbf16>, vector<512x256xbf16>, vector<8x256xf32> -> vector<8x256xf32>
    %c0_16 = arith.constant 0 : index
    %c1024 = arith.constant 1024 : index
    %43 = vector.load %arg2[%c0_16, %c1024] : memref<1x2432xf32, #tpu.memory_space<vmem>>, vector<1x256xf32>
    %c0_17 = arith.constant 0 : index
    %c1280 = arith.constant 1280 : index
    %44 = vector.load %arg2[%c0_17, %c1280] : memref<1x2432xf32, #tpu.memory_space<vmem>>, vector<1x256xf32>
    %cst_18 = arith.constant dense<0.000000e+00> : vector<256xf32>
    %45 = vector.multi_reduction <add>, %42, %cst_18 [0] : vector<8x256xf32> to vector<256xf32>
    %46 = vector.shape_cast %45 : vector<256xf32> to vector<1x256xf32>
    %cst_19 = arith.constant 8.000000e+00 : f32
    %47 = vector.broadcast %cst_19 : f32 to vector<1x256xf32>
    %48 = arith.divf %46, %47 : vector<1x256xf32>
    %49 = vector.broadcast %48 : vector<1x256xf32> to vector<8x256xf32>
    %50 = arith.subf %42, %49 : vector<8x256xf32>
    %51 = arith.mulf %50, %50 : vector<8x256xf32>
    %cst_20 = arith.constant dense<0.000000e+00> : vector<256xf32>
    %52 = vector.multi_reduction <add>, %51, %cst_20 [0] : vector<8x256xf32> to vector<256xf32>
    %53 = vector.shape_cast %52 : vector<256xf32> to vector<1x256xf32>
    %cst_21 = arith.constant 8.000000e+00 : f32
    %54 = vector.broadcast %cst_21 : f32 to vector<1x256xf32>
    %55 = arith.divf %53, %54 : vector<1x256xf32>
    %56 = vector.broadcast %48 : vector<1x256xf32> to vector<8x256xf32>
    %57 = arith.subf %42, %56 : vector<8x256xf32>
    %cst_22 = arith.constant 9.99999974E-6 : f32
    %58 = vector.broadcast %cst_22 : f32 to vector<1x256xf32>
    %59 = arith.addf %55, %58 : vector<1x256xf32>
    %60 = math.rsqrt %59 : vector<1x256xf32>
    %61 = vector.broadcast %60 : vector<1x256xf32> to vector<8x256xf32>
    %62 = arith.mulf %57, %61 : vector<8x256xf32>
    %63 = vector.broadcast %43 : vector<1x256xf32> to vector<8x256xf32>
    %64 = arith.mulf %62, %63 : vector<8x256xf32>
    %65 = vector.broadcast %44 : vector<1x256xf32> to vector<8x256xf32>
    %66 = arith.addf %64, %65 : vector<8x256xf32>
    %cst_23 = arith.constant 0.000000e+00 : f32
    %67 = vector.broadcast %cst_23 : f32 to vector<8x256xf32>
    %68 = arith.maximumf %66, %67 : vector<8x256xf32>
    %c1_i32_24 = arith.constant 1 : i32
    %69 = tpu.memref_slice %arg12[%c1_i32_24] : memref<4x!tpu.dma_semaphore, #tpu.memory_space<semaphore_mem>> -> memref<1x!tpu.dma_semaphore, #tpu.memory_space<semaphore_mem>>
    %70 = tpu.memref_squeeze %69 : memref<1x!tpu.dma_semaphore, #tpu.memory_space<semaphore_mem>> -> memref<!tpu.dma_semaphore, #tpu.memory_space<semaphore_mem>>
    tpu.wait_dma2 semaphore(%70 : memref<!tpu.dma_semaphore, #tpu.memory_space<semaphore_mem>>) src(%arg4 : memref<256x256xbf16, #tpu.memory_space<any>>) dst(%arg9 : memref<256x256xbf16, #tpu.memory_space<vmem>>)
    %71 = arith.truncf %68 : vector<8x256xf32> to vector<8x256xbf16>
    %c0_25 = arith.constant 0 : index
    %c0_26 = arith.constant 0 : index
    %72 = vector.load %arg9[%c0_25, %c0_26] : memref<256x256xbf16, #tpu.memory_space<vmem>>, vector<256x256xbf16>
    %cst_27 = arith.constant dense<0.000000e+00> : vector<8x256xf32>
    %73 = tpu.matmul %71, %72, %cst_27 {dimension_numbers = #tpu.dot_dimension_numbers<[1], [0], [0], [1], [0, 0, 1, 1], [], []>} : vector<8x256xbf16>, vector<256x256xbf16>, vector<8x256xf32> -> vector<8x256xf32>
    %c0_28 = arith.constant 0 : index
    %c1536 = arith.constant 1536 : index
    %74 = vector.load %arg2[%c0_28, %c1536] : memref<1x2432xf32, #tpu.memory_space<vmem>>, vector<1x256xf32>
    %c0_29 = arith.constant 0 : index
    %c1792 = arith.constant 1792 : index
    %75 = vector.load %arg2[%c0_29, %c1792] : memref<1x2432xf32, #tpu.memory_space<vmem>>, vector<1x256xf32>
    %cst_30 = arith.constant dense<0.000000e+00> : vector<256xf32>
    %76 = vector.multi_reduction <add>, %73, %cst_30 [0] : vector<8x256xf32> to vector<256xf32>
    %77 = vector.shape_cast %76 : vector<256xf32> to vector<1x256xf32>
    %cst_31 = arith.constant 8.000000e+00 : f32
    %78 = vector.broadcast %cst_31 : f32 to vector<1x256xf32>
    %79 = arith.divf %77, %78 : vector<1x256xf32>
    %80 = vector.broadcast %79 : vector<1x256xf32> to vector<8x256xf32>
    %81 = arith.subf %73, %80 : vector<8x256xf32>
    %82 = arith.mulf %81, %81 : vector<8x256xf32>
    %cst_32 = arith.constant dense<0.000000e+00> : vector<256xf32>
    %83 = vector.multi_reduction <add>, %82, %cst_32 [0] : vector<8x256xf32> to vector<256xf32>
    %84 = vector.shape_cast %83 : vector<256xf32> to vector<1x256xf32>
    %cst_33 = arith.constant 8.000000e+00 : f32
    %85 = vector.broadcast %cst_33 : f32 to vector<1x256xf32>
    %86 = arith.divf %84, %85 : vector<1x256xf32>
    %87 = vector.broadcast %79 : vector<1x256xf32> to vector<8x256xf32>
    %88 = arith.subf %73, %87 : vector<8x256xf32>
    %cst_34 = arith.constant 9.99999974E-6 : f32
    %89 = vector.broadcast %cst_34 : f32 to vector<1x256xf32>
    %90 = arith.addf %86, %89 : vector<1x256xf32>
    %91 = math.rsqrt %90 : vector<1x256xf32>
    %92 = vector.broadcast %91 : vector<1x256xf32> to vector<8x256xf32>
    %93 = arith.mulf %88, %92 : vector<8x256xf32>
    %94 = vector.broadcast %74 : vector<1x256xf32> to vector<8x256xf32>
    %95 = arith.mulf %93, %94 : vector<8x256xf32>
    %96 = vector.broadcast %75 : vector<1x256xf32> to vector<8x256xf32>
    %97 = arith.addf %95, %96 : vector<8x256xf32>
    %cst_35 = arith.constant 0.000000e+00 : f32
    %98 = vector.broadcast %cst_35 : f32 to vector<8x256xf32>
    %99 = arith.maximumf %97, %98 : vector<8x256xf32>
    %c2_i32_36 = arith.constant 2 : i32
    %100 = tpu.memref_slice %arg12[%c2_i32_36] : memref<4x!tpu.dma_semaphore, #tpu.memory_space<semaphore_mem>> -> memref<1x!tpu.dma_semaphore, #tpu.memory_space<semaphore_mem>>
    %101 = tpu.memref_squeeze %100 : memref<1x!tpu.dma_semaphore, #tpu.memory_space<semaphore_mem>> -> memref<!tpu.dma_semaphore, #tpu.memory_space<semaphore_mem>>
    tpu.wait_dma2 semaphore(%101 : memref<!tpu.dma_semaphore, #tpu.memory_space<semaphore_mem>>) src(%arg5 : memref<256x128xbf16, #tpu.memory_space<any>>) dst(%arg10 : memref<256x128xbf16, #tpu.memory_space<vmem>>)
    %102 = arith.truncf %99 : vector<8x256xf32> to vector<8x256xbf16>
    %c0_37 = arith.constant 0 : index
    %c0_38 = arith.constant 0 : index
    %103 = vector.load %arg10[%c0_37, %c0_38] : memref<256x128xbf16, #tpu.memory_space<vmem>>, vector<256x128xbf16>
    %cst_39 = arith.constant dense<0.000000e+00> : vector<8x128xf32>
    %104 = tpu.matmul %102, %103, %cst_39 {dimension_numbers = #tpu.dot_dimension_numbers<[1], [0], [0], [1], [0, 0, 1, 1], [], []>} : vector<8x256xbf16>, vector<256x128xbf16>, vector<8x128xf32> -> vector<8x128xf32>
    %c0_40 = arith.constant 0 : index
    %c2048 = arith.constant 2048 : index
    %105 = vector.load %arg2[%c0_40, %c2048] : memref<1x2432xf32, #tpu.memory_space<vmem>>, vector<1x128xf32>
    %c0_41 = arith.constant 0 : index
    %c2176 = arith.constant 2176 : index
    %106 = vector.load %arg2[%c0_41, %c2176] : memref<1x2432xf32, #tpu.memory_space<vmem>>, vector<1x128xf32>
    %cst_42 = arith.constant dense<0.000000e+00> : vector<128xf32>
    %107 = vector.multi_reduction <add>, %104, %cst_42 [0] : vector<8x128xf32> to vector<128xf32>
    %108 = vector.shape_cast %107 : vector<128xf32> to vector<1x128xf32>
    %cst_43 = arith.constant 8.000000e+00 : f32
    %109 = vector.broadcast %cst_43 : f32 to vector<1x128xf32>
    %110 = arith.divf %108, %109 : vector<1x128xf32>
    %111 = vector.broadcast %110 : vector<1x128xf32> to vector<8x128xf32>
    %112 = arith.subf %104, %111 : vector<8x128xf32>
    %113 = arith.mulf %112, %112 : vector<8x128xf32>
    %cst_44 = arith.constant dense<0.000000e+00> : vector<128xf32>
    %114 = vector.multi_reduction <add>, %113, %cst_44 [0] : vector<8x128xf32> to vector<128xf32>
    %115 = vector.shape_cast %114 : vector<128xf32> to vector<1x128xf32>
    %cst_45 = arith.constant 8.000000e+00 : f32
    %116 = vector.broadcast %cst_45 : f32 to vector<1x128xf32>
    %117 = arith.divf %115, %116 : vector<1x128xf32>
    %118 = vector.broadcast %110 : vector<1x128xf32> to vector<8x128xf32>
    %119 = arith.subf %104, %118 : vector<8x128xf32>
    %cst_46 = arith.constant 9.99999974E-6 : f32
    %120 = vector.broadcast %cst_46 : f32 to vector<1x128xf32>
    %121 = arith.addf %117, %120 : vector<1x128xf32>
    %122 = math.rsqrt %121 : vector<1x128xf32>
    %123 = vector.broadcast %122 : vector<1x128xf32> to vector<8x128xf32>
    %124 = arith.mulf %119, %123 : vector<8x128xf32>
    %125 = vector.broadcast %105 : vector<1x128xf32> to vector<8x128xf32>
    %126 = arith.mulf %124, %125 : vector<8x128xf32>
    %127 = vector.broadcast %106 : vector<1x128xf32> to vector<8x128xf32>
    %128 = arith.addf %126, %127 : vector<8x128xf32>
    %cst_47 = arith.constant 0.000000e+00 : f32
    %129 = vector.broadcast %cst_47 : f32 to vector<8x128xf32>
    %130 = arith.maximumf %128, %129 : vector<8x128xf32>
    %c3_i32_48 = arith.constant 3 : i32
    %131 = tpu.memref_slice %arg12[%c3_i32_48] : memref<4x!tpu.dma_semaphore, #tpu.memory_space<semaphore_mem>> -> memref<1x!tpu.dma_semaphore, #tpu.memory_space<semaphore_mem>>
    %132 = tpu.memref_squeeze %131 : memref<1x!tpu.dma_semaphore, #tpu.memory_space<semaphore_mem>> -> memref<!tpu.dma_semaphore, #tpu.memory_space<semaphore_mem>>
    tpu.wait_dma2 semaphore(%132 : memref<!tpu.dma_semaphore, #tpu.memory_space<semaphore_mem>>) src(%arg6 : memref<128x128xbf16, #tpu.memory_space<any>>) dst(%arg11 : memref<128x128xbf16, #tpu.memory_space<vmem>>)
    %133 = arith.truncf %130 : vector<8x128xf32> to vector<8x128xbf16>
    %c0_49 = arith.constant 0 : index
    %c0_50 = arith.constant 0 : index
    %134 = vector.load %arg11[%c0_49, %c0_50] : memref<128x128xbf16, #tpu.memory_space<vmem>>, vector<128x128xbf16>
    %cst_51 = arith.constant dense<0.000000e+00> : vector<8x128xf32>
    %135 = tpu.matmul %133, %134, %cst_51 {dimension_numbers = #tpu.dot_dimension_numbers<[1], [0], [0], [1], [0, 0, 1, 1], [], []>} : vector<8x128xbf16>, vector<128x128xbf16>, vector<8x128xf32> -> vector<8x128xf32>
    %c0_52 = arith.constant 0 : index
    %c2304 = arith.constant 2304 : index
    %136 = vector.load %arg2[%c0_52, %c2304] : memref<1x2432xf32, #tpu.memory_space<vmem>>, vector<1x128xf32>
    %137 = vector.broadcast %136 : vector<1x128xf32> to vector<8x128xf32>
    %138 = arith.addf %135, %137 : vector<8x128xf32>
    %c0_53 = arith.constant 0 : index
    %c0_54 = arith.constant 0 : index
    %139 = vector.load %arg7[%c0_53, %c0_54] : memref<8x128xf32, #tpu.memory_space<vmem>>, vector<8x128xf32>
    tpu.vector_store %arg7[%c0_53, %c0_54], %138 {strides = array<i32>} : memref<8x128xf32, #tpu.memory_space<vmem>>, vector<8x128xf32>,
    return
  }
}

</mosaic_0001>

<llo_original>
// kernel: domain_classifier_forward.1
$region0: #{domain_classifier_forward.1}
  #allocation0 [shape = 'u32[]', space=smem, size = 0x4, offset = 0x4, fixed_abs, tag = 'smem constant byte address 0x4 - core index']
  #allocation1 [shape = 'u32[72,128]{1,0:T(1,128)}', space=vmem, size = 0x9000, scoped, tag = 'internal scratch']
  #allocation2 [shape = 'bf16[512,256]{1,0:T(8,128)(2,1)}', space=vmem, size = 0x40000, scoped, tag = 'scratch operand']
  #allocation3 [shape = 'bf16[256,256]{1,0:T(8,128)(2,1)}', space=vmem, size = 0x20000, scoped, tag = 'scratch operand']
  #allocation4 [shape = 'bf16[256,128]{1,0:T(8,128)(2,1)}', space=vmem, size = 0x10000, scoped, tag = 'scratch operand']
  #allocation5 [shape = 'bf16[128,128]{1,0:T(8,128)(2,1)}', space=vmem, size = 0x8000, scoped, tag = 'scratch operand']
  #allocation6 [shape = 's32[4]{0}', space=sflag, size = 0x10, scoped, tag = 'scratch operand']
  #allocation7 [shape = 's32[]', space=sflag, size = 0x4, offset = 0, fixed_abs, tag = 'sflag constant byte address 0x0 - dummy sync flag']
  #allocation8 [shape = 's32[]', space=sflag, size = 0x4, offset = 0, fixed_abs, tag = 'sflag constant byte address 0x0 - dummy sync flag']
  #allocation9 [shape = 'u32[]', space=smem, size = 0x4, offset = 0x44, fixed_abs, tag = 'smem constant byte address 0x44 - assertion arg 0']
  #allocation10 [shape = 'u32[]', space=smem, size = 0x4, offset = 0x48, fixed_abs, tag = 'smem constant byte address 0x48 - assertion arg 1']
  #allocation11 [shape = 's32[]', space=sflag, size = 0x4, offset = 0, fixed_abs, tag = 'sflag constant byte address 0x0 - dummy sync flag']
  #allocation12 [shape = 's32[]', space=sflag, size = 0x4, offset = 0, fixed_abs, tag = 'sflag constant byte address 0x0 - dummy sync flag']
  #allocation13 [shape = 's32[]', space=sflag, size = 0x4, offset = 0, fixed_abs, tag = 'sflag constant byte address 0x0 - dummy sync flag']
  %s0 = inlined_call_operand.vmem [shape: f32[8,2048], index: 0, kind: input, shape index: {}]
  %s1 = inlined_call_operand.vmem [shape: bf16[2048,512], index: 1, kind: input, shape index: {}]
  %s2 = inlined_call_operand.vmem [shape: f32[1,2432], index: 2, kind: input, shape index: {}]
  %s3 = inlined_call_operand.hbm [shape: bf16[512,256], index: 3, kind: input, shape index: {}]
  %s4 = inlined_call_operand.vmem [shape: bf16[256,256], index: 4, kind: input, shape index: {}]
  %s5 = inlined_call_operand.vmem [shape: bf16[256,128], index: 5, kind: input, shape index: {}]
  %s6 = inlined_call_operand.vmem [shape: bf16[128,128], index: 6, kind: input, shape index: {}]
  %s7 = inlined_call_operand.vmem [shape: f32[8,128], index: 7, kind: output, shape index: {}]
  %s8 = sld [smem:[#allocation0]]
  $region83: #{domain_classifier_forward.1} parent=0
    _
  %s10 = ssub.s32 1, %s8
  %s11 = scalar_select 0, %s10, %s8
  // Predicated region
  $region2: #{domain_classifier_forward.1} parent=0 // pred_check
    _
  $region3: #{domain_classifier_forward.1} parent=0 // pred_check_branch
    %13 = sbr.rel (0) target = $region5
  $region4: #{domain_classifier_forward.1} parent=0 // pred_region
    _
  $region5: #{domain_classifier_forward.1} parent=0 // pred_fallthru
    _
  // Predicated region
  $region6: #{domain_classifier_forward.1} parent=0 // pred_check
    _
  $region7: #{domain_classifier_forward.1} parent=0 // pred_check_branch
    %15 = sbr.rel (0) target = $region9
  $region8: #{domain_classifier_forward.1} parent=0 // pred_region
    _
  $region9: #{domain_classifier_forward.1} parent=0 // pred_fallthru
    _
  // Predicated region
  $region10: #{domain_classifier_forward.1} parent=0 // pred_check
    _
  $region11: #{domain_classifier_forward.1} parent=0 // pred_check_branch
    %17 = sbr.rel (0) target = $region13
  $region12: #{domain_classifier_forward.1} parent=0 // pred_region
    _
  $region13: #{domain_classifier_forward.1} parent=0 // pred_fallthru
    _
  // Predicated region
  $region14: #{domain_classifier_forward.1} parent=0 // pred_check
    _
  $region15: #{domain_classifier_forward.1} parent=0 // pred_check_branch
    %19 = sbr.rel target = $region17
  $region16: #{domain_classifier_forward.1} parent=0 // pred_region
    %20 = sst [smem:[#allocation9]] [#allocation8]
    %21 = sst [smem:[#allocation10]] [#allocation7]
  $region17: #{domain_classifier_forward.1} parent=0 // pred_fallthru
    _
  %23 = shalt.err (0)
  %s25 = sshll.u32 %s3, 4
  %s26 = int_to_ptr.hbm [resolvable:$true] %s25
  %s27 = sshll.u32 [#allocation2], 4
  %s28 = int_to_ptr.vmem [resolvable:$true] %s27
  %30 = dma.hbm_to_vmem [thread:$0]  %s26, 8192, %s28, [#allocation6]
  %s31 = scalar_lea.sflag [#allocation6], 1
  // Predicated region
  $region18: #{domain_classifier_forward.1} parent=0 // pred_check
    _
  $region19: #{domain_classifier_forward.1} parent=0 // pred_check_branch
    %33 = sbr.rel (0) target = $region21
  $region20: #{domain_classifier_forward.1} parent=0 // pred_region
    loop: start=0, step=1, limit=1
    $region22: #{domain_classifier_forward.1} parent=20 // loop_pre_header
      _
    $region23: #{domain_classifier_forward.1} parent=20 // loop_header
      %s35 = sphi 0, %s39
      %p36 = scmp.ge.s32.totalorder %s35, 1
      %s40 = sphi %s4, %s4
      %s41 = sphi [#allocation3], [#allocation3]
    $region24: #{domain_classifier_forward.1} parent=20 // loop_header_branch
      %38 = sbr.rel (%p36) target = $region28
    $region25: #{domain_classifier_forward.1} parent=20 // loop_body
      %v42 = vld [vmem:[%s40] sm:$0xff]
      %43 = vst [vmem:[%s41] sm:$0xff] %v42
      %v44 = vld [vmem:[%s40 + $0x8] sm:$0xff]
      %45 = vst [vmem:[%s41 + $0x8] sm:$0xff] %v44
      %v46 = vld [vmem:[%s40 + $0x10] sm:$0xff]
      %47 = vst [vmem:[%s41 + $0x10] sm:$0xff] %v46
      %v48 = vld [vmem:[%s40 + $0x18] sm:$0xff]
      %49 = vst [vmem:[%s41 + $0x18] sm:$0xff] %v48
      %v50 = vld [vmem:[%s40 + $0x20] sm:$0xff]
      %51 = vst [vmem:[%s41 + $0x20] sm:$0xff] %v50
      %v52 = vld [vmem:[%s40 + $0x28] sm:$0xff]
      %53 = vst [vmem:[%s41 + $0x28] sm:$0xff] %v52
      %v54 = vld [vmem:[%s40 + $0x30] sm:$0xff]
      %55 = vst [vmem:[%s41 + $0x30] sm:$0xff] %v54
      %v56 = vld [vmem:[%s40 + $0x38] sm:$0xff]
      %57 = vst [vmem:[%s41 + $0x38] sm:$0xff] %v56
      %v58 = vld [vmem:[%s40 + $0x40] sm:$0xff]
      %59 = vst [vmem:[%s41 + $0x40] sm:$0xff] %v58
      %v60 = vld [vmem:[%s40 + $0x48] sm:$0xff]
      %61 = vst [vmem:[%s41 + $0x48] sm:$0xff] %v60
      %v62 = vld [vmem:[%s40 + $0x50] sm:$0xff]
      %63 = vst [vmem:[%s41 + $0x50] sm:$0xff] %v62
      %v64 = vld [vmem:[%s40 + $0x58] sm:$0xff]
      %65 = vst [vmem:[%s41 + $0x58] sm:$0xff] %v64
      %v66 = vld [vmem:[%s40 + $0x60] sm:$0xff]
      %67 = vst [vmem:[%s41 + $0x60] sm:$0xff] %v66
      %v68 = vld [vmem:[%s40 + $0x68] sm:$0xff]
      %69 = vst [vmem:[%s41 + $0x68] sm:$0xff] %v68
      %v70 = vld [vmem:[%s40 + $0x70] sm:$0xff]
      %71 = vst [vmem:[%s41 + $0x70] sm:$0xff] %v70
      %v72 = vld [vmem:[%s40 + $0x78] sm:$0xff]
      %73 = vst [vmem:[%s41 + $0x78] sm:$0xff] %v72
      %v74 = vld [vmem:[%s40 + $0x80] sm:$0xff]
      %75 = vst [vmem:[%s41 + $0x80] sm:$0xff] %v74
      %v76 = vld [vmem:[%s40 + $0x88] sm:$0xff]
      %77 = vst [vmem:[%s41 + $0x88] sm:$0xff] %v76
      %v78 = vld [vmem:[%s40 + $0x90] sm:$0xff]
      %79 = vst [vmem:[%s41 + $0x90] sm:$0xff] %v78
      %v80 = vld [vmem:[%s40 + $0x98] sm:$0xff]
      %81 = vst [vmem:[%s41 + $0x98] sm:$0xff] %v80
      %v82 = vld [vmem:[%s40 + $0xa0] sm:$0xff]
      %83 = vst [vmem:[%s41 + $0xa0] sm:$0xff] %v82
      %v84 = vld [vmem:[%s40 + $0xa8] sm:$0xff]
      %85 = vst [vmem:[%s41 + $0xa8] sm:$0xff] %v84
      %v86 = vld [vmem:[%s40 + $0xb0] sm:$0xff]
      %87 = vst [vmem:[%s41 + $0xb0] sm:$0xff] %v86
      %v88 = vld [vmem:[%s40 + $0xb8] sm:$0xff]
      %89 = vst [vmem:[%s41 + $0xb8] sm:$0xff] %v88
      %v90 = vld [vmem:[%s40 + $0xc0] sm:$0xff]
      %91 = vst [vmem:[%s41 + $0xc0] sm:$0xff] %v90
      %v92 = vld [vmem:[%s40 + $0xc8] sm:$0xff]
      %93 = vst [vmem:[%s41 + $0xc8] sm:$0xff] %v92
      %v94 = vld [vmem:[%s40 + $0xd0] sm:$0xff]
      %95 = vst [vmem:[%s41 + $0xd0] sm:$0xff] %v94
      %v96 = vld [vmem:[%s40 + $0xd8] sm:$0xff]
      %97 = vst [vmem:[%s41 + $0xd8] sm:$0xff] %v96
      %v98 = vld [vmem:[%s40 + $0xe0] sm:$0xff]
      %99 = vst [vmem:[%s41 + $0xe0] sm:$0xff] %v98
      %v100 = vld [vmem:[%s40 + $0xe8] sm:$0xff]
      %101 = vst [vmem:[%s41 + $0xe8] sm:$0xff] %v100
      %v102 = vld [vmem:[%s40 + $0xf0] sm:$0xff]
      %103 = vst [vmem:[%s41 + $0xf0] sm:$0xff] %v102
      %v104 = vld [vmem:[%s40 + $0xf8] sm:$0xff]
      %105 = vst [vmem:[%s41 + $0xf8] sm:$0xff] %v104
    $region26: #{domain_classifier_forward.1} parent=20 // loop_footer
      %s39 = sadd.s32 1, %s35
    $region27: #{domain_classifier_forward.1} parent=20 // loop_footer_branch
      %34 = sbr.rel target = $region23
    $region28: #{domain_classifier_forward.1} parent=20 // loop_exit
      _
  $region21: #{domain_classifier_forward.1} parent=0 // pred_fallthru
    _
  // Predicated region
  $region29: #{domain_classifier_forward.1} parent=0 // pred_check
    _
  $region30: #{domain_classifier_forward.1} parent=0 // pred_check_branch
    %107 = sbr.rel target = $region32
  $region31: #{domain_classifier_forward.1} parent=0 // pred_region
    _
  $region32: #{domain_classifier_forward.1} parent=0 // pred_fallthru
    _
  // Predicated region
  $region33: #{domain_classifier_forward.1} parent=0 // pred_check
    _
  $region34: #{domain_classifier_forward.1} parent=0 // pred_check_branch
    %110 = sbr.rel (0) target = $region36
  $region35: #{domain_classifier_forward.1} parent=0 // pred_region
    %111 = vsyncadd %s31, 4096
  $region36: #{domain_classifier_forward.1} parent=0 // pred_fallthru
    _
  %s112 = scalar_lea.sflag [#allocation6], 2
  // Predicated region
  $region37: #{domain_classifier_forward.1} parent=0 // pred_check
    _
  $region38: #{domain_classifier_forward.1} parent=0 // pred_check_branch
    %114 = sbr.rel (0) target = $region40
  $region39: #{domain_classifier_forward.1} parent=0 // pred_region
    loop: start=0, step=1, limit=1
    $region41: #{domain_classifier_forward.1} parent=39 // loop_pre_header
      _
    $region42: #{domain_classifier_forward.1} parent=39 // loop_header
      %s116 = sphi 0, %s120
      %p117 = scmp.ge.s32.totalorder %s116, 1
      %s121 = sphi %s5, %s5
      %s122 = sphi [#allocation4], [#allocation4]
    $region43: #{domain_classifier_forward.1} parent=39 // loop_header_branch
      %119 = sbr.rel (%p117) target = $region47
    $region44: #{domain_classifier_forward.1} parent=39 // loop_body
      %v123 = vld [vmem:[%s121] sm:$0xff]
      %124 = vst [vmem:[%s122] sm:$0xff] %v123
      %v125 = vld [vmem:[%s121 + $0x8] sm:$0xff]
      %126 = vst [vmem:[%s122 + $0x8] sm:$0xff] %v125
      %v127 = vld [vmem:[%s121 + $0x10] sm:$0xff]
      %128 = vst [vmem:[%s122 + $0x10] sm:$0xff] %v127
      %v129 = vld [vmem:[%s121 + $0x18] sm:$0xff]
      %130 = vst [vmem:[%s122 + $0x18] sm:$0xff] %v129
      %v131 = vld [vmem:[%s121 + $0x20] sm:$0xff]
      %132 = vst [vmem:[%s122 + $0x20] sm:$0xff] %v131
      %v133 = vld [vmem:[%s121 + $0x28] sm:$0xff]
      %134 = vst [vmem:[%s122 + $0x28] sm:$0xff] %v133
      %v135 = vld [vmem:[%s121 + $0x30] sm:$0xff]
      %136 = vst [vmem:[%s122 + $0x30] sm:$0xff] %v135
      %v137 = vld [vmem:[%s121 + $0x38] sm:$0xff]
      %138 = vst [vmem:[%s122 + $0x38] sm:$0xff] %v137
      %v139 = vld [vmem:[%s121 + $0x40] sm:$0xff]
      %140 = vst [vmem:[%s122 + $0x40] sm:$0xff] %v139
      %v141 = vld [vmem:[%s121 + $0x48] sm:$0xff]
      %142 = vst [vmem:[%s122 + $0x48] sm:$0xff] %v141
      %v143 = vld [vmem:[%s121 + $0x50] sm:$0xff]
      %144 = vst [vmem:[%s122 + $0x50] sm:$0xff] %v143
      %v145 = vld [vmem:[%s121 + $0x58] sm:$0xff]
      %146 = vst [vmem:[%s122 + $0x58] sm:$0xff] %v145
      %v147 = vld [vmem:[%s121 + $0x60] sm:$0xff]
      %148 = vst [vmem:[%s122 + $0x60] sm:$0xff] %v147
      %v149 = vld [vmem:[%s121 + $0x68] sm:$0xff]
      %150 = vst [vmem:[%s122 + $0x68] sm:$0xff] %v149
      %v151 = vld [vmem:[%s121 + $0x70] sm:$0xff]
      %152 = vst [vmem:[%s122 + $0x70] sm:$0xff] %v151
      %v153 = vld [vmem:[%s121 + $0x78] sm:$0xff]
      %154 = vst [vmem:[%s122 + $0x78] sm:$0xff] %v153
    $region45: #{domain_classifier_forward.1} parent=39 // loop_footer
      %s120 = sadd.s32 1, %s116
    $region46: #{domain_classifier_forward.1} parent=39 // loop_footer_branch
      %115 = sbr.rel target = $region42
    $region47: #{domain_classifier_forward.1} parent=39 // loop_exit
      _
  $region40: #{domain_classifier_forward.1} parent=0 // pred_fallthru
    _
  // Predicated region
  $region48: #{domain_classifier_forward.1} parent=0 // pred_check
    _
  $region49: #{domain_classifier_forward.1} parent=0 // pred_check_branch
    %156 = sbr.rel target = $region51
  $region50: #{domain_classifier_forward.1} parent=0 // pred_region
    _
  $region51: #{domain_classifier_forward.1} parent=0 // pred_fallthru
    _
  // Predicated region
  $region52: #{domain_classifier_forward.1} parent=0 // pred_check
    _
  $region53: #{domain_classifier_forward.1} parent=0 // pred_check_branch
    %159 = sbr.rel (0) target = $region55
  $region54: #{domain_classifier_forward.1} parent=0 // pred_region
    %160 = vsyncadd %s112, 2048
  $region55: #{domain_classifier_forward.1} parent=0 // pred_fallthru
    _
  %s161 = scalar_lea.sflag [#allocation6], 3
  // Predicated region
  $region56: #{domain_classifier_forward.1} parent=0 // pred_check
    _
  $region57: #{domain_classifier_forward.1} parent=0 // pred_check_branch
    %163 = sbr.rel (0) target = $region59
  $region58: #{domain_classifier_forward.1} parent=0 // pred_region
    loop: start=0, step=1, limit=1
    $region60: #{domain_classifier_forward.1} parent=58 // loop_pre_header
      _
    $region61: #{domain_classifier_forward.1} parent=58 // loop_header
      %s165 = sphi 0, %s169
      %p166 = scmp.ge.s32.totalorder %s165, 1
      %s170 = sphi %s6, %s6
      %s171 = sphi [#allocation5], [#allocation5]
    $region62: #{domain_classifier_forward.1} parent=58 // loop_header_branch
      %168 = sbr.rel (%p166) target = $region66
    $region63: #{domain_classifier_forward.1} parent=58 // loop_body
      %v172 = vld [vmem:[%s170] sm:$0xff]
      %173 = vst [vmem:[%s171] sm:$0xff] %v172
      %v174 = vld [vmem:[%s170 + $0x8] sm:$0xff]
      %175 = vst [vmem:[%s171 + $0x8] sm:$0xff] %v174
      %v176 = vld [vmem:[%s170 + $0x10] sm:$0xff]
      %177 = vst [vmem:[%s171 + $0x10] sm:$0xff] %v176
      %v178 = vld [vmem:[%s170 + $0x18] sm:$0xff]
      %179 = vst [vmem:[%s171 + $0x18] sm:$0xff] %v178
      %v180 = vld [vmem:[%s170 + $0x20] sm:$0xff]
      %181 = vst [vmem:[%s171 + $0x20] sm:$0xff] %v180
      %v182 = vld [vmem:[%s170 + $0x28] sm:$0xff]
      %183 = vst [vmem:[%s171 + $0x28] sm:$0xff] %v182
      %v184 = vld [vmem:[%s170 + $0x30] sm:$0xff]
      %185 = vst [vmem:[%s171 + $0x30] sm:$0xff] %v184
      %v186 = vld [vmem:[%s170 + $0x38] sm:$0xff]
      %187 = vst [vmem:[%s171 + $0x38] sm:$0xff] %v186
    $region64: #{domain_classifier_forward.1} parent=58 // loop_footer
      %s169 = sadd.s32 1, %s165
    $region65: #{domain_classifier_forward.1} parent=58 // loop_footer_branch
      %164 = sbr.rel target = $region61
    $region66: #{domain_classifier_forward.1} parent=58 // loop_exit
      _
  $region59: #{domain_classifier_forward.1} parent=0 // pred_fallthru
    _
  // Predicated region
  $region67: #{domain_classifier_forward.1} parent=0 // pred_check
    _
  $region68: #{domain_classifier_forward.1} parent=0 // pred_check_branch
    %189 = sbr.rel target = $region70
  $region69: #{domain_classifier_forward.1} parent=0 // pred_region
    _
  $region70: #{domain_classifier_forward.1} parent=0 // pred_fallthru
    _
  // Predicated region
  $region71: #{domain_classifier_forward.1} parent=0 // pred_check
    _
  $region72: #{domain_classifier_forward.1} parent=0 // pred_check_branch
    %192 = sbr.rel (0) target = $region74
  $region73: #{domain_classifier_forward.1} parent=0 // pred_region
    %193 = vsyncadd %s161, 1024
  $region74: #{domain_classifier_forward.1} parent=0 // pred_fallthru
    _
  %v194 = vld [vmem:[%s0] sm:$0xff]
  %v195 = vld [vmem:[%s0 + $0x8] sm:$0xff]
  %v196 = vld [vmem:[%s0 + $0x10] sm:$0xff]
  %v197 = vld [vmem:[%s0 + $0x18] sm:$0xff]
  %v198 = vld [vmem:[%s0 + $0x20] sm:$0xff]
  %v199 = vld [vmem:[%s0 + $0x28] sm:$0xff]
  %v200 = vld [vmem:[%s0 + $0x30] sm:$0xff]
  %v201 = vld [vmem:[%s0 + $0x38] sm:$0xff]
  %v202 = vld [vmem:[%s0 + $0x40] sm:$0xff]
  %v203 = vld [vmem:[%s0 + $0x48] sm:$0xff]
  %v204 = vld [vmem:[%s0 + $0x50] sm:$0xff]
  %v205 = vld [vmem:[%s0 + $0x58] sm:$0xff]
  %v206 = vld [vmem:[%s0 + $0x60] sm:$0xff]
  %v207 = vld [vmem:[%s0 + $0x68] sm:$0xff]
  %v208 = vld [vmem:[%s0 + $0x70] sm:$0xff]
  %v209 = vld [vmem:[%s0 + $0x78] sm:$0xff]
  %v210 = vpack.c.bf16 %v194, %v194
  %v211 = vpack.c.bf16 %v195, %v195
  %v212 = vpack.c.bf16 %v196, %v196
  %v213 = vpack.c.bf16 %v197, %v197
  %v214 = vpack.c.bf16 %v198, %v198
  %v215 = vpack.c.bf16 %v199, %v199
  %v216 = vpack.c.bf16 %v200, %v200
  %v217 = vpack.c.bf16 %v201, %v201
  %v218 = vpack.c.bf16 %v202, %v202
  %v219 = vpack.c.bf16 %v203, %v203
  %v220 = vpack.c.bf16 %v204, %v204
  %v221 = vpack.c.bf16 %v205, %v205
  %v222 = vpack.c.bf16 %v206, %v206
  %v223 = vpack.c.bf16 %v207, %v207
  %v224 = vpack.c.bf16 %v208, %v208
  %v225 = vpack.c.bf16 %v209, %v209
  %v226 = vld [vmem:[%s1] sm:$0xff]
  %v227 = vld [vmem:[%s1 + $0x8] sm:$0xff]
  %v228 = vld [vmem:[%s1 + $0x10] sm:$0xff]
  %v229 = vld [vmem:[%s1 + $0x18] sm:$0xff]
  %v230 = vld [vmem:[%s1 + $0x20] sm:$0xff]
  %v231 = vld [vmem:[%s1 + $0x28] sm:$0xff]
  %v232 = vld [vmem:[%s1 + $0x30] sm:$0xff]
  %v233 = vld [vmem:[%s1 + $0x38] sm:$0xff]
  %v234 = vld [vmem:[%s1 + $0x40] sm:$0xff]
  %v235 = vld [vmem:[%s1 + $0x48] sm:$0xff]
  %v236 = vld [vmem:[%s1 + $0x50] sm:$0xff]
  %v237 = vld [vmem:[%s1 + $0x58] sm:$0xff]
  %v238 = vld [vmem:[%s1 + $0x60] sm:$0xff]
  %v239 = vld [vmem:[%s1 + $0x68] sm:$0xff]
  %v240 = vld [vmem:[%s1 + $0x70] sm:$0xff]
  %v241 = vld [vmem:[%s1 + $0x78] sm:$0xff]
  %v242 = vld [vmem:[%s1 + $0x80] sm:$0xff]
  %v243 = vld [vmem:[%s1 + $0x88] sm:$0xff]
  %v244 = vld [vmem:[%s1 + $0x90] sm:$0xff]
  %v245 = vld [vmem:[%s1 + $0x98] sm:$0xff]
  %v246 = vld [vmem:[%s1 + $0xa0] sm:$0xff]
  %v247 = vld [vmem:[%s1 + $0xa8] sm:$0xff]
  %v248 = vld [vmem:[%s1 + $0xb0] sm:$0xff]
  %v249 = vld [vmem:[%s1 + $0xb8] sm:$0xff]
  %v250 = vld [vmem:[%s1 + $0xc0] sm:$0xff]
  %v251 = vld [vmem:[%s1 + $0xc8] sm:$0xff]
  %v252 = vld [vmem:[%s1 + $0xd0] sm:$0xff]
  %v253 = vld [vmem:[%s1 + $0xd8] sm:$0xff]
  %v254 = vld [vmem:[%s1 + $0xe0] sm:$0xff]
  %v255 = vld [vmem:[%s1 + $0xe8] sm:$0xff]
  %v256 = vld [vmem:[%s1 + $0xf0] sm:$0xff]
  %v257 = vld [vmem:[%s1 + $0xf8] sm:$0xff]
  %v258 = vld [vmem:[%s1 + $0x100] sm:$0xff]
  %v259 = vld [vmem:[%s1 + $0x108] sm:$0xff]
  %v260 = vld [vmem:[%s1 + $0x110] sm:$0xff]
  %v261 = vld [vmem:[%s1 + $0x118] sm:$0xff]
  %v262 = vld [vmem:[%s1 + $0x120] sm:$0xff]
  %v263 = vld [vmem:[%s1 + $0x128] sm:$0xff]
  %v264 = vld [vmem:[%s1 + $0x130] sm:$0xff]
  %v265 = vld [vmem:[%s1 + $0x138] sm:$0xff]
  %v266 = vld [vmem:[%s1 + $0x140] sm:$0xff]
  %v267 = vld [vmem:[%s1 + $0x148] sm:$0xff]
  %v268 = vld [vmem:[%s1 + $0x150] sm:$0xff]
  %v269 = vld [vmem:[%s1 + $0x158] sm:$0xff]
  %v270 = vld [vmem:[%s1 + $0x160] sm:$0xff]
  %v271 = vld [vmem:[%s1 + $0x168] sm:$0xff]
  %v272 = vld [vmem:[%s1 + $0x170] sm:$0xff]
  %v273 = vld [vmem:[%s1 + $0x178] sm:$0xff]
  %v274 = vld [vmem:[%s1 + $0x180] sm:$0xff]
  %v275 = vld [vmem:[%s1 + $0x188] sm:$0xff]
  %v276 = vld [vmem:[%s1 + $0x190] sm:$0xff]
  %v277 = vld [vmem:[%s1 + $0x198] sm:$0xff]
  %v278 = vld [vmem:[%s1 + $0x1a0] sm:$0xff]
  %v279 = vld [vmem:[%s1 + $0x1a8] sm:$0xff]
  %v280 = vld [vmem:[%s1 + $0x1b0] sm:$0xff]
  %v281 = vld [vmem:[%s1 + $0x1b8] sm:$0xff]
  %v282 = vld [vmem:[%s1 + $0x1c0] sm:$0xff]
  %v283 = vld [vmem:[%s1 + $0x1c8] sm:$0xff]
  %v284 = vld [vmem:[%s1 + $0x1d0] sm:$0xff]
  %v285 = vld [vmem:[%s1 + $0x1d8] sm:$0xff]
  %v286 = vld [vmem:[%s1 + $0x1e0] sm:$0xff]
  %v287 = vld [vmem:[%s1 + $0x1e8] sm:$0xff]
  %v288 = vld [vmem:[%s1 + $0x1f0] sm:$0xff]
  %v289 = vld [vmem:[%s1 + $0x1f8] sm:$0xff]
  %v290 = vld [vmem:[%s1 + $0x200] sm:$0xff]
  %v291 = vld [vmem:[%s1 + $0x208] sm:$0xff]
  %v292 = vld [vmem:[%s1 + $0x210] sm:$0xff]
  %v293 = vld [vmem:[%s1 + $0x218] sm:$0xff]
  %v294 = vld [vmem:[%s1 + $0x220] sm:$0xff]
  %v295 = vld [vmem:[%s1 + $0x228] sm:$0xff]
  %v296 = vld [vmem:[%s1 + $0x230] sm:$0xff]
  %v297 = vld [vmem:[%s1 + $0x238] sm:$0xff]
  %v298 = vld [vmem:[%s1 + $0x240] sm:$0xff]
  %v299 = vld [vmem:[%s1 + $0x248] sm:$0xff]
  %v300 = vld [vmem:[%s1 + $0x250] sm:$0xff]
  %v301 = vld [vmem:[%s1 + $0x258] sm:$0xff]
  %v302 = vld [vmem:[%s1 + $0x260] sm:$0xff]
  %v303 = vld [vmem:[%s1 + $0x268] sm:$0xff]
  %v304 = vld [vmem:[%s1 + $0x270] sm:$0xff]
  %v305 = vld [vmem:[%s1 + $0x278] sm:$0xff]
  %v306 = vld [vmem:[%s1 + $0x280] sm:$0xff]
  %v307 = vld [vmem:[%s1 + $0x288] sm:$0xff]
  %v308 = vld [vmem:[%s1 + $0x290] sm:$0xff]
  %v309 = vld [vmem:[%s1 + $0x298] sm:$0xff]
  %v310 = vld [vmem:[%s1 + $0x2a0] sm:$0xff]
  %v311 = vld [vmem:[%s1 + $0x2a8] sm:$0xff]
  %v312 = vld [vmem:[%s1 + $0x2b0] sm:$0xff]
  %v313 = vld [vmem:[%s1 + $0x2b8] sm:$0xff]
  %v314 = vld [vmem:[%s1 + $0x2c0] sm:$0xff]
  %v315 = vld [vmem:[%s1 + $0x2c8] sm:$0xff]
  %v316 = vld [vmem:[%s1 + $0x2d0] sm:$0xff]
  %v317 = vld [vmem:[%s1 + $0x2d8] sm:$0xff]
  %v318 = vld [vmem:[%s1 + $0x2e0] sm:$0xff]
  %v319 = vld [vmem:[%s1 + $0x2e8] sm:$0xff]
  %v320 = vld [vmem:[%s1 + $0x2f0] sm:$0xff]
  %v321 = vld [vmem:[%s1 + $0x2f8] sm:$0xff]
  %v322 = vld [vmem:[%s1 + $0x300] sm:$0xff]
  %v323 = vld [vmem:[%s1 + $0x308] sm:$0xff]
  %v324 = vld [vmem:[%s1 + $0x310] sm:$0xff]
  %v325 = vld [vmem:[%s1 + $0x318] sm:$0xff]
  %v326 = vld [vmem:[%s1 + $0x320] sm:$0xff]
  %v327 = vld [vmem:[%s1 + $0x328] sm:$0xff]
  %v328 = vld [vmem:[%s1 + $0x330] sm:$0xff]
  %v329 = vld [vmem:[%s1 + $0x338] sm:$0xff]
  %v330 = vld [vmem:[%s1 + $0x340] sm:$0xff]
  %v331 = vld [vmem:[%s1 + $0x348] sm:$0xff]
  %v332 = vld [vmem:[%s1 + $0x350] sm:$0xff]
  %v333 = vld [vmem:[%s1 + $0x358] sm:$0xff]
  %v334 = vld [vmem:[%s1 + $0x360] sm:$0xff]
  %v335 = vld [vmem:[%s1 + $0x368] sm:$0xff]
  %v336 = vld [vmem:[%s1 + $0x370] sm:$0xff]
  %v337 = vld [vmem:[%s1 + $0x378] sm:$0xff]
  %v338 = vld [vmem:[%s1 + $0x380] sm:$0xff]
  %v339 = vld [vmem:[%s1 + $0x388] sm:$0xff]
  %v340 = vld [vmem:[%s1 + $0x390] sm:$0xff]
  %v341 = vld [vmem:[%s1 + $0x398] sm:$0xff]
  %v342 = vld [vmem:[%s1 + $0x3a0] sm:$0xff]
  %v343 = vld [vmem:[%s1 + $0x3a8] sm:$0xff]
  %v344 = vld [vmem:[%s1 + $0x3b0] sm:$0xff]
  %v345 = vld [vmem:[%s1 + $0x3b8] sm:$0xff]
  %v346 = vld [vmem:[%s1 + $0x3c0] sm:$0xff]
  %v347 = vld [vmem:[%s1 + $0x3c8] sm:$0xff]
  %v348 = vld [vmem:[%s1 + $0x3d0] sm:$0xff]
  %v349 = vld [vmem:[%s1 + $0x3d8] sm:$0xff]
  %v350 = vld [vmem:[%s1 + $0x3e0] sm:$0xff]
  %v351 = vld [vmem:[%s1 + $0x3e8] sm:$0xff]
  %v352 = vld [vmem:[%s1 + $0x3f0] sm:$0xff]
  %v353 = vld [vmem:[%s1 + $0x3f8] sm:$0xff]
  %v354 = vld [vmem:[%s1 + $0x400] sm:$0xff]
  %v355 = vld [vmem:[%s1 + $0x408] sm:$0xff]
  %v356 = vld [vmem:[%s1 + $0x410] sm:$0xff]
  %v357 = vld [vmem:[%s1 + $0x418] sm:$0xff]
  %v358 = vld [vmem:[%s1 + $0x420] sm:$0xff]
  %v359 = vld [vmem:[%s1 + $0x428] sm:$0xff]
  %v360 = vld [vmem:[%s1 + $0x430] sm:$0xff]
  %v361 = vld [vmem:[%s1 + $0x438] sm:$0xff]
  %v362 = vld [vmem:[%s1 + $0x440] sm:$0xff]
  %v363 = vld [vmem:[%s1 + $0x448] sm:$0xff]
  %v364 = vld [vmem:[%s1 + $0x450] sm:$0xff]
  %v365 = vld [vmem:[%s1 + $0x458] sm:$0xff]
  %v366 = vld [vmem:[%s1 + $0x460] sm:$0xff]
  %v367 = vld [vmem:[%s1 + $0x468] sm:$0xff]
  %v368 = vld [vmem:[%s1 + $0x470] sm:$0xff]
  %v369 = vld [vmem:[%s1 + $0x478] sm:$0xff]
  %v370 = vld [vmem:[%s1 + $0x480] sm:$0xff]
  %v371 = vld [vmem:[%s1 + $0x488] sm:$0xff]
  %v372 = vld [vmem:[%s1 + $0x490] sm:$0xff]
  %v373 = vld [vmem:[%s1 + $0x498] sm:$0xff]
  %v374 = vld [vmem:[%s1 + $0x4a0] sm:$0xff]
  %v375 = vld [vmem:[%s1 + $0x4a8] sm:$0xff]
  %v376 = vld [vmem:[%s1 + $0x4b0] sm:$0xff]
  %v377 = vld [vmem:[%s1 + $0x4b8] sm:$0xff]
  %v378 = vld [vmem:[%s1 + $0x4c0] sm:$0xff]
  %v379 = vld [vmem:[%s1 + $0x4c8] sm:$0xff]
  %v380 = vld [vmem:[%s1 + $0x4d0] sm:$0xff]
  %v381 = vld [vmem:[%s1 + $0x4d8] sm:$0xff]
  %v382 = vld [vmem:[%s1 + $0x4e0] sm:$0xff]
  %v383 = vld [vmem:[%s1 + $0x4e8] sm:$0xff]
  %v384 = vld [vmem:[%s1 + $0x4f0] sm:$0xff]
  %v385 = vld [vmem:[%s1 + $0x4f8] sm:$0xff]
  %v386 = vld [vmem:[%s1 + $0x500] sm:$0xff]
  %v387 = vld [vmem:[%s1 + $0x508] sm:$0xff]
  %v388 = vld [vmem:[%s1 + $0x510] sm:$0xff]
  %v389 = vld [vmem:[%s1 + $0x518] sm:$0xff]
  %v390 = vld [vmem:[%s1 + $0x520] sm:$0xff]
  %v391 = vld [vmem:[%s1 + $0x528] sm:$0xff]
  %v392 = vld [vmem:[%s1 + $0x530] sm:$0xff]
  %v393 = vld [vmem:[%s1 + $0x538] sm:$0xff]
  %v394 = vld [vmem:[%s1 + $0x540] sm:$0xff]
  %v395 = vld [vmem:[%s1 + $0x548] sm:$0xff]
  %v396 = vld [vmem:[%s1 + $0x550] sm:$0xff]
  %v397 = vld [vmem:[%s1 + $0x558] sm:$0xff]
  %v398 = vld [vmem:[%s1 + $0x560] sm:$0xff]
  %v399 = vld [vmem:[%s1 + $0x568] sm:$0xff]
  %v400 = vld [vmem:[%s1 + $0x570] sm:$0xff]
  %v401 = vld [vmem:[%s1 + $0x578] sm:$0xff]
  %v402 = vld [vmem:[%s1 + $0x580] sm:$0xff]
  %v403 = vld [vmem:[%s1 + $0x588] sm:$0xff]
  %v404 = vld [vmem:[%s1 + $0x590] sm:$0xff]
  %v405 = vld [vmem:[%s1 + $0x598] sm:$0xff]
  %v406 = vld [vmem:[%s1 + $0x5a0] sm:$0xff]
  %v407 = vld [vmem:[%s1 + $0x5a8] sm:$0xff]
  %v408 = vld [vmem:[%s1 + $0x5b0] sm:$0xff]
  %v409 = vld [vmem:[%s1 + $0x5b8] sm:$0xff]
  %v410 = vld [vmem:[%s1 + $0x5c0] sm:$0xff]
  %v411 = vld [vmem:[%s1 + $0x5c8] sm:$0xff]
  %v412 = vld [vmem:[%s1 + $0x5d0] sm:$0xff]
  %v413 = vld [vmem:[%s1 + $0x5d8] sm:$0xff]
  %v414 = vld [vmem:[%s1 + $0x5e0] sm:$0xff]
  %v415 = vld [vmem:[%s1 + $0x5e8] sm:$0xff]
  %v416 = vld [vmem:[%s1 + $0x5f0] sm:$0xff]
  %v417 = vld [vmem:[%s1 + $0x5f8] sm:$0xff]
  %v418 = vld [vmem:[%s1 + $0x600] sm:$0xff]
  %v419 = vld [vmem:[%s1 + $0x608] sm:$0xff]
  %v420 = vld [vmem:[%s1 + $0x610] sm:$0xff]
  %v421 = vld [vmem:[%s1 + $0x618] sm:$0xff]
  %v422 = vld [vmem:[%s1 + $0x620] sm:$0xff]
  %v423 = vld [vmem:[%s1 + $0x628] sm:$0xff]
  %v424 = vld [vmem:[%s1 + $0x630] sm:$0xff]
  %v425 = vld [vmem:[%s1 + $0x638] sm:$0xff]
  %v426 = vld [vmem:[%s1 + $0x640] sm:$0xff]
  %v427 = vld [vmem:[%s1 + $0x648] sm:$0xff]
  %v428 = vld [vmem:[%s1 + $0x650] sm:$0xff]
  %v429 = vld [vmem:[%s1 + $0x658] sm:$0xff]
  %v430 = vld [vmem:[%s1 + $0x660] sm:$0xff]
  %v431 = vld [vmem:[%s1 + $0x668] sm:$0xff]
  %v432 = vld [vmem:[%s1 + $0x670] sm:$0xff]
  %v433 = vld [vmem:[%s1 + $0x678] sm:$0xff]
  %v434 = vld [vmem:[%s1 + $0x680] sm:$0xff]
  %v435 = vld [vmem:[%s1 + $0x688] sm:$0xff]
  %v436 = vld [vmem:[%s1 + $0x690] sm:$0xff]
  %v437 = vld [vmem:[%s1 + $0x698] sm:$0xff]
  %v438 = vld [vmem:[%s1 + $0x6a0] sm:$0xff]
  %v439 = vld [vmem:[%s1 + $0x6a8] sm:$0xff]
  %v440 = vld [vmem:[%s1 + $0x6b0] sm:$0xff]
  %v441 = vld [vmem:[%s1 + $0x6b8] sm:$0xff]
  %v442 = vld [vmem:[%s1 + $0x6c0] sm:$0xff]
  %v443 = vld [vmem:[%s1 + $0x6c8] sm:$0xff]
  %v444 = vld [vmem:[%s1 + $0x6d0] sm:$0xff]
  %v445 = vld [vmem:[%s1 + $0x6d8] sm:$0xff]
  %v446 = vld [vmem:[%s1 + $0x6e0] sm:$0xff]
  %v447 = vld [vmem:[%s1 + $0x6e8] sm:$0xff]
  %v448 = vld [vmem:[%s1 + $0x6f0] sm:$0xff]
  %v449 = vld [vmem:[%s1 + $0x6f8] sm:$0xff]
  %v450 = vld [vmem:[%s1 + $0x700] sm:$0xff]
  %v451 = vld [vmem:[%s1 + $0x708] sm:$0xff]
  %v452 = vld [vmem:[%s1 + $0x710] sm:$0xff]
  %v453 = vld [vmem:[%s1 + $0x718] sm:$0xff]
  %v454 = vld [vmem:[%s1 + $0x720] sm:$0xff]
  %v455 = vld [vmem:[%s1 + $0x728] sm:$0xff]
  %v456 = vld [vmem:[%s1 + $0x730] sm:$0xff]
  %v457 = vld [vmem:[%s1 + $0x738] sm:$0xff]
  %v458 = vld [vmem:[%s1 + $0x740] sm:$0xff]
  %v459 = vld [vmem:[%s1 + $0x748] sm:$0xff]
  %v460 = vld [vmem:[%s1 + $0x750] sm:$0xff]
  %v461 = vld [vmem:[%s1 + $0x758] sm:$0xff]
  %v462 = vld [vmem:[%s1 + $0x760] sm:$0xff]
  %v463 = vld [vmem:[%s1 + $0x768] sm:$0xff]
  %v464 = vld [vmem:[%s1 + $0x770] sm:$0xff]
  %v465 = vld [vmem:[%s1 + $0x778] sm:$0xff]
  %v466 = vld [vmem:[%s1 + $0x780] sm:$0xff]
  %v467 = vld [vmem:[%s1 + $0x788] sm:$0xff]
  %v468 = vld [vmem:[%s1 + $0x790] sm:$0xff]
  %v469 = vld [vmem:[%s1 + $0x798] sm:$0xff]
  %v470 = vld [vmem:[%s1 + $0x7a0] sm:$0xff]
  %v471 = vld [vmem:[%s1 + $0x7a8] sm:$0xff]
  %v472 = vld [vmem:[%s1 + $0x7b0] sm:$0xff]
  %v473 = vld [vmem:[%s1 + $0x7b8] sm:$0xff]
  %v474 = vld [vmem:[%s1 + $0x7c0] sm:$0xff]
  %v475 = vld [vmem:[%s1 + $0x7c8] sm:$0xff]
  %v476 = vld [vmem:[%s1 + $0x7d0] sm:$0xff]
  %v477 = vld [vmem:[%s1 + $0x7d8] sm:$0xff]
  %v478 = vld [vmem:[%s1 + $0x7e0] sm:$0xff]
  %v479 = vld [vmem:[%s1 + $0x7e8] sm:$0xff]
  %v480 = vld [vmem:[%s1 + $0x7f0] sm:$0xff]
  %v481 = vld [vmem:[%s1 + $0x7f8] sm:$0xff]
  %v482 = vld [vmem:[%s1 + $0x800] sm:$0xff]
  %v483 = vld [vmem:[%s1 + $0x808] sm:$0xff]
  %v484 = vld [vmem:[%s1 + $0x810] sm:$0xff]
  %v485 = vld [vmem:[%s1 + $0x818] sm:$0xff]
  %v486 = vld [vmem:[%s1 + $0x820] sm:$0xff]
  %v487 = vld [vmem:[%s1 + $0x828] sm:$0xff]
  %v488 = vld [vmem:[%s1 + $0x830] sm:$0xff]
  %v489 = vld [vmem:[%s1 + $0x838] sm:$0xff]
  %v490 = vld [vmem:[%s1 + $0x840] sm:$0xff]
  %v491 = vld [vmem:[%s1 + $0x848] sm:$0xff]
  %v492 = vld [vmem:[%s1 + $0x850] sm:$0xff]
  %v493 = vld [vmem:[%s1 + $0x858] sm:$0xff]
  %v494 = vld [vmem:[%s1 + $0x860] sm:$0xff]
  %v495 = vld [vmem:[%s1 + $0x868] sm:$0xff]
  %v496 = vld [vmem:[%s1 + $0x870] sm:$0xff]
  %v497 = vld [vmem:[%s1 + $0x878] sm:$0xff]
  %v498 = vld [vmem:[%s1 + $0x880] sm:$0xff]
  %v499 = vld [vmem:[%s1 + $0x888] sm:$0xff]
  %v500 = vld [vmem:[%s1 + $0x890] sm:$0xff]
  %v501 = vld [vmem:[%s1 + $0x898] sm:$0xff]
  %v502 = vld [vmem:[%s1 + $0x8a0] sm:$0xff]
  %v503 = vld [vmem:[%s1 + $0x8a8] sm:$0xff]
  %v504 = vld [vmem:[%s1 + $0x8b0] sm:$0xff]
  %v505 = vld [vmem:[%s1 + $0x8b8] sm:$0xff]
  %v506 = vld [vmem:[%s1 + $0x8c0] sm:$0xff]
  %v507 = vld [vmem:[%s1 + $0x8c8] sm:$0xff]
  %v508 = vld [vmem:[%s1 + $0x8d0] sm:$0xff]
  %v509 = vld [vmem:[%s1 + $0x8d8] sm:$0xff]
  %v510 = vld [vmem:[%s1 + $0x8e0] sm:$0xff]
  %v511 = vld [vmem:[%s1 + $0x8e8] sm:$0xff]
  %v512 = vld [vmem:[%s1 + $0x8f0] sm:$0xff]
  %v513 = vld [vmem:[%s1 + $0x8f8] sm:$0xff]
  %v514 = vld [vmem:[%s1 + $0x900] sm:$0xff]
  %v515 = vld [vmem:[%s1 + $0x908] sm:$0xff]
  %v516 = vld [vmem:[%s1 + $0x910] sm:$0xff]
  %v517 = vld [vmem:[%s1 + $0x918] sm:$0xff]
  %v518 = vld [vmem:[%s1 + $0x920] sm:$0xff]
  %v519 = vld [vmem:[%s1 + $0x928] sm:$0xff]
  %v520 = vld [vmem:[%s1 + $0x930] sm:$0xff]
  %v521 = vld [vmem:[%s1 + $0x938] sm:$0xff]
  %v522 = vld [vmem:[%s1 + $0x940] sm:$0xff]
  %v523 = vld [vmem:[%s1 + $0x948] sm:$0xff]
  %v524 = vld [vmem:[%s1 + $0x950] sm:$0xff]
  %v525 = vld [vmem:[%s1 + $0x958] sm:$0xff]
  %v526 = vld [vmem:[%s1 + $0x960] sm:$0xff]
  %v527 = vld [vmem:[%s1 + $0x968] sm:$0xff]
  %v528 = vld [vmem:[%s1 + $0x970] sm:$0xff]
  %v529 = vld [vmem:[%s1 + $0x978] sm:$0xff]
  %v530 = vld [vmem:[%s1 + $0x980] sm:$0xff]
  %v531 = vld [vmem:[%s1 + $0x988] sm:$0xff]
  %v532 = vld [vmem:[%s1 + $0x990] sm:$0xff]
  %v533 = vld [vmem:[%s1 + $0x998] sm:$0xff]
  %v534 = vld [vmem:[%s1 + $0x9a0] sm:$0xff]
  %v535 = vld [vmem:[%s1 + $0x9a8] sm:$0xff]
  %v536 = vld [vmem:[%s1 + $0x9b0] sm:$0xff]
  %v537 = vld [vmem:[%s1 + $0x9b8] sm:$0xff]
  %v538 = vld [vmem:[%s1 + $0x9c0] sm:$0xff]
  %v539 = vld [vmem:[%s1 + $0x9c8] sm:$0xff]
  %v540 = vld [vmem:[%s1 + $0x9d0] sm:$0xff]
  %v541 = vld [vmem:[%s1 + $0x9d8] sm:$0xff]
  %v542 = vld [vmem:[%s1 + $0x9e0] sm:$0xff]
  %v543 = vld [vmem:[%s1 + $0x9e8] sm:$0xff]
  %v544 = vld [vmem:[%s1 + $0x9f0] sm:$0xff]
  %v545 = vld [vmem:[%s1 + $0x9f8] sm:$0xff]
  %v546 = vld [vmem:[%s1 + $0xa00] sm:$0xff]
  %v547 = vld [vmem:[%s1 + $0xa08] sm:$0xff]
  %v548 = vld [vmem:[%s1 + $0xa10] sm:$0xff]
  %v549 = vld [vmem:[%s1 + $0xa18] sm:$0xff]
  %v550 = vld [vmem:[%s1 + $0xa20] sm:$0xff]
  %v551 = vld [vmem:[%s1 + $0xa28] sm:$0xff]
  %v552 = vld [vmem:[%s1 + $0xa30] sm:$0xff]
  %v553 = vld [vmem:[%s1 + $0xa38] sm:$0xff]
  %v554 = vld [vmem:[%s1 + $0xa40] sm:$0xff]
  %v555 = vld [vmem:[%s1 + $0xa48] sm:$0xff]
  %v556 = vld [vmem:[%s1 + $0xa50] sm:$0xff]
  %v557 = vld [vmem:[%s1 + $0xa58] sm:$0xff]
  %v558 = vld [vmem:[%s1 + $0xa60] sm:$0xff]
  %v559 = vld [vmem:[%s1 + $0xa68] sm:$0xff]
  %v560 = vld [vmem:[%s1 + $0xa70] sm:$0xff]
  %v561 = vld [vmem:[%s1 + $0xa78] sm:$0xff]
  %v562 = vld [vmem:[%s1 + $0xa80] sm:$0xff]
  %v563 = vld [vmem:[%s1 + $0xa88] sm:$0xff]
  %v564 = vld [vmem:[%s1 + $0xa90] sm:$0xff]
  %v565 = vld [vmem:[%s1 + $0xa98] sm:$0xff]
  %v566 = vld [vmem:[%s1 + $0xaa0] sm:$0xff]
  %v567 = vld [vmem:[%s1 + $0xaa8] sm:$0xff]
  %v568 = vld [vmem:[%s1 + $0xab0] sm:$0xff]
  %v569 = vld [vmem:[%s1 + $0xab8] sm:$0xff]
  %v570 = vld [vmem:[%s1 + $0xac0] sm:$0xff]
  %v571 = vld [vmem:[%s1 + $0xac8] sm:$0xff]
  %v572 = vld [vmem:[%s1 + $0xad0] sm:$0xff]
  %v573 = vld [vmem:[%s1 + $0xad8] sm:$0xff]
  %v574 = vld [vmem:[%s1 + $0xae0] sm:$0xff]
  %v575 = vld [vmem:[%s1 + $0xae8] sm:$0xff]
  %v576 = vld [vmem:[%s1 + $0xaf0] sm:$0xff]
  %v577 = vld [vmem:[%s1 + $0xaf8] sm:$0xff]
  %v578 = vld [vmem:[%s1 + $0xb00] sm:$0xff]
  %v579 = vld [vmem:[%s1 + $0xb08] sm:$0xff]
  %v580 = vld [vmem:[%s1 + $0xb10] sm:$0xff]
  %v581 = vld [vmem:[%s1 + $0xb18] sm:$0xff]
  %v582 = vld [vmem:[%s1 + $0xb20] sm:$0xff]
  %v583 = vld [vmem:[%s1 + $0xb28] sm:$0xff]
  %v584 = vld [vmem:[%s1 + $0xb30] sm:$0xff]
  %v585 = vld [vmem:[%s1 + $0xb38] sm:$0xff]
  %v586 = vld [vmem:[%s1 + $0xb40] sm:$0xff]
  %v587 = vld [vmem:[%s1 + $0xb48] sm:$0xff]
  %v588 = vld [vmem:[%s1 + $0xb50] sm:$0xff]
  %v589 = vld [vmem:[%s1 + $0xb58] sm:$0xff]
  %v590 = vld [vmem:[%s1 + $0xb60] sm:$0xff]
  %v591 = vld [vmem:[%s1 + $0xb68] sm:$0xff]
  %v592 = vld [vmem:[%s1 + $0xb70] sm:$0xff]
  %v593 = vld [vmem:[%s1 + $0xb78] sm:$0xff]
  %v594 = vld [vmem:[%s1 + $0xb80] sm:$0xff]
  %v595 = vld [vmem:[%s1 + $0xb88] sm:$0xff]
  %v596 = vld [vmem:[%s1 + $0xb90] sm:$0xff]
  %v597 = vld [vmem:[%s1 + $0xb98] sm:$0xff]
  %v598 = vld [vmem:[%s1 + $0xba0] sm:$0xff]
  %v599 = vld [vmem:[%s1 + $0xba8] sm:$0xff]
  %v600 = vld [vmem:[%s1 + $0xbb0] sm:$0xff]
  %v601 = vld [vmem:[%s1 + $0xbb8] sm:$0xff]
  %v602 = vld [vmem:[%s1 + $0xbc0] sm:$0xff]
  %v603 = vld [vmem:[%s1 + $0xbc8] sm:$0xff]
  %v604 = vld [vmem:[%s1 + $0xbd0] sm:$0xff]
  %v605 = vld [vmem:[%s1 + $0xbd8] sm:$0xff]
  %v606 = vld [vmem:[%s1 + $0xbe0] sm:$0xff]
  %v607 = vld [vmem:[%s1 + $0xbe8] sm:$0xff]
  %v608 = vld [vmem:[%s1 + $0xbf0] sm:$0xff]
  %v609 = vld [vmem:[%s1 + $0xbf8] sm:$0xff]
  %v610 = vld [vmem:[%s1 + $0xc00] sm:$0xff]
  %v611 = vld [vmem:[%s1 + $0xc08] sm:$0xff]
  %v612 = vld [vmem:[%s1 + $0xc10] sm:$0xff]
  %v613 = vld [vmem:[%s1 + $0xc18] sm:$0xff]
  %v614 = vld [vmem:[%s1 + $0xc20] sm:$0xff]
  %v615 = vld [vmem:[%s1 + $0xc28] sm:$0xff]
  %v616 = vld [vmem:[%s1 + $0xc30] sm:$0xff]
  %v617 = vld [vmem:[%s1 + $0xc38] sm:$0xff]
  %v618 = vld [vmem:[%s1 + $0xc40] sm:$0xff]
  %v619 = vld [vmem:[%s1 + $0xc48] sm:$0xff]
  %v620 = vld [vmem:[%s1 + $0xc50] sm:$0xff]
  %v621 = vld [vmem:[%s1 + $0xc58] sm:$0xff]
  %v622 = vld [vmem:[%s1 + $0xc60] sm:$0xff]
  %v623 = vld [vmem:[%s1 + $0xc68] sm:$0xff]
  %v624 = vld [vmem:[%s1 + $0xc70] sm:$0xff]
  %v625 = vld [vmem:[%s1 + $0xc78] sm:$0xff]
  %v626 = vld [vmem:[%s1 + $0xc80] sm:$0xff]
  %v627 = vld [vmem:[%s1 + $0xc88] sm:$0xff]
  %v628 = vld [vmem:[%s1 + $0xc90] sm:$0xff]
  %v629 = vld [vmem:[%s1 + $0xc98] sm:$0xff]
  %v630 = vld [vmem:[%s1 + $0xca0] sm:$0xff]
  %v631 = vld [vmem:[%s1 + $0xca8] sm:$0xff]
  %v632 = vld [vmem:[%s1 + $0xcb0] sm:$0xff]
  %v633 = vld [vmem:[%s1 + $0xcb8] sm:$0xff]
  %v634 = vld [vmem:[%s1 + $0xcc0] sm:$0xff]
  %v635 = vld [vmem:[%s1 + $0xcc8] sm:$0xff]
  %v636 = vld [vmem:[%s1 + $0xcd0] sm:$0xff]
  %v637 = vld [vmem:[%s1 + $0xcd8] sm:$0xff]
  %v638 = vld [vmem:[%s1 + $0xce0] sm:$0xff]
  %v639 = vld [vmem:[%s1 + $0xce8] sm:$0xff]
  %v640 = vld [vmem:[%s1 + $0xcf0] sm:$0xff]
  %v641 = vld [vmem:[%s1 + $0xcf8] sm:$0xff]
  %v642 = vld [vmem:[%s1 + $0xd00] sm:$0xff]
  %v643 = vld [vmem:[%s1 + $0xd08] sm:$0xff]
  %v644 = vld [vmem:[%s1 + $0xd10] sm:$0xff]
  %v645 = vld [vmem:[%s1 + $0xd18] sm:$0xff]
  %v646 = vld [vmem:[%s1 + $0xd20] sm:$0xff]
  %v647 = vld [vmem:[%s1 + $0xd28] sm:$0xff]
  %v648 = vld [vmem:[%s1 + $0xd30] sm:$0xff]
  %v649 = vld [vmem:[%s1 + $0xd38] sm:$0xff]
  %v650 = vld [vmem:[%s1 + $0xd40] sm:$0xff]
  %v651 = vld [vmem:[%s1 + $0xd48] sm:$0xff]
  %v652 = vld [vmem:[%s1 + $0xd50] sm:$0xff]
  %v653 = vld [vmem:[%s1 + $0xd58] sm:$0xff]
  %v654 = vld [vmem:[%s1 + $0xd60] sm:$0xff]
  %v655 = vld [vmem:[%s1 + $0xd68] sm:$0xff]
  %v656 = vld [vmem:[%s1 + $0xd70] sm:$0xff]
  %v657 = vld [vmem:[%s1 + $0xd78] sm:$0xff]
  %v658 = vld [vmem:[%s1 + $0xd80] sm:$0xff]
  %v659 = vld [vmem:[%s1 + $0xd88] sm:$0xff]
  %v660 = vld [vmem:[%s1 + $0xd90] sm:$0xff]
  %v661 = vld [vmem:[%s1 + $0xd98] sm:$0xff]
  %v662 = vld [vmem:[%s1 + $0xda0] sm:$0xff]
  %v663 = vld [vmem:[%s1 + $0xda8] sm:$0xff]
  %v664 = vld [vmem:[%s1 + $0xdb0] sm:$0xff]
  %v665 = vld [vmem:[%s1 + $0xdb8] sm:$0xff]
  %v666 = vld [vmem:[%s1 + $0xdc0] sm:$0xff]
  %v667 = vld [vmem:[%s1 + $0xdc8] sm:$0xff]
  %v668 = vld [vmem:[%s1 + $0xdd0] sm:$0xff]
  %v669 = vld [vmem:[%s1 + $0xdd8] sm:$0xff]
  %v670 = vld [vmem:[%s1 + $0xde0] sm:$0xff]
  %v671 = vld [vmem:[%s1 + $0xde8] sm:$0xff]
  %v672 = vld [vmem:[%s1 + $0xdf0] sm:$0xff]
  %v673 = vld [vmem:[%s1 + $0xdf8] sm:$0xff]
  %v674 = vld [vmem:[%s1 + $0xe00] sm:$0xff]
  %v675 = vld [vmem:[%s1 + $0xe08] sm:$0xff]
  %v676 = vld [vmem:[%s1 + $0xe10] sm:$0xff]
  %v677 = vld [vmem:[%s1 + $0xe18] sm:$0xff]
  %v678 = vld [vmem:[%s1 + $0xe20] sm:$0xff]
  %v679 = vld [vmem:[%s1 + $0xe28] sm:$0xff]
  %v680 = vld [vmem:[%s1 + $0xe30] sm:$0xff]
  %v681 = vld [vmem:[%s1 + $0xe38] sm:$0xff]
  %v682 = vld [vmem:[%s1 + $0xe40] sm:$0xff]
  %v683 = vld [vmem:[%s1 + $0xe48] sm:$0xff]
  %v684 = vld [vmem:[%s1 + $0xe50] sm:$0xff]
  %v685 = vld [vmem:[%s1 + $0xe58] sm:$0xff]
  %v686 = vld [vmem:[%s1 + $0xe60] sm:$0xff]
  %v687 = vld [vmem:[%s1 + $0xe68] sm:$0xff]
  %v688 = vld [vmem:[%s1 + $0xe70] sm:$0xff]
  %v689 = vld [vmem:[%s1 + $0xe78] sm:$0xff]
  %v690 = vld [vmem:[%s1 + $0xe80] sm:$0xff]
  %v691 = vld [vmem:[%s1 + $0xe88] sm:$0xff]
  %v692 = vld [vmem:[%s1 + $0xe90] sm:$0xff]
  %v693 = vld [vmem:[%s1 + $0xe98] sm:$0xff]
  %v694 = vld [vmem:[%s1 + $0xea0] sm:$0xff]
  %v695 = vld [vmem:[%s1 + $0xea8] sm:$0xff]
  %v696 = vld [vmem:[%s1 + $0xeb0] sm:$0xff]
  %v697 = vld [vmem:[%s1 + $0xeb8] sm:$0xff]
  %v698 = vld [vmem:[%s1 + $0xec0] sm:$0xff]
  %v699 = vld [vmem:[%s1 + $0xec8] sm:$0xff]
  %v700 = vld [vmem:[%s1 + $0xed0] sm:$0xff]
  %v701 = vld [vmem:[%s1 + $0xed8] sm:$0xff]
  %v702 = vld [vmem:[%s1 + $0xee0] sm:$0xff]
  %v703 = vld [vmem:[%s1 + $0xee8] sm:$0xff]
  %v704 = vld [vmem:[%s1 + $0xef0] sm:$0xff]
  %v705 = vld [vmem:[%s1 + $0xef8] sm:$0xff]
  %v706 = vld [vmem:[%s1 + $0xf00] sm:$0xff]
  %v707 = vld [vmem:[%s1 + $0xf08] sm:$0xff]
  %v708 = vld [vmem:[%s1 + $0xf10] sm:$0xff]
  %v709 = vld [vmem:[%s1 + $0xf18] sm:$0xff]
  %v710 = vld [vmem:[%s1 + $0xf20] sm:$0xff]
  %v711 = vld [vmem:[%s1 + $0xf28] sm:$0xff]
  %v712 = vld [vmem:[%s1 + $0xf30] sm:$0xff]
  %v713 = vld [vmem:[%s1 + $0xf38] sm:$0xff]
  %v714 = vld [vmem:[%s1 + $0xf40] sm:$0xff]
  %v715 = vld [vmem:[%s1 + $0xf48] sm:$0xff]
  %v716 = vld [vmem:[%s1 + $0xf50] sm:$0xff]
  %v717 = vld [vmem:[%s1 + $0xf58] sm:$0xff]
  %v718 = vld [vmem:[%s1 + $0xf60] sm:$0xff]
  %v719 = vld [vmem:[%s1 + $0xf68] sm:$0xff]
  %v720 = vld [vmem:[%s1 + $0xf70] sm:$0xff]
  %v721 = vld [vmem:[%s1 + $0xf78] sm:$0xff]
  %v722 = vld [vmem:[%s1 + $0xf80] sm:$0xff]
  %v723 = vld [vmem:[%s1 + $0xf88] sm:$0xff]
  %v724 = vld [vmem:[%s1 + $0xf90] sm:$0xff]
  %v725 = vld [vmem:[%s1 + $0xf98] sm:$0xff]
  %v726 = vld [vmem:[%s1 + $0xfa0] sm:$0xff]
  %v727 = vld [vmem:[%s1 + $0xfa8] sm:$0xff]
  %v728 = vld [vmem:[%s1 + $0xfb0] sm:$0xff]
  %v729 = vld [vmem:[%s1 + $0xfb8] sm:$0xff]
  %v730 = vld [vmem:[%s1 + $0xfc0] sm:$0xff]
  %v731 = vld [vmem:[%s1 + $0xfc8] sm:$0xff]
  %v732 = vld [vmem:[%s1 + $0xfd0] sm:$0xff]
  %v733 = vld [vmem:[%s1 + $0xfd8] sm:$0xff]
  %v734 = vld [vmem:[%s1 + $0xfe0] sm:$0xff]
  %v735 = vld [vmem:[%s1 + $0xfe8] sm:$0xff]
  %v736 = vld [vmem:[%s1 + $0xff0] sm:$0xff]
  %v737 = vld [vmem:[%s1 + $0xff8] sm:$0xff]
  %v1250 = vunpack.c.l.b16 %v226
  %v1251 = vunpack.c.h.b16 %v226
  %v1252 = vunpack.c.l.b16 %v227
  %v1253 = vunpack.c.h.b16 %v227
  %v1254 = vunpack.c.l.b16 %v228
  %v1255 = vunpack.c.h.b16 %v228
  %v1256 = vunpack.c.l.b16 %v229
  %v1257 = vunpack.c.h.b16 %v229
  %v1258 = vunpack.c.l.b16 %v230
  %v1259 = vunpack.c.h.b16 %v230
  %v1260 = vunpack.c.l.b16 %v231
  %v1261 = vunpack.c.h.b16 %v231
  %v1262 = vunpack.c.l.b16 %v232
  %v1263 = vunpack.c.h.b16 %v232
  %v1264 = vunpack.c.l.b16 %v233
  %v1265 = vunpack.c.h.b16 %v233
  %v1266 = vunpack.c.l.b16 %v234
  %v1267 = vunpack.c.h.b16 %v234
  %v1268 = vunpack.c.l.b16 %v235
  %v1269 = vunpack.c.h.b16 %v235
  %v1270 = vunpack.c.l.b16 %v236
  %v1271 = vunpack.c.h.b16 %v236
  %v1272 = vunpack.c.l.b16 %v237
  %v1273 = vunpack.c.h.b16 %v237
  %v1274 = vunpack.c.l.b16 %v238
  %v1275 = vunpack.c.h.b16 %v238
  %v1276 = vunpack.c.l.b16 %v239
  %v1277 = vunpack.c.h.b16 %v239
  %v1278 = vunpack.c.l.b16 %v240
  %v1279 = vunpack.c.h.b16 %v240
  %v1280 = vunpack.c.l.b16 %v241
  %v1281 = vunpack.c.h.b16 %v241
  %v1282 = vunpack.c.l.b16 %v242
  %v1283 = vunpack.c.h.b16 %v242
  %v1284 = vunpack.c.l.b16 %v243
  %v1285 = vunpack.c.h.b16 %v243
  %v1286 = vunpack.c.l.b16 %v244
  %v1287 = vunpack.c.h.b16 %v244
  %v1288 = vunpack.c.l.b16 %v245
  %v1289 = vunpack.c.h.b16 %v245
  %v1290 = vunpack.c.l.b16 %v246
  %v1291 = vunpack.c.h.b16 %v246
  %v1292 = vunpack.c.l.b16 %v247
  %v1293 = vunpack.c.h.b16 %v247
  %v1294 = vunpack.c.l.b16 %v248
  %v1295 = vunpack.c.h.b16 %v248
  %v1296 = vunpack.c.l.b16 %v249
  %v1297 = vunpack.c.h.b16 %v249
  %v1298 = vunpack.c.l.b16 %v250
  %v1299 = vunpack.c.h.b16 %v250
  %v1300 = vunpack.c.l.b16 %v251
  %v1301 = vunpack.c.h.b16 %v251
  %v1302 = vunpack.c.l.b16 %v252
  %v1303 = vunpack.c.h.b16 %v252
  %v1304 = vunpack.c.l.b16 %v253
  %v1305 = vunpack.c.h.b16 %v253
  %v1306 = vunpack.c.l.b16 %v254
  %v1307 = vunpack.c.h.b16 %v254
  %v1308 = vunpack.c.l.b16 %v255
  %v1309 = vunpack.c.h.b16 %v255
  %v1310 = vunpack.c.l.b16 %v256
  %v1311 = vunpack.c.h.b16 %v256
  %v1312 = vunpack.c.l.b16 %v257
  %v1313 = vunpack.c.h.b16 %v257
  %v1314 = vunpack.c.l.b16 %v258
  %v1315 = vunpack.c.h.b16 %v258
  %v1316 = vunpack.c.l.b16 %v259
  %v1317 = vunpack.c.h.b16 %v259
  %v1318 = vunpack.c.l.b16 %v260
  %v1319 = vunpack.c.h.b16 %v260
  %v1320 = vunpack.c.l.b16 %v261
  %v1321 = vunpack.c.h.b16 %v261
  %v1322 = vunpack.c.l.b16 %v262
  %v1323 = vunpack.c.h.b16 %v262
  %v1324 = vunpack.c.l.b16 %v263
  %v1325 = vunpack.c.h.b16 %v263
  %v1326 = vunpack.c.l.b16 %v264
  %v1327 = vunpack.c.h.b16 %v264
  %v1328 = vunpack.c.l.b16 %v265
  %v1329 = vunpack.c.h.b16 %v265
  %v1330 = vunpack.c.l.b16 %v266
  %v1331 = vunpack.c.h.b16 %v266
  %v1332 = vunpack.c.l.b16 %v267
  %v1333 = vunpack.c.h.b16 %v267
  %v1334 = vunpack.c.l.b16 %v268
  %v1335 = vunpack.c.h.b16 %v268
  %v1336 = vunpack.c.l.b16 %v269
  %v1337 = vunpack.c.h.b16 %v269
  %v1338 = vunpack.c.l.b16 %v270
  %v1339 = vunpack.c.h.b16 %v270
  %v1340 = vunpack.c.l.b16 %v271
  %v1341 = vunpack.c.h.b16 %v271
  %v1342 = vunpack.c.l.b16 %v272
  %v1343 = vunpack.c.h.b16 %v272
  %v1344 = vunpack.c.l.b16 %v273
  %v1345 = vunpack.c.h.b16 %v273
  %v1346 = vunpack.c.l.b16 %v274
  %v1347 = vunpack.c.h.b16 %v274
  %v1348 = vunpack.c.l.b16 %v275
  %v1349 = vunpack.c.h.b16 %v275
  %v1350 = vunpack.c.l.b16 %v276
  %v1351 = vunpack.c.h.b16 %v276
  %v1352 = vunpack.c.l.b16 %v277
  %v1353 = vunpack.c.h.b16 %v277
  %v1354 = vunpack.c.l.b16 %v278
  %v1355 = vunpack.c.h.b16 %v278
  %v1356 = vunpack.c.l.b16 %v279
  %v1357 = vunpack.c.h.b16 %v279
  %v1358 = vunpack.c.l.b16 %v280
  %v1359 = vunpack.c.h.b16 %v280
  %v1360 = vunpack.c.l.b16 %v281
  %v1361 = vunpack.c.h.b16 %v281
  %v1362 = vunpack.c.l.b16 %v282
  %v1363 = vunpack.c.h.b16 %v282
  %v1364 = vunpack.c.l.b16 %v283
  %v1365 = vunpack.c.h.b16 %v283
  %v1366 = vunpack.c.l.b16 %v284
  %v1367 = vunpack.c.h.b16 %v284
  %v1368 = vunpack.c.l.b16 %v285
  %v1369 = vunpack.c.h.b16 %v285
  %v1370 = vunpack.c.l.b16 %v286
  %v1371 = vunpack.c.h.b16 %v286
  %v1372 = vunpack.c.l.b16 %v287
  %v1373 = vunpack.c.h.b16 %v287
  %v1374 = vunpack.c.l.b16 %v288
  %v1375 = vunpack.c.h.b16 %v288
  %v1376 = vunpack.c.l.b16 %v289
  %v1377 = vunpack.c.h.b16 %v289
  %v1378 = vunpack.c.l.b16 %v290
  %v1379 = vunpack.c.h.b16 %v290
  %v1380 = vunpack.c.l.b16 %v291
  %v1381 = vunpack.c.h.b16 %v291
  %v1382 = vunpack.c.l.b16 %v292
  %v1383 = vunpack.c.h.b16 %v292
  %v1384 = vunpack.c.l.b16 %v293
  %v1385 = vunpack.c.h.b16 %v293
  %v1386 = vunpack.c.l.b16 %v294
  %v1387 = vunpack.c.h.b16 %v294
  %v1388 = vunpack.c.l.b16 %v295
  %v1389 = vunpack.c.h.b16 %v295
  %v1390 = vunpack.c.l.b16 %v296
  %v1391 = vunpack.c.h.b16 %v296
  %v1392 = vunpack.c.l.b16 %v297
  %v1393 = vunpack.c.h.b16 %v297
  %v1394 = vunpack.c.l.b16 %v298
  %v1395 = vunpack.c.h.b16 %v298
  %v1396 = vunpack.c.l.b16 %v299
  %v1397 = vunpack.c.h.b16 %v299
  %v1398 = vunpack.c.l.b16 %v300
  %v1399 = vunpack.c.h.b16 %v300
  %v1400 = vunpack.c.l.b16 %v301
  %v1401 = vunpack.c.h.b16 %v301
  %v1402 = vunpack.c.l.b16 %v302
  %v1403 = vunpack.c.h.b16 %v302
  %v1404 = vunpack.c.l.b16 %v303
  %v1405 = vunpack.c.h.b16 %v303
  %v1406 = vunpack.c.l.b16 %v304
  %v1407 = vunpack.c.h.b16 %v304
  %v1408 = vunpack.c.l.b16 %v305
  %v1409 = vunpack.c.h.b16 %v305
  %v1410 = vunpack.c.l.b16 %v306
  %v1411 = vunpack.c.h.b16 %v306
  %v1412 = vunpack.c.l.b16 %v307
  %v1413 = vunpack.c.h.b16 %v307
  %v1414 = vunpack.c.l.b16 %v308
  %v1415 = vunpack.c.h.b16 %v308
  %v1416 = vunpack.c.l.b16 %v309
  %v1417 = vunpack.c.h.b16 %v309
  %v1418 = vunpack.c.l.b16 %v310
  %v1419 = vunpack.c.h.b16 %v310
  %v1420 = vunpack.c.l.b16 %v311
  %v1421 = vunpack.c.h.b16 %v311
  %v1422 = vunpack.c.l.b16 %v312
  %v1423 = vunpack.c.h.b16 %v312
  %v1424 = vunpack.c.l.b16 %v313
  %v1425 = vunpack.c.h.b16 %v313
  %v1426 = vunpack.c.l.b16 %v314
  %v1427 = vunpack.c.h.b16 %v314
  %v1428 = vunpack.c.l.b16 %v315
  %v1429 = vunpack.c.h.b16 %v315
  %v1430 = vunpack.c.l.b16 %v316
  %v1431 = vunpack.c.h.b16 %v316
  %v1432 = vunpack.c.l.b16 %v317
  %v1433 = vunpack.c.h.b16 %v317
  %v1434 = vunpack.c.l.b16 %v318
  %v1435 = vunpack.c.h.b16 %v318
  %v1436 = vunpack.c.l.b16 %v319
  %v1437 = vunpack.c.h.b16 %v319
  %v1438 = vunpack.c.l.b16 %v320
  %v1439 = vunpack.c.h.b16 %v320
  %v1440 = vunpack.c.l.b16 %v321
  %v1441 = vunpack.c.h.b16 %v321
  %v1442 = vunpack.c.l.b16 %v322
  %v1443 = vunpack.c.h.b16 %v322
  %v1444 = vunpack.c.l.b16 %v323
  %v1445 = vunpack.c.h.b16 %v323
  %v1446 = vunpack.c.l.b16 %v324
  %v1447 = vunpack.c.h.b16 %v324
  %v1448 = vunpack.c.l.b16 %v325
  %v1449 = vunpack.c.h.b16 %v325
  %v1450 = vunpack.c.l.b16 %v326
  %v1451 = vunpack.c.h.b16 %v326
  %v1452 = vunpack.c.l.b16 %v327
  %v1453 = vunpack.c.h.b16 %v327
  %v1454 = vunpack.c.l.b16 %v328
  %v1455 = vunpack.c.h.b16 %v328
  %v1456 = vunpack.c.l.b16 %v329
  %v1457 = vunpack.c.h.b16 %v329
  %v1458 = vunpack.c.l.b16 %v330
  %v1459 = vunpack.c.h.b16 %v330
  %v1460 = vunpack.c.l.b16 %v331
  %v1461 = vunpack.c.h.b16 %v331
  %v1462 = vunpack.c.l.b16 %v332
  %v1463 = vunpack.c.h.b16 %v332
  %v1464 = vunpack.c.l.b16 %v333
  %v1465 = vunpack.c.h.b16 %v333
  %v1466 = vunpack.c.l.b16 %v334
  %v1467 = vunpack.c.h.b16 %v334
  %v1468 = vunpack.c.l.b16 %v335
  %v1469 = vunpack.c.h.b16 %v335
  %v1470 = vunpack.c.l.b16 %v336
  %v1471 = vunpack.c.h.b16 %v336
  %v1472 = vunpack.c.l.b16 %v337
  %v1473 = vunpack.c.h.b16 %v337
  %v1474 = vunpack.c.l.b16 %v338
  %v1475 = vunpack.c.h.b16 %v338
  %v1476 = vunpack.c.l.b16 %v339
  %v1477 = vunpack.c.h.b16 %v339
  %v1478 = vunpack.c.l.b16 %v340
  %v1479 = vunpack.c.h.b16 %v340
  %v1480 = vunpack.c.l.b16 %v341
  %v1481 = vunpack.c.h.b16 %v341
  %v1482 = vunpack.c.l.b16 %v342
  %v1483 = vunpack.c.h.b16 %v342
  %v1484 = vunpack.c.l.b16 %v343
  %v1485 = vunpack.c.h.b16 %v343
  %v1486 = vunpack.c.l.b16 %v344
  %v1487 = vunpack.c.h.b16 %v344
  %v1488 = vunpack.c.l.b16 %v345
  %v1489 = vunpack.c.h.b16 %v345
  %v1490 = vunpack.c.l.b16 %v346
  %v1491 = vunpack.c.h.b16 %v346
  %v1492 = vunpack.c.l.b16 %v347
  %v1493 = vunpack.c.h.b16 %v347
  %v1494 = vunpack.c.l.b16 %v348
  %v1495 = vunpack.c.h.b16 %v348
  %v1496 = vunpack.c.l.b16 %v349
  %v1497 = vunpack.c.h.b16 %v349
  %v1498 = vunpack.c.l.b16 %v350
  %v1499 = vunpack.c.h.b16 %v350
  %v1500 = vunpack.c.l.b16 %v351
  %v1501 = vunpack.c.h.b16 %v351
  %v1502 = vunpack.c.l.b16 %v352
  %v1503 = vunpack.c.h.b16 %v352
  %v1504 = vunpack.c.l.b16 %v353
  %v1505 = vunpack.c.h.b16 %v353
  %v1506 = vunpack.c.l.b16 %v354
  %v1507 = vunpack.c.h.b16 %v354
  %v1508 = vunpack.c.l.b16 %v355
  %v1509 = vunpack.c.h.b16 %v355
  %v1510 = vunpack.c.l.b16 %v356
  %v1511 = vunpack.c.h.b16 %v356
  %v1512 = vunpack.c.l.b16 %v357
  %v1513 = vunpack.c.h.b16 %v357
  %v1514 = vunpack.c.l.b16 %v358
  %v1515 = vunpack.c.h.b16 %v358
  %v1516 = vunpack.c.l.b16 %v359
  %v1517 = vunpack.c.h.b16 %v359
  %v1518 = vunpack.c.l.b16 %v360
  %v1519 = vunpack.c.h.b16 %v360
  %v1520 = vunpack.c.l.b16 %v361
  %v1521 = vunpack.c.h.b16 %v361
  %v1522 = vunpack.c.l.b16 %v362
  %v1523 = vunpack.c.h.b16 %v362
  %v1524 = vunpack.c.l.b16 %v363
  %v1525 = vunpack.c.h.b16 %v363
  %v1526 = vunpack.c.l.b16 %v364
  %v1527 = vunpack.c.h.b16 %v364
  %v1528 = vunpack.c.l.b16 %v365
  %v1529 = vunpack.c.h.b16 %v365
  %v1530 = vunpack.c.l.b16 %v366
  %v1531 = vunpack.c.h.b16 %v366
  %v1532 = vunpack.c.l.b16 %v367
  %v1533 = vunpack.c.h.b16 %v367
  %v1534 = vunpack.c.l.b16 %v368
  %v1535 = vunpack.c.h.b16 %v368
  %v1536 = vunpack.c.l.b16 %v369
  %v1537 = vunpack.c.h.b16 %v369
  %v1538 = vunpack.c.l.b16 %v370
  %v1539 = vunpack.c.h.b16 %v370
  %v1540 = vunpack.c.l.b16 %v371
  %v1541 = vunpack.c.h.b16 %v371
  %v1542 = vunpack.c.l.b16 %v372
  %v1543 = vunpack.c.h.b16 %v372
  %v1544 = vunpack.c.l.b16 %v373
  %v1545 = vunpack.c.h.b16 %v373
  %v1546 = vunpack.c.l.b16 %v374
  %v1547 = vunpack.c.h.b16 %v374
  %v1548 = vunpack.c.l.b16 %v375
  %v1549 = vunpack.c.h.b16 %v375
  %v1550 = vunpack.c.l.b16 %v376
  %v1551 = vunpack.c.h.b16 %v376
  %v1552 = vunpack.c.l.b16 %v377
  %v1553 = vunpack.c.h.b16 %v377
  %v1554 = vunpack.c.l.b16 %v378
  %v1555 = vunpack.c.h.b16 %v378
  %v1556 = vunpack.c.l.b16 %v379
  %v1557 = vunpack.c.h.b16 %v379
  %v1558 = vunpack.c.l.b16 %v380
  %v1559 = vunpack.c.h.b16 %v380
  %v1560 = vunpack.c.l.b16 %v381
  %v1561 = vunpack.c.h.b16 %v381
  %v1562 = vunpack.c.l.b16 %v382
  %v1563 = vunpack.c.h.b16 %v382
  %v1564 = vunpack.c.l.b16 %v383
  %v1565 = vunpack.c.h.b16 %v383
  %v1566 = vunpack.c.l.b16 %v384
  %v1567 = vunpack.c.h.b16 %v384
  %v1568 = vunpack.c.l.b16 %v385
  %v1569 = vunpack.c.h.b16 %v385
  %v1570 = vunpack.c.l.b16 %v386
  %v1571 = vunpack.c.h.b16 %v386
  %v1572 = vunpack.c.l.b16 %v387
  %v1573 = vunpack.c.h.b16 %v387
  %v1574 = vunpack.c.l.b16 %v388
  %v1575 = vunpack.c.h.b16 %v388
  %v1576 = vunpack.c.l.b16 %v389
  %v1577 = vunpack.c.h.b16 %v389
  %v1578 = vunpack.c.l.b16 %v390
  %v1579 = vunpack.c.h.b16 %v390
  %v1580 = vunpack.c.l.b16 %v391
  %v1581 = vunpack.c.h.b16 %v391
  %v1582 = vunpack.c.l.b16 %v392
  %v1583 = vunpack.c.h.b16 %v392
  %v1584 = vunpack.c.l.b16 %v393
  %v1585 = vunpack.c.h.b16 %v393
  %v1586 = vunpack.c.l.b16 %v394
  %v1587 = vunpack.c.h.b16 %v394
  %v1588 = vunpack.c.l.b16 %v395
  %v1589 = vunpack.c.h.b16 %v395
  %v1590 = vunpack.c.l.b16 %v396
  %v1591 = vunpack.c.h.b16 %v396
  %v1592 = vunpack.c.l.b16 %v397
  %v1593 = vunpack.c.h.b16 %v397
  %v1594 = vunpack.c.l.b16 %v398
  %v1595 = vunpack.c.h.b16 %v398
  %v1596 = vunpack.c.l.b16 %v399
  %v1597 = vunpack.c.h.b16 %v399
  %v1598 = vunpack.c.l.b16 %v400
  %v1599 = vunpack.c.h.b16 %v400
  %v1600 = vunpack.c.l.b16 %v401
  %v1601 = vunpack.c.h.b16 %v401
  %v1602 = vunpack.c.l.b16 %v402
  %v1603 = vunpack.c.h.b16 %v402
  %v1604 = vunpack.c.l.b16 %v403
  %v1605 = vunpack.c.h.b16 %v403
  %v1606 = vunpack.c.l.b16 %v404
  %v1607 = vunpack.c.h.b16 %v404
  %v1608 = vunpack.c.l.b16 %v405
  %v1609 = vunpack.c.h.b16 %v405
  %v1610 = vunpack.c.l.b16 %v406
  %v1611 = vunpack.c.h.b16 %v406
  %v1612 = vunpack.c.l.b16 %v407
  %v1613 = vunpack.c.h.b16 %v407
  %v1614 = vunpack.c.l.b16 %v408
  %v1615 = vunpack.c.h.b16 %v408
  %v1616 = vunpack.c.l.b16 %v409
  %v1617 = vunpack.c.h.b16 %v409
  %v1618 = vunpack.c.l.b16 %v410
  %v1619 = vunpack.c.h.b16 %v410
  %v1620 = vunpack.c.l.b16 %v411
  %v1621 = vunpack.c.h.b16 %v411
  %v1622 = vunpack.c.l.b16 %v412
  %v1623 = vunpack.c.h.b16 %v412
  %v1624 = vunpack.c.l.b16 %v413
  %v1625 = vunpack.c.h.b16 %v413
  %v1626 = vunpack.c.l.b16 %v414
  %v1627 = vunpack.c.h.b16 %v414
  %v1628 = vunpack.c.l.b16 %v415
  %v1629 = vunpack.c.h.b16 %v415
  %v1630 = vunpack.c.l.b16 %v416
  %v1631 = vunpack.c.h.b16 %v416
  %v1632 = vunpack.c.l.b16 %v417
  %v1633 = vunpack.c.h.b16 %v417
  %v1634 = vunpack.c.l.b16 %v418
  %v1635 = vunpack.c.h.b16 %v418
  %v1636 = vunpack.c.l.b16 %v419
  %v1637 = vunpack.c.h.b16 %v419
  %v1638 = vunpack.c.l.b16 %v420
  %v1639 = vunpack.c.h.b16 %v420
  %v1640 = vunpack.c.l.b16 %v421
  %v1641 = vunpack.c.h.b16 %v421
  %v1642 = vunpack.c.l.b16 %v422
  %v1643 = vunpack.c.h.b16 %v422
  %v1644 = vunpack.c.l.b16 %v423
  %v1645 = vunpack.c.h.b16 %v423
  %v1646 = vunpack.c.l.b16 %v424
  %v1647 = vunpack.c.h.b16 %v424
  %v1648 = vunpack.c.l.b16 %v425
  %v1649 = vunpack.c.h.b16 %v425
  %v1650 = vunpack.c.l.b16 %v426
  %v1651 = vunpack.c.h.b16 %v426
  %v1652 = vunpack.c.l.b16 %v427
  %v1653 = vunpack.c.h.b16 %v427
  %v1654 = vunpack.c.l.b16 %v428
  %v1655 = vunpack.c.h.b16 %v428
  %v1656 = vunpack.c.l.b16 %v429
  %v1657 = vunpack.c.h.b16 %v429
  %v1658 = vunpack.c.l.b16 %v430
  %v1659 = vunpack.c.h.b16 %v430
  %v1660 = vunpack.c.l.b16 %v431
  %v1661 = vunpack.c.h.b16 %v431
  %v1662 = vunpack.c.l.b16 %v432
  %v1663 = vunpack.c.h.b16 %v432
  %v1664 = vunpack.c.l.b16 %v433
  %v1665 = vunpack.c.h.b16 %v433
  %v1666 = vunpack.c.l.b16 %v434
  %v1667 = vunpack.c.h.b16 %v434
  %v1668 = vunpack.c.l.b16 %v435
  %v1669 = vunpack.c.h.b16 %v435
  %v1670 = vunpack.c.l.b16 %v436
  %v1671 = vunpack.c.h.b16 %v436
  %v1672 = vunpack.c.l.b16 %v437
  %v1673 = vunpack.c.h.b16 %v437
  %v1674 = vunpack.c.l.b16 %v438
  %v1675 = vunpack.c.h.b16 %v438
  %v1676 = vunpack.c.l.b16 %v439
  %v1677 = vunpack.c.h.b16 %v439
  %v1678 = vunpack.c.l.b16 %v440
  %v1679 = vunpack.c.h.b16 %v440
  %v1680 = vunpack.c.l.b16 %v441
  %v1681 = vunpack.c.h.b16 %v441
  %v1682 = vunpack.c.l.b16 %v442
  %v1683 = vunpack.c.h.b16 %v442
  %v1684 = vunpack.c.l.b16 %v443
  %v1685 = vunpack.c.h.b16 %v443
  %v1686 = vunpack.c.l.b16 %v444
  %v1687 = vunpack.c.h.b16 %v444
  %v1688 = vunpack.c.l.b16 %v445
  %v1689 = vunpack.c.h.b16 %v445
  %v1690 = vunpack.c.l.b16 %v446
  %v1691 = vunpack.c.h.b16 %v446
  %v1692 = vunpack.c.l.b16 %v447
  %v1693 = vunpack.c.h.b16 %v447
  %v1694 = vunpack.c.l.b16 %v448
  %v1695 = vunpack.c.h.b16 %v448
  %v1696 = vunpack.c.l.b16 %v449
  %v1697 = vunpack.c.h.b16 %v449
  %v1698 = vunpack.c.l.b16 %v450
  %v1699 = vunpack.c.h.b16 %v450
  %v1700 = vunpack.c.l.b16 %v451
  %v1701 = vunpack.c.h.b16 %v451
  %v1702 = vunpack.c.l.b16 %v452
  %v1703 = vunpack.c.h.b16 %v452
  %v1704 = vunpack.c.l.b16 %v453
  %v1705 = vunpack.c.h.b16 %v453
  %v1706 = vunpack.c.l.b16 %v454
  %v1707 = vunpack.c.h.b16 %v454
  %v1708 = vunpack.c.l.b16 %v455
  %v1709 = vunpack.c.h.b16 %v455
  %v1710 = vunpack.c.l.b16 %v456
  %v1711 = vunpack.c.h.b16 %v456
  %v1712 = vunpack.c.l.b16 %v457
  %v1713 = vunpack.c.h.b16 %v457
  %v1714 = vunpack.c.l.b16 %v458
  %v1715 = vunpack.c.h.b16 %v458
  %v1716 = vunpack.c.l.b16 %v459
  %v1717 = vunpack.c.h.b16 %v459
  %v1718 = vunpack.c.l.b16 %v460
  %v1719 = vunpack.c.h.b16 %v460
  %v1720 = vunpack.c.l.b16 %v461
  %v1721 = vunpack.c.h.b16 %v461
  %v1722 = vunpack.c.l.b16 %v462
  %v1723 = vunpack.c.h.b16 %v462
  %v1724 = vunpack.c.l.b16 %v463
  %v1725 = vunpack.c.h.b16 %v463
  %v1726 = vunpack.c.l.b16 %v464
  %v1727 = vunpack.c.h.b16 %v464
  %v1728 = vunpack.c.l.b16 %v465
  %v1729 = vunpack.c.h.b16 %v465
  %v1730 = vunpack.c.l.b16 %v466
  %v1731 = vunpack.c.h.b16 %v466
  %v1732 = vunpack.c.l.b16 %v467
  %v1733 = vunpack.c.h.b16 %v467
  %v1734 = vunpack.c.l.b16 %v468
  %v1735 = vunpack.c.h.b16 %v468
  %v1736 = vunpack.c.l.b16 %v469
  %v1737 = vunpack.c.h.b16 %v469
  %v1738 = vunpack.c.l.b16 %v470
  %v1739 = vunpack.c.h.b16 %v470
  %v1740 = vunpack.c.l.b16 %v471
  %v1741 = vunpack.c.h.b16 %v471
  %v1742 = vunpack.c.l.b16 %v472
  %v1743 = vunpack.c.h.b16 %v472
  %v1744 = vunpack.c.l.b16 %v473
  %v1745 = vunpack.c.h.b16 %v473
  %v1746 = vunpack.c.l.b16 %v474
  %v1747 = vunpack.c.h.b16 %v474
  %v1748 = vunpack.c.l.b16 %v475
  %v1749 = vunpack.c.h.b16 %v475
  %v1750 = vunpack.c.l.b16 %v476
  %v1751 = vunpack.c.h.b16 %v476
  %v1752 = vunpack.c.l.b16 %v477
  %v1753 = vunpack.c.h.b16 %v477
  %v1754 = vunpack.c.l.b16 %v478
  %v1755 = vunpack.c.h.b16 %v478
  %v1756 = vunpack.c.l.b16 %v479
  %v1757 = vunpack.c.h.b16 %v479
  %v1758 = vunpack.c.l.b16 %v480
  %v1759 = vunpack.c.h.b16 %v480
  %v1760 = vunpack.c.l.b16 %v481
  %v1761 = vunpack.c.h.b16 %v481
  %v1762 = vunpack.c.l.b16 %v482
  %v1763 = vunpack.c.h.b16 %v482
  %v1764 = vunpack.c.l.b16 %v483
  %v1765 = vunpack.c.h.b16 %v483
  %v1766 = vunpack.c.l.b16 %v484
  %v1767 = vunpack.c.h.b16 %v484
  %v1768 = vunpack.c.l.b16 %v485
  %v1769 = vunpack.c.h.b16 %v485
  %v1770 = vunpack.c.l.b16 %v486
  %v1771 = vunpack.c.h.b16 %v486
  %v1772 = vunpack.c.l.b16 %v487
  %v1773 = vunpack.c.h.b16 %v487
  %v1774 = vunpack.c.l.b16 %v488
  %v1775 = vunpack.c.h.b16 %v488
  %v1776 = vunpack.c.l.b16 %v489
  %v1777 = vunpack.c.h.b16 %v489
  %v1778 = vunpack.c.l.b16 %v490
  %v1779 = vunpack.c.h.b16 %v490
  %v1780 = vunpack.c.l.b16 %v491
  %v1781 = vunpack.c.h.b16 %v491
  %v1782 = vunpack.c.l.b16 %v492
  %v1783 = vunpack.c.h.b16 %v492
  %v1784 = vunpack.c.l.b16 %v493
  %v1785 = vunpack.c.h.b16 %v493
  %v1786 = vunpack.c.l.b16 %v494
  %v1787 = vunpack.c.h.b16 %v494
  %v1788 = vunpack.c.l.b16 %v495
  %v1789 = vunpack.c.h.b16 %v495
  %v1790 = vunpack.c.l.b16 %v496
  %v1791 = vunpack.c.h.b16 %v496
  %v1792 = vunpack.c.l.b16 %v497
  %v1793 = vunpack.c.h.b16 %v497
  %v1794 = vunpack.c.l.b16 %v498
  %v1795 = vunpack.c.h.b16 %v498
  %v1796 = vunpack.c.l.b16 %v499
  %v1797 = vunpack.c.h.b16 %v499
  %v1798 = vunpack.c.l.b16 %v500
  %v1799 = vunpack.c.h.b16 %v500
  %v1800 = vunpack.c.l.b16 %v501
  %v1801 = vunpack.c.h.b16 %v501
  %v1802 = vunpack.c.l.b16 %v502
  %v1803 = vunpack.c.h.b16 %v502
  %v1804 = vunpack.c.l.b16 %v503
  %v1805 = vunpack.c.h.b16 %v503
  %v1806 = vunpack.c.l.b16 %v504
  %v1807 = vunpack.c.h.b16 %v504
  %v1808 = vunpack.c.l.b16 %v505
  %v1809 = vunpack.c.h.b16 %v505
  %v1810 = vunpack.c.l.b16 %v506
  %v1811 = vunpack.c.h.b16 %v506
  %v1812 = vunpack.c.l.b16 %v507
  %v1813 = vunpack.c.h.b16 %v507
  %v1814 = vunpack.c.l.b16 %v508
  %v1815 = vunpack.c.h.b16 %v508
  %v1816 = vunpack.c.l.b16 %v509
  %v1817 = vunpack.c.h.b16 %v509
  %v1818 = vunpack.c.l.b16 %v510
  %v1819 = vunpack.c.h.b16 %v510
  %v1820 = vunpack.c.l.b16 %v511
  %v1821 = vunpack.c.h.b16 %v511
  %v1822 = vunpack.c.l.b16 %v512
  %v1823 = vunpack.c.h.b16 %v512
  %v1824 = vunpack.c.l.b16 %v513
  %v1825 = vunpack.c.h.b16 %v513
  %v1826 = vunpack.c.l.b16 %v514
  %v1827 = vunpack.c.h.b16 %v514
  %v1828 = vunpack.c.l.b16 %v515
  %v1829 = vunpack.c.h.b16 %v515
  %v1830 = vunpack.c.l.b16 %v516
  %v1831 = vunpack.c.h.b16 %v516
  %v1832 = vunpack.c.l.b16 %v517
  %v1833 = vunpack.c.h.b16 %v517
  %v1834 = vunpack.c.l.b16 %v518
  %v1835 = vunpack.c.h.b16 %v518
  %v1836 = vunpack.c.l.b16 %v519
  %v1837 = vunpack.c.h.b16 %v519
  %v1838 = vunpack.c.l.b16 %v520
  %v1839 = vunpack.c.h.b16 %v520
  %v1840 = vunpack.c.l.b16 %v521
  %v1841 = vunpack.c.h.b16 %v521
  %v1842 = vunpack.c.l.b16 %v522
  %v1843 = vunpack.c.h.b16 %v522
  %v1844 = vunpack.c.l.b16 %v523
  %v1845 = vunpack.c.h.b16 %v523
  %v1846 = vunpack.c.l.b16 %v524
  %v1847 = vunpack.c.h.b16 %v524
  %v1848 = vunpack.c.l.b16 %v525
  %v1849 = vunpack.c.h.b16 %v525
  %v1850 = vunpack.c.l.b16 %v526
  %v1851 = vunpack.c.h.b16 %v526
  %v1852 = vunpack.c.l.b16 %v527
  %v1853 = vunpack.c.h.b16 %v527
  %v1854 = vunpack.c.l.b16 %v528
  %v1855 = vunpack.c.h.b16 %v528
  %v1856 = vunpack.c.l.b16 %v529
  %v1857 = vunpack.c.h.b16 %v529
  %v1858 = vunpack.c.l.b16 %v530
  %v1859 = vunpack.c.h.b16 %v530
  %v1860 = vunpack.c.l.b16 %v531
  %v1861 = vunpack.c.h.b16 %v531
  %v1862 = vunpack.c.l.b16 %v532
  %v1863 = vunpack.c.h.b16 %v532
  %v1864 = vunpack.c.l.b16 %v533
  %v1865 = vunpack.c.h.b16 %v533
  %v1866 = vunpack.c.l.b16 %v534
  %v1867 = vunpack.c.h.b16 %v534
  %v1868 = vunpack.c.l.b16 %v535
  %v1869 = vunpack.c.h.b16 %v535
  %v1870 = vunpack.c.l.b16 %v536
  %v1871 = vunpack.c.h.b16 %v536
  %v1872 = vunpack.c.l.b16 %v537
  %v1873 = vunpack.c.h.b16 %v537
  %v1874 = vunpack.c.l.b16 %v538
  %v1875 = vunpack.c.h.b16 %v538
  %v1876 = vunpack.c.l.b16 %v539
  %v1877 = vunpack.c.h.b16 %v539
  %v1878 = vunpack.c.l.b16 %v540
  %v1879 = vunpack.c.h.b16 %v540
  %v1880 = vunpack.c.l.b16 %v541
  %v1881 = vunpack.c.h.b16 %v541
  %v1882 = vunpack.c.l.b16 %v542
  %v1883 = vunpack.c.h.b16 %v542
  %v1884 = vunpack.c.l.b16 %v543
  %v1885 = vunpack.c.h.b16 %v543
  %v1886 = vunpack.c.l.b16 %v544
  %v1887 = vunpack.c.h.b16 %v544
  %v1888 = vunpack.c.l.b16 %v545
  %v1889 = vunpack.c.h.b16 %v545
  %v1890 = vunpack.c.l.b16 %v546
  %v1891 = vunpack.c.h.b16 %v546
  %v1892 = vunpack.c.l.b16 %v547
  %v1893 = vunpack.c.h.b16 %v547
  %v1894 = vunpack.c.l.b16 %v548
  %v1895 = vunpack.c.h.b16 %v548
  %v1896 = vunpack.c.l.b16 %v549
  %v1897 = vunpack.c.h.b16 %v549
  %v1898 = vunpack.c.l.b16 %v550
  %v1899 = vunpack.c.h.b16 %v550
  %v1900 = vunpack.c.l.b16 %v551
  %v1901 = vunpack.c.h.b16 %v551
  %v1902 = vunpack.c.l.b16 %v552
  %v1903 = vunpack.c.h.b16 %v552
  %v1904 = vunpack.c.l.b16 %v553
  %v1905 = vunpack.c.h.b16 %v553
  %v1906 = vunpack.c.l.b16 %v554
  %v1907 = vunpack.c.h.b16 %v554
  %v1908 = vunpack.c.l.b16 %v555
  %v1909 = vunpack.c.h.b16 %v555
  %v1910 = vunpack.c.l.b16 %v556
  %v1911 = vunpack.c.h.b16 %v556
  %v1912 = vunpack.c.l.b16 %v557
  %v1913 = vunpack.c.h.b16 %v557
  %v1914 = vunpack.c.l.b16 %v558
  %v1915 = vunpack.c.h.b16 %v558
  %v1916 = vunpack.c.l.b16 %v559
  %v1917 = vunpack.c.h.b16 %v559
  %v1918 = vunpack.c.l.b16 %v560
  %v1919 = vunpack.c.h.b16 %v560
  %v1920 = vunpack.c.l.b16 %v561
  %v1921 = vunpack.c.h.b16 %v561
  %v1922 = vunpack.c.l.b16 %v562
  %v1923 = vunpack.c.h.b16 %v562
  %v1924 = vunpack.c.l.b16 %v563
  %v1925 = vunpack.c.h.b16 %v563
  %v1926 = vunpack.c.l.b16 %v564
  %v1927 = vunpack.c.h.b16 %v564
  %v1928 = vunpack.c.l.b16 %v565
  %v1929 = vunpack.c.h.b16 %v565
  %v1930 = vunpack.c.l.b16 %v566
  %v1931 = vunpack.c.h.b16 %v566
  %v1932 = vunpack.c.l.b16 %v567
  %v1933 = vunpack.c.h.b16 %v567
  %v1934 = vunpack.c.l.b16 %v568
  %v1935 = vunpack.c.h.b16 %v568
  %v1936 = vunpack.c.l.b16 %v569
  %v1937 = vunpack.c.h.b16 %v569
  %v1938 = vunpack.c.l.b16 %v570
  %v1939 = vunpack.c.h.b16 %v570
  %v1940 = vunpack.c.l.b16 %v571
  %v1941 = vunpack.c.h.b16 %v571
  %v1942 = vunpack.c.l.b16 %v572
  %v1943 = vunpack.c.h.b16 %v572
  %v1944 = vunpack.c.l.b16 %v573
  %v1945 = vunpack.c.h.b16 %v573
  %v1946 = vunpack.c.l.b16 %v574
  %v1947 = vunpack.c.h.b16 %v574
  %v1948 = vunpack.c.l.b16 %v575
  %v1949 = vunpack.c.h.b16 %v575
  %v1950 = vunpack.c.l.b16 %v576
  %v1951 = vunpack.c.h.b16 %v576
  %v1952 = vunpack.c.l.b16 %v577
  %v1953 = vunpack.c.h.b16 %v577
  %v1954 = vunpack.c.l.b16 %v578
  %v1955 = vunpack.c.h.b16 %v578
  %v1956 = vunpack.c.l.b16 %v579
  %v1957 = vunpack.c.h.b16 %v579
  %v1958 = vunpack.c.l.b16 %v580
  %v1959 = vunpack.c.h.b16 %v580
  %v1960 = vunpack.c.l.b16 %v581
  %v1961 = vunpack.c.h.b16 %v581
  %v1962 = vunpack.c.l.b16 %v582
  %v1963 = vunpack.c.h.b16 %v582
  %v1964 = vunpack.c.l.b16 %v583
  %v1965 = vunpack.c.h.b16 %v583
  %v1966 = vunpack.c.l.b16 %v584
  %v1967 = vunpack.c.h.b16 %v584
  %v1968 = vunpack.c.l.b16 %v585
  %v1969 = vunpack.c.h.b16 %v585
  %v1970 = vunpack.c.l.b16 %v586
  %v1971 = vunpack.c.h.b16 %v586
  %v1972 = vunpack.c.l.b16 %v587
  %v1973 = vunpack.c.h.b16 %v587
  %v1974 = vunpack.c.l.b16 %v588
  %v1975 = vunpack.c.h.b16 %v588
  %v1976 = vunpack.c.l.b16 %v589
  %v1977 = vunpack.c.h.b16 %v589
  %v1978 = vunpack.c.l.b16 %v590
  %v1979 = vunpack.c.h.b16 %v590
  %v1980 = vunpack.c.l.b16 %v591
  %v1981 = vunpack.c.h.b16 %v591
  %v1982 = vunpack.c.l.b16 %v592
  %v1983 = vunpack.c.h.b16 %v592
  %v1984 = vunpack.c.l.b16 %v593
  %v1985 = vunpack.c.h.b16 %v593
  %v1986 = vunpack.c.l.b16 %v594
  %v1987 = vunpack.c.h.b16 %v594
  %v1988 = vunpack.c.l.b16 %v595
  %v1989 = vunpack.c.h.b16 %v595
  %v1990 = vunpack.c.l.b16 %v596
  %v1991 = vunpack.c.h.b16 %v596
  %v1992 = vunpack.c.l.b16 %v597
  %v1993 = vunpack.c.h.b16 %v597
  %v1994 = vunpack.c.l.b16 %v598
  %v1995 = vunpack.c.h.b16 %v598
  %v1996 = vunpack.c.l.b16 %v599
  %v1997 = vunpack.c.h.b16 %v599
  %v1998 = vunpack.c.l.b16 %v600
  %v1999 = vunpack.c.h.b16 %v600
  %v2000 = vunpack.c.l.b16 %v601
  %v2001 = vunpack.c.h.b16 %v601
  %v2002 = vunpack.c.l.b16 %v602
  %v2003 = vunpack.c.h.b16 %v602
  %v2004 = vunpack.c.l.b16 %v603
  %v2005 = vunpack.c.h.b16 %v603
  %v2006 = vunpack.c.l.b16 %v604
  %v2007 = vunpack.c.h.b16 %v604
  %v2008 = vunpack.c.l.b16 %v605
  %v2009 = vunpack.c.h.b16 %v605
  %v2010 = vunpack.c.l.b16 %v606
  %v2011 = vunpack.c.h.b16 %v606
  %v2012 = vunpack.c.l.b16 %v607
  %v2013 = vunpack.c.h.b16 %v607
  %v2014 = vunpack.c.l.b16 %v608
  %v2015 = vunpack.c.h.b16 %v608
  %v2016 = vunpack.c.l.b16 %v609
  %v2017 = vunpack.c.h.b16 %v609
  %v2018 = vunpack.c.l.b16 %v610
  %v2019 = vunpack.c.h.b16 %v610
  %v2020 = vunpack.c.l.b16 %v611
  %v2021 = vunpack.c.h.b16 %v611
  %v2022 = vunpack.c.l.b16 %v612
  %v2023 = vunpack.c.h.b16 %v612
  %v2024 = vunpack.c.l.b16 %v613
  %v2025 = vunpack.c.h.b16 %v613
  %v2026 = vunpack.c.l.b16 %v614
  %v2027 = vunpack.c.h.b16 %v614
  %v2028 = vunpack.c.l.b16 %v615
  %v2029 = vunpack.c.h.b16 %v615
  %v2030 = vunpack.c.l.b16 %v616
  %v2031 = vunpack.c.h.b16 %v616
  %v2032 = vunpack.c.l.b16 %v617
  %v2033 = vunpack.c.h.b16 %v617
  %v2034 = vunpack.c.l.b16 %v618
  %v2035 = vunpack.c.h.b16 %v618
  %v2036 = vunpack.c.l.b16 %v619
  %v2037 = vunpack.c.h.b16 %v619
  %v2038 = vunpack.c.l.b16 %v620
  %v2039 = vunpack.c.h.b16 %v620
  %v2040 = vunpack.c.l.b16 %v621
  %v2041 = vunpack.c.h.b16 %v621
  %v2042 = vunpack.c.l.b16 %v622
  %v2043 = vunpack.c.h.b16 %v622
  %v2044 = vunpack.c.l.b16 %v623
  %v2045 = vunpack.c.h.b16 %v623
  %v2046 = vunpack.c.l.b16 %v624
  %v2047 = vunpack.c.h.b16 %v624
  %v2048 = vunpack.c.l.b16 %v625
  %v2049 = vunpack.c.h.b16 %v625
  %v2050 = vunpack.c.l.b16 %v626
  %v2051 = vunpack.c.h.b16 %v626
  %v2052 = vunpack.c.l.b16 %v627
  %v2053 = vunpack.c.h.b16 %v627
  %v2054 = vunpack.c.l.b16 %v628
  %v2055 = vunpack.c.h.b16 %v628
  %v2056 = vunpack.c.l.b16 %v629
  %v2057 = vunpack.c.h.b16 %v629
  %v2058 = vunpack.c.l.b16 %v630
  %v2059 = vunpack.c.h.b16 %v630
  %v2060 = vunpack.c.l.b16 %v631
  %v2061 = vunpack.c.h.b16 %v631
  %v2062 = vunpack.c.l.b16 %v632
  %v2063 = vunpack.c.h.b16 %v632
  %v2064 = vunpack.c.l.b16 %v633
  %v2065 = vunpack.c.h.b16 %v633
  %v2066 = vunpack.c.l.b16 %v634
  %v2067 = vunpack.c.h.b16 %v634
  %v2068 = vunpack.c.l.b16 %v635
  %v2069 = vunpack.c.h.b16 %v635
  %v2070 = vunpack.c.l.b16 %v636
  %v2071 = vunpack.c.h.b16 %v636
  %v2072 = vunpack.c.l.b16 %v637
  %v2073 = vunpack.c.h.b16 %v637
  %v2074 = vunpack.c.l.b16 %v638
  %v2075 = vunpack.c.h.b16 %v638
  %v2076 = vunpack.c.l.b16 %v639
  %v2077 = vunpack.c.h.b16 %v639
  %v2078 = vunpack.c.l.b16 %v640
  %v2079 = vunpack.c.h.b16 %v640
  %v2080 = vunpack.c.l.b16 %v641
  %v2081 = vunpack.c.h.b16 %v641
  %v2082 = vunpack.c.l.b16 %v642
  %v2083 = vunpack.c.h.b16 %v642
  %v2084 = vunpack.c.l.b16 %v643
  %v2085 = vunpack.c.h.b16 %v643
  %v2086 = vunpack.c.l.b16 %v644
  %v2087 = vunpack.c.h.b16 %v644
  %v2088 = vunpack.c.l.b16 %v645
  %v2089 = vunpack.c.h.b16 %v645
  %v2090 = vunpack.c.l.b16 %v646
  %v2091 = vunpack.c.h.b16 %v646
  %v2092 = vunpack.c.l.b16 %v647
  %v2093 = vunpack.c.h.b16 %v647
  %v2094 = vunpack.c.l.b16 %v648
  %v2095 = vunpack.c.h.b16 %v648
  %v2096 = vunpack.c.l.b16 %v649
  %v2097 = vunpack.c.h.b16 %v649
  %v2098 = vunpack.c.l.b16 %v650
  %v2099 = vunpack.c.h.b16 %v650
  %v2100 = vunpack.c.l.b16 %v651
  %v2101 = vunpack.c.h.b16 %v651
  %v2102 = vunpack.c.l.b16 %v652
  %v2103 = vunpack.c.h.b16 %v652
  %v2104 = vunpack.c.l.b16 %v653
  %v2105 = vunpack.c.h.b16 %v653
  %v2106 = vunpack.c.l.b16 %v654
  %v2107 = vunpack.c.h.b16 %v654
  %v2108 = vunpack.c.l.b16 %v655
  %v2109 = vunpack.c.h.b16 %v655
  %v2110 = vunpack.c.l.b16 %v656
  %v2111 = vunpack.c.h.b16 %v656
  %v2112 = vunpack.c.l.b16 %v657
  %v2113 = vunpack.c.h.b16 %v657
  %v2114 = vunpack.c.l.b16 %v658
  %v2115 = vunpack.c.h.b16 %v658
  %v2116 = vunpack.c.l.b16 %v659
  %v2117 = vunpack.c.h.b16 %v659
  %v2118 = vunpack.c.l.b16 %v660
  %v2119 = vunpack.c.h.b16 %v660
  %v2120 = vunpack.c.l.b16 %v661
  %v2121 = vunpack.c.h.b16 %v661
  %v2122 = vunpack.c.l.b16 %v662
  %v2123 = vunpack.c.h.b16 %v662
  %v2124 = vunpack.c.l.b16 %v663
  %v2125 = vunpack.c.h.b16 %v663
  %v2126 = vunpack.c.l.b16 %v664
  %v2127 = vunpack.c.h.b16 %v664
  %v2128 = vunpack.c.l.b16 %v665
  %v2129 = vunpack.c.h.b16 %v665
  %v2130 = vunpack.c.l.b16 %v666
  %v2131 = vunpack.c.h.b16 %v666
  %v2132 = vunpack.c.l.b16 %v667
  %v2133 = vunpack.c.h.b16 %v667
  %v2134 = vunpack.c.l.b16 %v668
  %v2135 = vunpack.c.h.b16 %v668
  %v2136 = vunpack.c.l.b16 %v669
  %v2137 = vunpack.c.h.b16 %v669
  %v2138 = vunpack.c.l.b16 %v670
  %v2139 = vunpack.c.h.b16 %v670
  %v2140 = vunpack.c.l.b16 %v671
  %v2141 = vunpack.c.h.b16 %v671
  %v2142 = vunpack.c.l.b16 %v672
  %v2143 = vunpack.c.h.b16 %v672
  %v2144 = vunpack.c.l.b16 %v673
  %v2145 = vunpack.c.h.b16 %v673
  %v2146 = vunpack.c.l.b16 %v674
  %v2147 = vunpack.c.h.b16 %v674
  %v2148 = vunpack.c.l.b16 %v675
  %v2149 = vunpack.c.h.b16 %v675
  %v2150 = vunpack.c.l.b16 %v676
  %v2151 = vunpack.c.h.b16 %v676
  %v2152 = vunpack.c.l.b16 %v677
  %v2153 = vunpack.c.h.b16 %v677
  %v2154 = vunpack.c.l.b16 %v678
  %v2155 = vunpack.c.h.b16 %v678
  %v2156 = vunpack.c.l.b16 %v679
  %v2157 = vunpack.c.h.b16 %v679
  %v2158 = vunpack.c.l.b16 %v680
  %v2159 = vunpack.c.h.b16 %v680
  %v2160 = vunpack.c.l.b16 %v681
  %v2161 = vunpack.c.h.b16 %v681
  %v2162 = vunpack.c.l.b16 %v682
  %v2163 = vunpack.c.h.b16 %v682
  %v2164 = vunpack.c.l.b16 %v683
  %v2165 = vunpack.c.h.b16 %v683
  %v2166 = vunpack.c.l.b16 %v684
  %v2167 = vunpack.c.h.b16 %v684
  %v2168 = vunpack.c.l.b16 %v685
  %v2169 = vunpack.c.h.b16 %v685
  %v2170 = vunpack.c.l.b16 %v686
  %v2171 = vunpack.c.h.b16 %v686
  %v2172 = vunpack.c.l.b16 %v687
  %v2173 = vunpack.c.h.b16 %v687
  %v2174 = vunpack.c.l.b16 %v688
  %v2175 = vunpack.c.h.b16 %v688
  %v2176 = vunpack.c.l.b16 %v689
  %v2177 = vunpack.c.h.b16 %v689
  %v2178 = vunpack.c.l.b16 %v690
  %v2179 = vunpack.c.h.b16 %v690
  %v2180 = vunpack.c.l.b16 %v691
  %v2181 = vunpack.c.h.b16 %v691
  %v2182 = vunpack.c.l.b16 %v692
  %v2183 = vunpack.c.h.b16 %v692
  %v2184 = vunpack.c.l.b16 %v693
  %v2185 = vunpack.c.h.b16 %v693
  %v2186 = vunpack.c.l.b16 %v694
  %v2187 = vunpack.c.h.b16 %v694
  %v2188 = vunpack.c.l.b16 %v695
  %v2189 = vunpack.c.h.b16 %v695
  %v2190 = vunpack.c.l.b16 %v696
  %v2191 = vunpack.c.h.b16 %v696
  %v2192 = vunpack.c.l.b16 %v697
  %v2193 = vunpack.c.h.b16 %v697
  %v2194 = vunpack.c.l.b16 %v698
  %v2195 = vunpack.c.h.b16 %v698
  %v2196 = vunpack.c.l.b16 %v699
  %v2197 = vunpack.c.h.b16 %v699
  %v2198 = vunpack.c.l.b16 %v700
  %v2199 = vunpack.c.h.b16 %v700
  %v2200 = vunpack.c.l.b16 %v701
  %v2201 = vunpack.c.h.b16 %v701
  %v2202 = vunpack.c.l.b16 %v702
  %v2203 = vunpack.c.h.b16 %v702
  %v2204 = vunpack.c.l.b16 %v703
  %v2205 = vunpack.c.h.b16 %v703
  %v2206 = vunpack.c.l.b16 %v704
  %v2207 = vunpack.c.h.b16 %v704
  %v2208 = vunpack.c.l.b16 %v705
  %v2209 = vunpack.c.h.b16 %v705
  %v2210 = vunpack.c.l.b16 %v706
  %v2211 = vunpack.c.h.b16 %v706
  %v2212 = vunpack.c.l.b16 %v707
  %v2213 = vunpack.c.h.b16 %v707
  %v2214 = vunpack.c.l.b16 %v708
  %v2215 = vunpack.c.h.b16 %v708
  %v2216 = vunpack.c.l.b16 %v709
  %v2217 = vunpack.c.h.b16 %v709
  %v2218 = vunpack.c.l.b16 %v710
  %v2219 = vunpack.c.h.b16 %v710
  %v2220 = vunpack.c.l.b16 %v711
  %v2221 = vunpack.c.h.b16 %v711
  %v2222 = vunpack.c.l.b16 %v712
  %v2223 = vunpack.c.h.b16 %v712
  %v2224 = vunpack.c.l.b16 %v713
  %v2225 = vunpack.c.h.b16 %v713
  %v2226 = vunpack.c.l.b16 %v714
  %v2227 = vunpack.c.h.b16 %v714
  %v2228 = vunpack.c.l.b16 %v715
  %v2229 = vunpack.c.h.b16 %v715
  %v2230 = vunpack.c.l.b16 %v716
  %v2231 = vunpack.c.h.b16 %v716
  %v2232 = vunpack.c.l.b16 %v717
  %v2233 = vunpack.c.h.b16 %v717
  %v2234 = vunpack.c.l.b16 %v718
  %v2235 = vunpack.c.h.b16 %v718
  %v2236 = vunpack.c.l.b16 %v719
  %v2237 = vunpack.c.h.b16 %v719
  %v2238 = vunpack.c.l.b16 %v720
  %v2239 = vunpack.c.h.b16 %v720
  %v2240 = vunpack.c.l.b16 %v721
  %v2241 = vunpack.c.h.b16 %v721
  %v2242 = vunpack.c.l.b16 %v722
  %v2243 = vunpack.c.h.b16 %v722
  %v2244 = vunpack.c.l.b16 %v723
  %v2245 = vunpack.c.h.b16 %v723
  %v2246 = vunpack.c.l.b16 %v724
  %v2247 = vunpack.c.h.b16 %v724
  %v2248 = vunpack.c.l.b16 %v725
  %v2249 = vunpack.c.h.b16 %v725
  %v2250 = vunpack.c.l.b16 %v726
  %v2251 = vunpack.c.h.b16 %v726
  %v2252 = vunpack.c.l.b16 %v727
  %v2253 = vunpack.c.h.b16 %v727
  %v2254 = vunpack.c.l.b16 %v728
  %v2255 = vunpack.c.h.b16 %v728
  %v2256 = vunpack.c.l.b16 %v729
  %v2257 = vunpack.c.h.b16 %v729
  %v2258 = vunpack.c.l.b16 %v730
  %v2259 = vunpack.c.h.b16 %v730
  %v2260 = vunpack.c.l.b16 %v731
  %v2261 = vunpack.c.h.b16 %v731
  %v2262 = vunpack.c.l.b16 %v732
  %v2263 = vunpack.c.h.b16 %v732
  %v2264 = vunpack.c.l.b16 %v733
  %v2265 = vunpack.c.h.b16 %v733
  %v2266 = vunpack.c.l.b16 %v734
  %v2267 = vunpack.c.h.b16 %v734
  %v2268 = vunpack.c.l.b16 %v735
  %v2269 = vunpack.c.h.b16 %v735
  %v2270 = vunpack.c.l.b16 %v736
  %v2271 = vunpack.c.h.b16 %v736
  %v2272 = vunpack.c.l.b16 %v737
  %v2273 = vunpack.c.h.b16 %v737
  %v2274 = vpack.c.b16 %v1254, %v1250
  %v2275 = vpack.c.b16 %v1255, %v1251
  %v2276 = vpack.c.b16 %v1256, %v1252
  %v2277 = vpack.c.b16 %v1257, %v1253
  %v2278 = vpack.c.b16 %v1262, %v1258
  %v2279 = vpack.c.b16 %v1263, %v1259
  %v2280 = vpack.c.b16 %v1264, %v1260
  %v2281 = vpack.c.b16 %v1265, %v1261
  %v2282 = vpack.c.b16 %v1270, %v1266
  %v2283 = vpack.c.b16 %v1271, %v1267
  %v2284 = vpack.c.b16 %v1272, %v1268
  %v2285 = vpack.c.b16 %v1273, %v1269
  %v2286 = vpack.c.b16 %v1278, %v1274
  %v2287 = vpack.c.b16 %v1279, %v1275
  %v2288 = vpack.c.b16 %v1280, %v1276
  %v2289 = vpack.c.b16 %v1281, %v1277
  %v2290 = vpack.c.b16 %v1286, %v1282
  %v2291 = vpack.c.b16 %v1287, %v1283
  %v2292 = vpack.c.b16 %v1288, %v1284
  %v2293 = vpack.c.b16 %v1289, %v1285
  %v2294 = vpack.c.b16 %v1294, %v1290
  %v2295 = vpack.c.b16 %v1295, %v1291
  %v2296 = vpack.c.b16 %v1296, %v1292
  %v2297 = vpack.c.b16 %v1297, %v1293
  %v2298 = vpack.c.b16 %v1302, %v1298
  %v2299 = vpack.c.b16 %v1303, %v1299
  %v2300 = vpack.c.b16 %v1304, %v1300
  %v2301 = vpack.c.b16 %v1305, %v1301
  %v2302 = vpack.c.b16 %v1310, %v1306
  %v2303 = vpack.c.b16 %v1311, %v1307
  %v2304 = vpack.c.b16 %v1312, %v1308
  %v2305 = vpack.c.b16 %v1313, %v1309
  %v2306 = vpack.c.b16 %v1318, %v1314
  %v2307 = vpack.c.b16 %v1319, %v1315
  %v2308 = vpack.c.b16 %v1320, %v1316
  %v2309 = vpack.c.b16 %v1321, %v1317
  %v2310 = vpack.c.b16 %v1326, %v1322
  %v2311 = vpack.c.b16 %v1327, %v1323
  %v2312 = vpack.c.b16 %v1328, %v1324
  %v2313 = vpack.c.b16 %v1329, %v1325
  %v2314 = vpack.c.b16 %v1334, %v1330
  %v2315 = vpack.c.b16 %v1335, %v1331
  %v2316 = vpack.c.b16 %v1336, %v1332
  %v2317 = vpack.c.b16 %v1337, %v1333
  %v2318 = vpack.c.b16 %v1342, %v1338
  %v2319 = vpack.c.b16 %v1343, %v1339
  %v2320 = vpack.c.b16 %v1344, %v1340
  %v2321 = vpack.c.b16 %v1345, %v1341
  %v2322 = vpack.c.b16 %v1350, %v1346
  %v2323 = vpack.c.b16 %v1351, %v1347
  %v2324 = vpack.c.b16 %v1352, %v1348
  %v2325 = vpack.c.b16 %v1353, %v1349
  %v2326 = vpack.c.b16 %v1358, %v1354
  %v2327 = vpack.c.b16 %v1359, %v1355
  %v2328 = vpack.c.b16 %v1360, %v1356
  %v2329 = vpack.c.b16 %v1361, %v1357
  %v2330 = vpack.c.b16 %v1366, %v1362
  %v2331 = vpack.c.b16 %v1367, %v1363
  %v2332 = vpack.c.b16 %v1368, %v1364
  %v2333 = vpack.c.b16 %v1369, %v1365
  %v2334 = vpack.c.b16 %v1374, %v1370
  %v2335 = vpack.c.b16 %v1375, %v1371
  %v2336 = vpack.c.b16 %v1376, %v1372
  %v2337 = vpack.c.b16 %v1377, %v1373
  %v2338 = vpack.c.b16 %v1382, %v1378
  %v2339 = vpack.c.b16 %v1383, %v1379
  %v2340 = vpack.c.b16 %v1384, %v1380
  %v2341 = vpack.c.b16 %v1385, %v1381
  %v2342 = vpack.c.b16 %v1390, %v1386
  %v2343 = vpack.c.b16 %v1391, %v1387
  %v2344 = vpack.c.b16 %v1392, %v1388
  %v2345 = vpack.c.b16 %v1393, %v1389
  %v2346 = vpack.c.b16 %v1398, %v1394
  %v2347 = vpack.c.b16 %v1399, %v1395
  %v2348 = vpack.c.b16 %v1400, %v1396
  %v2349 = vpack.c.b16 %v1401, %v1397
  %v2350 = vpack.c.b16 %v1406, %v1402
  %v2351 = vpack.c.b16 %v1407, %v1403
  %v2352 = vpack.c.b16 %v1408, %v1404
  %v2353 = vpack.c.b16 %v1409, %v1405
  %v2354 = vpack.c.b16 %v1414, %v1410
  %v2355 = vpack.c.b16 %v1415, %v1411
  %v2356 = vpack.c.b16 %v1416, %v1412
  %v2357 = vpack.c.b16 %v1417, %v1413
  %v2358 = vpack.c.b16 %v1422, %v1418
  %v2359 = vpack.c.b16 %v1423, %v1419
  %v2360 = vpack.c.b16 %v1424, %v1420
  %v2361 = vpack.c.b16 %v1425, %v1421
  %v2362 = vpack.c.b16 %v1430, %v1426
  %v2363 = vpack.c.b16 %v1431, %v1427
  %v2364 = vpack.c.b16 %v1432, %v1428
  %v2365 = vpack.c.b16 %v1433, %v1429
  %v2366 = vpack.c.b16 %v1438, %v1434
  %v2367 = vpack.c.b16 %v1439, %v1435
  %v2368 = vpack.c.b16 %v1440, %v1436
  %v2369 = vpack.c.b16 %v1441, %v1437
  %v2370 = vpack.c.b16 %v1446, %v1442
  %v2371 = vpack.c.b16 %v1447, %v1443
  %v2372 = vpack.c.b16 %v1448, %v1444
  %v2373 = vpack.c.b16 %v1449, %v1445
  %v2374 = vpack.c.b16 %v1454, %v1450
  %v2375 = vpack.c.b16 %v1455, %v1451
  %v2376 = vpack.c.b16 %v1456, %v1452
  %v2377 = vpack.c.b16 %v1457, %v1453
  %v2378 = vpack.c.b16 %v1462, %v1458
  %v2379 = vpack.c.b16 %v1463, %v1459
  %v2380 = vpack.c.b16 %v1464, %v1460
  %v2381 = vpack.c.b16 %v1465, %v1461
  %v2382 = vpack.c.b16 %v1470, %v1466
  %v2383 = vpack.c.b16 %v1471, %v1467
  %v2384 = vpack.c.b16 %v1472, %v1468
  %v2385 = vpack.c.b16 %v1473, %v1469
  %v2386 = vpack.c.b16 %v1478, %v1474
  %v2387 = vpack.c.b16 %v1479, %v1475
  %v2388 = vpack.c.b16 %v1480, %v1476
  %v2389 = vpack.c.b16 %v1481, %v1477
  %v2390 = vpack.c.b16 %v1486, %v1482
  %v2391 = vpack.c.b16 %v1487, %v1483
  %v2392 = vpack.c.b16 %v1488, %v1484
  %v2393 = vpack.c.b16 %v1489, %v1485
  %v2394 = vpack.c.b16 %v1494, %v1490
  %v2395 = vpack.c.b16 %v1495, %v1491
  %v2396 = vpack.c.b16 %v1496, %v1492
  %v2397 = vpack.c.b16 %v1497, %v1493
  %v2398 = vpack.c.b16 %v1502, %v1498
  %v2399 = vpack.c.b16 %v1503, %v1499
  %v2400 = vpack.c.b16 %v1504, %v1500
  %v2401 = vpack.c.b16 %v1505, %v1501
  %v2402 = vpack.c.b16 %v1510, %v1506
  %v2403 = vpack.c.b16 %v1511, %v1507
  %v2404 = vpack.c.b16 %v1512, %v1508
  %v2405 = vpack.c.b16 %v1513, %v1509
  %v2406 = vpack.c.b16 %v1518, %v1514
  %v2407 = vpack.c.b16 %v1519, %v1515
  %v2408 = vpack.c.b16 %v1520, %v1516
  %v2409 = vpack.c.b16 %v1521, %v1517
  %v2410 = vpack.c.b16 %v1526, %v1522
  %v2411 = vpack.c.b16 %v1527, %v1523
  %v2412 = vpack.c.b16 %v1528, %v1524
  %v2413 = vpack.c.b16 %v1529, %v1525
  %v2414 = vpack.c.b16 %v1534, %v1530
  %v2415 = vpack.c.b16 %v1535, %v1531
  %v2416 = vpack.c.b16 %v1536, %v1532
  %v2417 = vpack.c.b16 %v1537, %v1533
  %v2418 = vpack.c.b16 %v1542, %v1538
  %v2419 = vpack.c.b16 %v1543, %v1539
  %v2420 = vpack.c.b16 %v1544, %v1540
  %v2421 = vpack.c.b16 %v1545, %v1541
  %v2422 = vpack.c.b16 %v1550, %v1546
  %v2423 = vpack.c.b16 %v1551, %v1547
  %v2424 = vpack.c.b16 %v1552, %v1548
  %v2425 = vpack.c.b16 %v1553, %v1549
  %v2426 = vpack.c.b16 %v1558, %v1554
  %v2427 = vpack.c.b16 %v1559, %v1555
  %v2428 = vpack.c.b16 %v1560, %v1556
  %v2429 = vpack.c.b16 %v1561, %v1557
  %v2430 = vpack.c.b16 %v1566, %v1562
  %v2431 = vpack.c.b16 %v1567, %v1563
  %v2432 = vpack.c.b16 %v1568, %v1564
  %v2433 = vpack.c.b16 %v1569, %v1565
  %v2434 = vpack.c.b16 %v1574, %v1570
  %v2435 = vpack.c.b16 %v1575, %v1571
  %v2436 = vpack.c.b16 %v1576, %v1572
  %v2437 = vpack.c.b16 %v1577, %v1573
  %v2438 = vpack.c.b16 %v1582, %v1578
  %v2439 = vpack.c.b16 %v1583, %v1579
  %v2440 = vpack.c.b16 %v1584, %v1580
  %v2441 = vpack.c.b16 %v1585, %v1581
  %v2442 = vpack.c.b16 %v1590, %v1586
  %v2443 = vpack.c.b16 %v1591, %v1587
  %v2444 = vpack.c.b16 %v1592, %v1588
  %v2445 = vpack.c.b16 %v1593, %v1589
  %v2446 = vpack.c.b16 %v1598, %v1594
  %v2447 = vpack.c.b16 %v1599, %v1595
  %v2448 = vpack.c.b16 %v1600, %v1596
  %v2449 = vpack.c.b16 %v1601, %v1597
  %v2450 = vpack.c.b16 %v1606, %v1602
  %v2451 = vpack.c.b16 %v1607, %v1603
  %v2452 = vpack.c.b16 %v1608, %v1604
  %v2453 = vpack.c.b16 %v1609, %v1605
  %v2454 = vpack.c.b16 %v1614, %v1610
  %v2455 = vpack.c.b16 %v1615, %v1611
  %v2456 = vpack.c.b16 %v1616, %v1612
  %v2457 = vpack.c.b16 %v1617, %v1613
  %v2458 = vpack.c.b16 %v1622, %v1618
  %v2459 = vpack.c.b16 %v1623, %v1619
  %v2460 = vpack.c.b16 %v1624, %v1620
  %v2461 = vpack.c.b16 %v1625, %v1621
  %v2462 = vpack.c.b16 %v1630, %v1626
  %v2463 = vpack.c.b16 %v1631, %v1627
  %v2464 = vpack.c.b16 %v1632, %v1628
  %v2465 = vpack.c.b16 %v1633, %v1629
  %v2466 = vpack.c.b16 %v1638, %v1634
  %v2467 = vpack.c.b16 %v1639, %v1635
  %v2468 = vpack.c.b16 %v1640, %v1636
  %v2469 = vpack.c.b16 %v1641, %v1637
  %v2470 = vpack.c.b16 %v1646, %v1642
  %v2471 = vpack.c.b16 %v1647, %v1643
  %v2472 = vpack.c.b16 %v1648, %v1644
  %v2473 = vpack.c.b16 %v1649, %v1645
  %v2474 = vpack.c.b16 %v1654, %v1650
  %v2475 = vpack.c.b16 %v1655, %v1651
  %v2476 = vpack.c.b16 %v1656, %v1652
  %v2477 = vpack.c.b16 %v1657, %v1653
  %v2478 = vpack.c.b16 %v1662, %v1658
  %v2479 = vpack.c.b16 %v1663, %v1659
  %v2480 = vpack.c.b16 %v1664, %v1660
  %v2481 = vpack.c.b16 %v1665, %v1661
  %v2482 = vpack.c.b16 %v1670, %v1666
  %v2483 = vpack.c.b16 %v1671, %v1667
  %v2484 = vpack.c.b16 %v1672, %v1668
  %v2485 = vpack.c.b16 %v1673, %v1669
  %v2486 = vpack.c.b16 %v1678, %v1674
  %v2487 = vpack.c.b16 %v1679, %v1675
  %v2488 = vpack.c.b16 %v1680, %v1676
  %v2489 = vpack.c.b16 %v1681, %v1677
  %v2490 = vpack.c.b16 %v1686, %v1682
  %v2491 = vpack.c.b16 %v1687, %v1683
  %v2492 = vpack.c.b16 %v1688, %v1684
  %v2493 = vpack.c.b16 %v1689, %v1685
  %v2494 = vpack.c.b16 %v1694, %v1690
  %v2495 = vpack.c.b16 %v1695, %v1691
  %v2496 = vpack.c.b16 %v1696, %v1692
  %v2497 = vpack.c.b16 %v1697, %v1693
  %v2498 = vpack.c.b16 %v1702, %v1698
  %v2499 = vpack.c.b16 %v1703, %v1699
  %v2500 = vpack.c.b16 %v1704, %v1700
  %v2501 = vpack.c.b16 %v1705, %v1701
  %v2502 = vpack.c.b16 %v1710, %v1706
  %v2503 = vpack.c.b16 %v1711, %v1707
  %v2504 = vpack.c.b16 %v1712, %v1708
  %v2505 = vpack.c.b16 %v1713, %v1709
  %v2506 = vpack.c.b16 %v1718, %v1714
  %v2507 = vpack.c.b16 %v1719, %v1715
  %v2508 = vpack.c.b16 %v1720, %v1716
  %v2509 = vpack.c.b16 %v1721, %v1717
  %v2510 = vpack.c.b16 %v1726, %v1722
  %v2511 = vpack.c.b16 %v1727, %v1723
  %v2512 = vpack.c.b16 %v1728, %v1724
  %v2513 = vpack.c.b16 %v1729, %v1725
  %v2514 = vpack.c.b16 %v1734, %v1730
  %v2515 = vpack.c.b16 %v1735, %v1731
  %v2516 = vpack.c.b16 %v1736, %v1732
  %v2517 = vpack.c.b16 %v1737, %v1733
  %v2518 = vpack.c.b16 %v1742, %v1738
  %v2519 = vpack.c.b16 %v1743, %v1739
  %v2520 = vpack.c.b16 %v1744, %v1740
  %v2521 = vpack.c.b16 %v1745, %v1741
  %v2522 = vpack.c.b16 %v1750, %v1746
  %v2523 = vpack.c.b16 %v1751, %v1747
  %v2524 = vpack.c.b16 %v1752, %v1748
  %v2525 = vpack.c.b16 %v1753, %v1749
  %v2526 = vpack.c.b16 %v1758, %v1754
  %v2527 = vpack.c.b16 %v1759, %v1755
  %v2528 = vpack.c.b16 %v1760, %v1756
  %v2529 = vpack.c.b16 %v1761, %v1757
  %v2530 = vpack.c.b16 %v1766, %v1762
  %v2531 = vpack.c.b16 %v1767, %v1763
  %v2532 = vpack.c.b16 %v1768, %v1764
  %v2533 = vpack.c.b16 %v1769, %v1765
  %v2534 = vpack.c.b16 %v1774, %v1770
  %v2535 = vpack.c.b16 %v1775, %v1771
  %v2536 = vpack.c.b16 %v1776, %v1772
  %v2537 = vpack.c.b16 %v1777, %v1773
  %v2538 = vpack.c.b16 %v1782, %v1778
  %v2539 = vpack.c.b16 %v1783, %v1779
  %v2540 = vpack.c.b16 %v1784, %v1780
  %v2541 = vpack.c.b16 %v1785, %v1781
  %v2542 = vpack.c.b16 %v1790, %v1786
  %v2543 = vpack.c.b16 %v1791, %v1787
  %v2544 = vpack.c.b16 %v1792, %v1788
  %v2545 = vpack.c.b16 %v1793, %v1789
  %v2546 = vpack.c.b16 %v1798, %v1794
  %v2547 = vpack.c.b16 %v1799, %v1795
  %v2548 = vpack.c.b16 %v1800, %v1796
  %v2549 = vpack.c.b16 %v1801, %v1797
  %v2550 = vpack.c.b16 %v1806, %v1802
  %v2551 = vpack.c.b16 %v1807, %v1803
  %v2552 = vpack.c.b16 %v1808, %v1804
  %v2553 = vpack.c.b16 %v1809, %v1805
  %v2554 = vpack.c.b16 %v1814, %v1810
  %v2555 = vpack.c.b16 %v1815, %v1811
  %v2556 = vpack.c.b16 %v1816, %v1812
  %v2557 = vpack.c.b16 %v1817, %v1813
  %v2558 = vpack.c.b16 %v1822, %v1818
  %v2559 = vpack.c.b16 %v1823, %v1819
  %v2560 = vpack.c.b16 %v1824, %v1820
  %v2561 = vpack.c.b16 %v1825, %v1821
  %v2562 = vpack.c.b16 %v1830, %v1826
  %v2563 = vpack.c.b16 %v1831, %v1827
  %v2564 = vpack.c.b16 %v1832, %v1828
  %v2565 = vpack.c.b16 %v1833, %v1829
  %v2566 = vpack.c.b16 %v1838, %v1834
  %v2567 = vpack.c.b16 %v1839, %v1835
  %v2568 = vpack.c.b16 %v1840, %v1836
  %v2569 = vpack.c.b16 %v1841, %v1837
  %v2570 = vpack.c.b16 %v1846, %v1842
  %v2571 = vpack.c.b16 %v1847, %v1843
  %v2572 = vpack.c.b16 %v1848, %v1844
  %v2573 = vpack.c.b16 %v1849, %v1845
  %v2574 = vpack.c.b16 %v1854, %v1850
  %v2575 = vpack.c.b16 %v1855, %v1851
  %v2576 = vpack.c.b16 %v1856, %v1852
  %v2577 = vpack.c.b16 %v1857, %v1853
  %v2578 = vpack.c.b16 %v1862, %v1858
  %v2579 = vpack.c.b16 %v1863, %v1859
  %v2580 = vpack.c.b16 %v1864, %v1860
  %v2581 = vpack.c.b16 %v1865, %v1861
  %v2582 = vpack.c.b16 %v1870, %v1866
  %v2583 = vpack.c.b16 %v1871, %v1867
  %v2584 = vpack.c.b16 %v1872, %v1868
  %v2585 = vpack.c.b16 %v1873, %v1869
  %v2586 = vpack.c.b16 %v1878, %v1874
  %v2587 = vpack.c.b16 %v1879, %v1875
  %v2588 = vpack.c.b16 %v1880, %v1876
  %v2589 = vpack.c.b16 %v1881, %v1877
  %v2590 = vpack.c.b16 %v1886, %v1882
  %v2591 = vpack.c.b16 %v1887, %v1883
  %v2592 = vpack.c.b16 %v1888, %v1884
  %v2593 = vpack.c.b16 %v1889, %v1885
  %v2594 = vpack.c.b16 %v1894, %v1890
  %v2595 = vpack.c.b16 %v1895, %v1891
  %v2596 = vpack.c.b16 %v1896, %v1892
  %v2597 = vpack.c.b16 %v1897, %v1893
  %v2598 = vpack.c.b16 %v1902, %v1898
  %v2599 = vpack.c.b16 %v1903, %v1899
  %v2600 = vpack.c.b16 %v1904, %v1900
  %v2601 = vpack.c.b16 %v1905, %v1901
  %v2602 = vpack.c.b16 %v1910, %v1906
  %v2603 = vpack.c.b16 %v1911, %v1907
  %v2604 = vpack.c.b16 %v1912, %v1908
  %v2605 = vpack.c.b16 %v1913, %v1909
  %v2606 = vpack.c.b16 %v1918, %v1914
  %v2607 = vpack.c.b16 %v1919, %v1915
  %v2608 = vpack.c.b16 %v1920, %v1916
  %v2609 = vpack.c.b16 %v1921, %v1917
  %v2610 = vpack.c.b16 %v1926, %v1922
  %v2611 = vpack.c.b16 %v1927, %v1923
  %v2612 = vpack.c.b16 %v1928, %v1924
  %v2613 = vpack.c.b16 %v1929, %v1925
  %v2614 = vpack.c.b16 %v1934, %v1930
  %v2615 = vpack.c.b16 %v1935, %v1931
  %v2616 = vpack.c.b16 %v1936, %v1932
  %v2617 = vpack.c.b16 %v1937, %v1933
  %v2618 = vpack.c.b16 %v1942, %v1938
  %v2619 = vpack.c.b16 %v1943, %v1939
  %v2620 = vpack.c.b16 %v1944, %v1940
  %v2621 = vpack.c.b16 %v1945, %v1941
  %v2622 = vpack.c.b16 %v1950, %v1946
  %v2623 = vpack.c.b16 %v1951, %v1947
  %v2624 = vpack.c.b16 %v1952, %v1948
  %v2625 = vpack.c.b16 %v1953, %v1949
  %v2626 = vpack.c.b16 %v1958, %v1954
  %v2627 = vpack.c.b16 %v1959, %v1955
  %v2628 = vpack.c.b16 %v1960, %v1956
  %v2629 = vpack.c.b16 %v1961, %v1957
  %v2630 = vpack.c.b16 %v1966, %v1962
  %v2631 = vpack.c.b16 %v1967, %v1963
  %v2632 = vpack.c.b16 %v1968, %v1964
  %v2633 = vpack.c.b16 %v1969, %v1965
  %v2634 = vpack.c.b16 %v1974, %v1970
  %v2635 = vpack.c.b16 %v1975, %v1971
  %v2636 = vpack.c.b16 %v1976, %v1972
  %v2637 = vpack.c.b16 %v1977, %v1973
  %v2638 = vpack.c.b16 %v1982, %v1978
  %v2639 = vpack.c.b16 %v1983, %v1979
  %v2640 = vpack.c.b16 %v1984, %v1980
  %v2641 = vpack.c.b16 %v1985, %v1981
  %v2642 = vpack.c.b16 %v1990, %v1986
  %v2643 = vpack.c.b16 %v1991, %v1987
  %v2644 = vpack.c.b16 %v1992, %v1988
  %v2645 = vpack.c.b16 %v1993, %v1989
  %v2646 = vpack.c.b16 %v1998, %v1994
  %v2647 = vpack.c.b16 %v1999, %v1995
  %v2648 = vpack.c.b16 %v2000, %v1996
  %v2649 = vpack.c.b16 %v2001, %v1997
  %v2650 = vpack.c.b16 %v2006, %v2002
  %v2651 = vpack.c.b16 %v2007, %v2003
  %v2652 = vpack.c.b16 %v2008, %v2004
  %v2653 = vpack.c.b16 %v2009, %v2005
  %v2654 = vpack.c.b16 %v2014, %v2010
  %v2655 = vpack.c.b16 %v2015, %v2011
  %v2656 = vpack.c.b16 %v2016, %v2012
  %v2657 = vpack.c.b16 %v2017, %v2013
  %v2658 = vpack.c.b16 %v2022, %v2018
  %v2659 = vpack.c.b16 %v2023, %v2019
  %v2660 = vpack.c.b16 %v2024, %v2020
  %v2661 = vpack.c.b16 %v2025, %v2021
  %v2662 = vpack.c.b16 %v2030, %v2026
  %v2663 = vpack.c.b16 %v2031, %v2027
  %v2664 = vpack.c.b16 %v2032, %v2028
  %v2665 = vpack.c.b16 %v2033, %v2029
  %v2666 = vpack.c.b16 %v2038, %v2034
  %v2667 = vpack.c.b16 %v2039, %v2035
  %v2668 = vpack.c.b16 %v2040, %v2036
  %v2669 = vpack.c.b16 %v2041, %v2037
  %v2670 = vpack.c.b16 %v2046, %v2042
  %v2671 = vpack.c.b16 %v2047, %v2043
  %v2672 = vpack.c.b16 %v2048, %v2044
  %v2673 = vpack.c.b16 %v2049, %v2045
  %v2674 = vpack.c.b16 %v2054, %v2050
  %v2675 = vpack.c.b16 %v2055, %v2051
  %v2676 = vpack.c.b16 %v2056, %v2052
  %v2677 = vpack.c.b16 %v2057, %v2053
  %v2678 = vpack.c.b16 %v2062, %v2058
  %v2679 = vpack.c.b16 %v2063, %v2059
  %v2680 = vpack.c.b16 %v2064, %v2060
  %v2681 = vpack.c.b16 %v2065, %v2061
  %v2682 = vpack.c.b16 %v2070, %v2066
  %v2683 = vpack.c.b16 %v2071, %v2067
  %v2684 = vpack.c.b16 %v2072, %v2068
  %v2685 = vpack.c.b16 %v2073, %v2069
  %v2686 = vpack.c.b16 %v2078, %v2074
  %v2687 = vpack.c.b16 %v2079, %v2075
  %v2688 = vpack.c.b16 %v2080, %v2076
  %v2689 = vpack.c.b16 %v2081, %v2077
  %v2690 = vpack.c.b16 %v2086, %v2082
  %v2691 = vpack.c.b16 %v2087, %v2083
  %v2692 = vpack.c.b16 %v2088, %v2084
  %v2693 = vpack.c.b16 %v2089, %v2085
  %v2694 = vpack.c.b16 %v2094, %v2090
  %v2695 = vpack.c.b16 %v2095, %v2091
  %v2696 = vpack.c.b16 %v2096, %v2092
  %v2697 = vpack.c.b16 %v2097, %v2093
  %v2698 = vpack.c.b16 %v2102, %v2098
  %v2699 = vpack.c.b16 %v2103, %v2099
  %v2700 = vpack.c.b16 %v2104, %v2100
  %v2701 = vpack.c.b16 %v2105, %v2101
  %v2702 = vpack.c.b16 %v2110, %v2106
  %v2703 = vpack.c.b16 %v2111, %v2107
  %v2704 = vpack.c.b16 %v2112, %v2108
  %v2705 = vpack.c.b16 %v2113, %v2109
  %v2706 = vpack.c.b16 %v2118, %v2114
  %v2707 = vpack.c.b16 %v2119, %v2115
  %v2708 = vpack.c.b16 %v2120, %v2116
  %v2709 = vpack.c.b16 %v2121, %v2117
  %v2710 = vpack.c.b16 %v2126, %v2122
  %v2711 = vpack.c.b16 %v2127, %v2123
  %v2712 = vpack.c.b16 %v2128, %v2124
  %v2713 = vpack.c.b16 %v2129, %v2125
  %v2714 = vpack.c.b16 %v2134, %v2130
  %v2715 = vpack.c.b16 %v2135, %v2131
  %v2716 = vpack.c.b16 %v2136, %v2132
  %v2717 = vpack.c.b16 %v2137, %v2133
  %v2718 = vpack.c.b16 %v2142, %v2138
  %v2719 = vpack.c.b16 %v2143, %v2139
  %v2720 = vpack.c.b16 %v2144, %v2140
  %v2721 = vpack.c.b16 %v2145, %v2141
  %v2722 = vpack.c.b16 %v2150, %v2146
  %v2723 = vpack.c.b16 %v2151, %v2147
  %v2724 = vpack.c.b16 %v2152, %v2148
  %v2725 = vpack.c.b16 %v2153, %v2149
  %v2726 = vpack.c.b16 %v2158, %v2154
  %v2727 = vpack.c.b16 %v2159, %v2155
  %v2728 = vpack.c.b16 %v2160, %v2156
  %v2729 = vpack.c.b16 %v2161, %v2157
  %v2730 = vpack.c.b16 %v2166, %v2162
  %v2731 = vpack.c.b16 %v2167, %v2163
  %v2732 = vpack.c.b16 %v2168, %v2164
  %v2733 = vpack.c.b16 %v2169, %v2165
  %v2734 = vpack.c.b16 %v2174, %v2170
  %v2735 = vpack.c.b16 %v2175, %v2171
  %v2736 = vpack.c.b16 %v2176, %v2172
  %v2737 = vpack.c.b16 %v2177, %v2173
  %v2738 = vpack.c.b16 %v2182, %v2178
  %v2739 = vpack.c.b16 %v2183, %v2179
  %v2740 = vpack.c.b16 %v2184, %v2180
  %v2741 = vpack.c.b16 %v2185, %v2181
  %v2742 = vpack.c.b16 %v2190, %v2186
  %v2743 = vpack.c.b16 %v2191, %v2187
  %v2744 = vpack.c.b16 %v2192, %v2188
  %v2745 = vpack.c.b16 %v2193, %v2189
  %v2746 = vpack.c.b16 %v2198, %v2194
  %v2747 = vpack.c.b16 %v2199, %v2195
  %v2748 = vpack.c.b16 %v2200, %v2196
  %v2749 = vpack.c.b16 %v2201, %v2197
  %v2750 = vpack.c.b16 %v2206, %v2202
  %v2751 = vpack.c.b16 %v2207, %v2203
  %v2752 = vpack.c.b16 %v2208, %v2204
  %v2753 = vpack.c.b16 %v2209, %v2205
  %v2754 = vpack.c.b16 %v2214, %v2210
  %v2755 = vpack.c.b16 %v2215, %v2211
  %v2756 = vpack.c.b16 %v2216, %v2212
  %v2757 = vpack.c.b16 %v2217, %v2213
  %v2758 = vpack.c.b16 %v2222, %v2218
  %v2759 = vpack.c.b16 %v2223, %v2219
  %v2760 = vpack.c.b16 %v2224, %v2220
  %v2761 = vpack.c.b16 %v2225, %v2221
  %v2762 = vpack.c.b16 %v2230, %v2226
  %v2763 = vpack.c.b16 %v2231, %v2227
  %v2764 = vpack.c.b16 %v2232, %v2228
  %v2765 = vpack.c.b16 %v2233, %v2229
  %v2766 = vpack.c.b16 %v2238, %v2234
  %v2767 = vpack.c.b16 %v2239, %v2235
  %v2768 = vpack.c.b16 %v2240, %v2236
  %v2769 = vpack.c.b16 %v2241, %v2237
  %v2770 = vpack.c.b16 %v2246, %v2242
  %v2771 = vpack.c.b16 %v2247, %v2243
  %v2772 = vpack.c.b16 %v2248, %v2244
  %v2773 = vpack.c.b16 %v2249, %v2245
  %v2774 = vpack.c.b16 %v2254, %v2250
  %v2775 = vpack.c.b16 %v2255, %v2251
  %v2776 = vpack.c.b16 %v2256, %v2252
  %v2777 = vpack.c.b16 %v2257, %v2253
  %v2778 = vpack.c.b16 %v2262, %v2258
  %v2779 = vpack.c.b16 %v2263, %v2259
  %v2780 = vpack.c.b16 %v2264, %v2260
  %v2781 = vpack.c.b16 %v2265, %v2261
  %v2782 = vpack.c.b16 %v2270, %v2266
  %v2783 = vpack.c.b16 %v2271, %v2267
  %v2784 = vpack.c.b16 %v2272, %v2268
  %v2785 = vpack.c.b16 %v2273, %v2269
  %3298 = vmatpush.bf16.msra.mxu0 %v2302
  %3299 = vmatpush.bf16.msra.mxu0 %v2298
  %3300 = vmatpush.bf16.msra.mxu0 %v2294
  %3301 = vmatpush.bf16.msra.mxu0 %v2290
  %3302 = vmatpush.bf16.msra.mxu0 %v2286
  %3303 = vmatpush.bf16.msra.mxu0 %v2282
  %3304 = vmatpush.bf16.msra.mxu0 %v2278
  %3305 = vmatpush.bf16.msra.mxu0 %v2274
  %3306 = vmatmul.bf16.gmra.mxu0 %v210
  %v3307 = vpop.f32.mrf.mxu0
  %v3308 = vadd.f32 0.0, %v3307
  %v3309 = vpop.f32.mrf.mxu0
  %3310 = vdwg.mxu0
  %3311 = vmatpush.bf16.msra.mxu0 %v2334
  %3312 = vmatpush.bf16.msra.mxu0 %v2330
  %3313 = vmatpush.bf16.msra.mxu0 %v2326
  %3314 = vmatpush.bf16.msra.mxu0 %v2322
  %3315 = vmatpush.bf16.msra.mxu0 %v2318
  %3316 = vmatpush.bf16.msra.mxu0 %v2314
  %3317 = vmatpush.bf16.msra.mxu0 %v2310
  %3318 = vmatpush.bf16.msra.mxu0 %v2306
  %3319 = vmatmul.bf16.gmra.mxu0 %v211
  %v3320 = vpop.f32.mrf.mxu0
  %v3321 = vadd.f32 %v3308, %v3320
  %v3322 = vpop.f32.mrf.mxu0
  %3323 = vdwg.mxu0
  %3324 = vmatpush.bf16.msra.mxu0 %v2366
  %3325 = vmatpush.bf16.msra.mxu0 %v2362
  %3326 = vmatpush.bf16.msra.mxu0 %v2358
  %3327 = vmatpush.bf16.msra.mxu0 %v2354
  %3328 = vmatpush.bf16.msra.mxu0 %v2350
  %3329 = vmatpush.bf16.msra.mxu0 %v2346
  %3330 = vmatpush.bf16.msra.mxu0 %v2342
  %3331 = vmatpush.bf16.msra.mxu0 %v2338
  %3332 = vmatmul.bf16.gmra.mxu0 %v212
  %v3333 = vpop.f32.mrf.mxu0
  %v3334 = vadd.f32 %v3321, %v3333
  %v3335 = vpop.f32.mrf.mxu0
  %3336 = vdwg.mxu0
  %3337 = vmatpush.bf16.msra.mxu0 %v2398
  %3338 = vmatpush.bf16.msra.mxu0 %v2394
  %3339 = vmatpush.bf16.msra.mxu0 %v2390
  %3340 = vmatpush.bf16.msra.mxu0 %v2386
  %3341 = vmatpush.bf16.msra.mxu0 %v2382
  %3342 = vmatpush.bf16.msra.mxu0 %v2378
  %3343 = vmatpush.bf16.msra.mxu0 %v2374
  %3344 = vmatpush.bf16.msra.mxu0 %v2370
  %3345 = vmatmul.bf16.gmra.mxu0 %v213
  %v3346 = vpop.f32.mrf.mxu0
  %v3347 = vadd.f32 %v3334, %v3346
  %v3348 = vpop.f32.mrf.mxu0
  %3349 = vdwg.mxu0
  %3350 = vmatpush.bf16.msra.mxu0 %v2430
  %3351 = vmatpush.bf16.msra.mxu0 %v2426
  %3352 = vmatpush.bf16.msra.mxu0 %v2422
  %3353 = vmatpush.bf16.msra.mxu0 %v2418
  %3354 = vmatpush.bf16.msra.mxu0 %v2414
  %3355 = vmatpush.bf16.msra.mxu0 %v2410
  %3356 = vmatpush.bf16.msra.mxu0 %v2406
  %3357 = vmatpush.bf16.msra.mxu0 %v2402
  %3358 = vmatmul.bf16.gmra.mxu0 %v214
  %v3359 = vpop.f32.mrf.mxu0
  %v3360 = vadd.f32 %v3347, %v3359
  %v3361 = vpop.f32.mrf.mxu0
  %3362 = vdwg.mxu0
  %3363 = vmatpush.bf16.msra.mxu0 %v2462
  %3364 = vmatpush.bf16.msra.mxu0 %v2458
  %3365 = vmatpush.bf16.msra.mxu0 %v2454
  %3366 = vmatpush.bf16.msra.mxu0 %v2450
  %3367 = vmatpush.bf16.msra.mxu0 %v2446
  %3368 = vmatpush.bf16.msra.mxu0 %v2442
  %3369 = vmatpush.bf16.msra.mxu0 %v2438
  %3370 = vmatpush.bf16.msra.mxu0 %v2434
  %3371 = vmatmul.bf16.gmra.mxu0 %v215
  %v3372 = vpop.f32.mrf.mxu0
  %v3373 = vadd.f32 %v3360, %v3372
  %v3374 = vpop.f32.mrf.mxu0
  %3375 = vdwg.mxu0
  %3376 = vmatpush.bf16.msra.mxu0 %v2494
  %3377 = vmatpush.bf16.msra.mxu0 %v2490
  %3378 = vmatpush.bf16.msra.mxu0 %v2486
  %3379 = vmatpush.bf16.msra.mxu0 %v2482
  %3380 = vmatpush.bf16.msra.mxu0 %v2478
  %3381 = vmatpush.bf16.msra.mxu0 %v2474
  %3382 = vmatpush.bf16.msra.mxu0 %v2470
  %3383 = vmatpush.bf16.msra.mxu0 %v2466
  %3384 = vmatmul.bf16.gmra.mxu0 %v216
  %v3385 = vpop.f32.mrf.mxu0
  %v3386 = vadd.f32 %v3373, %v3385
  %v3387 = vpop.f32.mrf.mxu0
  %3388 = vdwg.mxu0
  %3389 = vmatpush.bf16.msra.mxu0 %v2526
  %3390 = vmatpush.bf16.msra.mxu0 %v2522
  %3391 = vmatpush.bf16.msra.mxu0 %v2518
  %3392 = vmatpush.bf16.msra.mxu0 %v2514
  %3393 = vmatpush.bf16.msra.mxu0 %v2510
  %3394 = vmatpush.bf16.msra.mxu0 %v2506
  %3395 = vmatpush.bf16.msra.mxu0 %v2502
  %3396 = vmatpush.bf16.msra.mxu0 %v2498
  %3397 = vmatmul.bf16.gmra.mxu0 %v217
  %v3398 = vpop.f32.mrf.mxu0
  %v3399 = vadd.f32 %v3386, %v3398
  %v3400 = vpop.f32.mrf.mxu0
  %3401 = vdwg.mxu0
  %3402 = vmatpush.bf16.msra.mxu0 %v2558
  %3403 = vmatpush.bf16.msra.mxu0 %v2554
  %3404 = vmatpush.bf16.msra.mxu0 %v2550
  %3405 = vmatpush.bf16.msra.mxu0 %v2546
  %3406 = vmatpush.bf16.msra.mxu0 %v2542
  %3407 = vmatpush.bf16.msra.mxu0 %v2538
  %3408 = vmatpush.bf16.msra.mxu0 %v2534
  %3409 = vmatpush.bf16.msra.mxu0 %v2530
  %3410 = vmatmul.bf16.gmra.mxu0 %v218
  %v3411 = vpop.f32.mrf.mxu0
  %v3412 = vadd.f32 %v3399, %v3411
  %v3413 = vpop.f32.mrf.mxu0
  %3414 = vdwg.mxu0
  %3415 = vmatpush.bf16.msra.mxu0 %v2590
  %3416 = vmatpush.bf16.msra.mxu0 %v2586
  %3417 = vmatpush.bf16.msra.mxu0 %v2582
  %3418 = vmatpush.bf16.msra.mxu0 %v2578
  %3419 = vmatpush.bf16.msra.mxu0 %v2574
  %3420 = vmatpush.bf16.msra.mxu0 %v2570
  %3421 = vmatpush.bf16.msra.mxu0 %v2566
  %3422 = vmatpush.bf16.msra.mxu0 %v2562
  %3423 = vmatmul.bf16.gmra.mxu0 %v219
  %v3424 = vpop.f32.mrf.mxu0
  %v3425 = vadd.f32 %v3412, %v3424
  %v3426 = vpop.f32.mrf.mxu0
  %3427 = vdwg.mxu0
  %3428 = vmatpush.bf16.msra.mxu0 %v2622
  %3429 = vmatpush.bf16.msra.mxu0 %v2618
  %3430 = vmatpush.bf16.msra.mxu0 %v2614
  %3431 = vmatpush.bf16.msra.mxu0 %v2610
  %3432 = vmatpush.bf16.msra.mxu0 %v2606
  %3433 = vmatpush.bf16.msra.mxu0 %v2602
  %3434 = vmatpush.bf16.msra.mxu0 %v2598
  %3435 = vmatpush.bf16.msra.mxu0 %v2594
  %3436 = vmatmul.bf16.gmra.mxu0 %v220
  %v3437 = vpop.f32.mrf.mxu0
  %v3438 = vadd.f32 %v3425, %v3437
  %v3439 = vpop.f32.mrf.mxu0
  %3440 = vdwg.mxu0
  %3441 = vmatpush.bf16.msra.mxu0 %v2654
  %3442 = vmatpush.bf16.msra.mxu0 %v2650
  %3443 = vmatpush.bf16.msra.mxu0 %v2646
  %3444 = vmatpush.bf16.msra.mxu0 %v2642
  %3445 = vmatpush.bf16.msra.mxu0 %v2638
  %3446 = vmatpush.bf16.msra.mxu0 %v2634
  %3447 = vmatpush.bf16.msra.mxu0 %v2630
  %3448 = vmatpush.bf16.msra.mxu0 %v2626
  %3449 = vmatmul.bf16.gmra.mxu0 %v221
  %v3450 = vpop.f32.mrf.mxu0
  %v3451 = vadd.f32 %v3438, %v3450
  %v3452 = vpop.f32.mrf.mxu0
  %3453 = vdwg.mxu0
  %3454 = vmatpush.bf16.msra.mxu0 %v2686
  %3455 = vmatpush.bf16.msra.mxu0 %v2682
  %3456 = vmatpush.bf16.msra.mxu0 %v2678
  %3457 = vmatpush.bf16.msra.mxu0 %v2674
  %3458 = vmatpush.bf16.msra.mxu0 %v2670
  %3459 = vmatpush.bf16.msra.mxu0 %v2666
  %3460 = vmatpush.bf16.msra.mxu0 %v2662
  %3461 = vmatpush.bf16.msra.mxu0 %v2658
  %3462 = vmatmul.bf16.gmra.mxu0 %v222
  %v3463 = vpop.f32.mrf.mxu0
  %v3464 = vadd.f32 %v3451, %v3463
  %v3465 = vpop.f32.mrf.mxu0
  %3466 = vdwg.mxu0
  %3467 = vmatpush.bf16.msra.mxu0 %v2718
  %3468 = vmatpush.bf16.msra.mxu0 %v2714
  %3469 = vmatpush.bf16.msra.mxu0 %v2710
  %3470 = vmatpush.bf16.msra.mxu0 %v2706
  %3471 = vmatpush.bf16.msra.mxu0 %v2702
  %3472 = vmatpush.bf16.msra.mxu0 %v2698
  %3473 = vmatpush.bf16.msra.mxu0 %v2694
  %3474 = vmatpush.bf16.msra.mxu0 %v2690
  %3475 = vmatmul.bf16.gmra.mxu0 %v223
  %v3476 = vpop.f32.mrf.mxu0
  %v3477 = vadd.f32 %v3464, %v3476
  %v3478 = vpop.f32.mrf.mxu0
  %3479 = vdwg.mxu0
  %3480 = vmatpush.bf16.msra.mxu0 %v2750
  %3481 = vmatpush.bf16.msra.mxu0 %v2746
  %3482 = vmatpush.bf16.msra.mxu0 %v2742
  %3483 = vmatpush.bf16.msra.mxu0 %v2738
  %3484 = vmatpush.bf16.msra.mxu0 %v2734
  %3485 = vmatpush.bf16.msra.mxu0 %v2730
  %3486 = vmatpush.bf16.msra.mxu0 %v2726
  %3487 = vmatpush.bf16.msra.mxu0 %v2722
  %3488 = vmatmul.bf16.gmra.mxu0 %v224
  %v3489 = vpop.f32.mrf.mxu0
  %v3490 = vadd.f32 %v3477, %v3489
  %v3491 = vpop.f32.mrf.mxu0
  %3492 = vdwg.mxu0
  %3493 = vmatpush.bf16.msra.mxu0 %v2782
  %3494 = vmatpush.bf16.msra.mxu0 %v2778
  %3495 = vmatpush.bf16.msra.mxu0 %v2774
  %3496 = vmatpush.bf16.msra.mxu0 %v2770
  %3497 = vmatpush.bf16.msra.mxu0 %v2766
  %3498 = vmatpush.bf16.msra.mxu0 %v2762
  %3499 = vmatpush.bf16.msra.mxu0 %v2758
  %3500 = vmatpush.bf16.msra.mxu0 %v2754
  %3501 = vmatmul.bf16.gmra.mxu0 %v225
  %v3502 = vpop.f32.mrf.mxu0
  %v3503 = vadd.f32 %v3490, %v3502
  %v3504 = vpop.f32.mrf.mxu0
  %3505 = vdwg.mxu0
  %3506 = vmatpush.bf16.msra.mxu0 %v2303
  %3507 = vmatpush.bf16.msra.mxu0 %v2299
  %3508 = vmatpush.bf16.msra.mxu0 %v2295
  %3509 = vmatpush.bf16.msra.mxu0 %v2291
  %3510 = vmatpush.bf16.msra.mxu0 %v2287
  %3511 = vmatpush.bf16.msra.mxu0 %v2283
  %3512 = vmatpush.bf16.msra.mxu0 %v2279
  %3513 = vmatpush.bf16.msra.mxu0 %v2275
  %3514 = vmatmul.bf16.gmra.mxu0 %v210
  %v3515 = vpop.f32.mrf.mxu0
  %v3516 = vadd.f32 0.0, %v3515
  %v3517 = vpop.f32.mrf.mxu0
  %3518 = vdwg.mxu0
  %3519 = vmatpush.bf16.msra.mxu0 %v2335
  %3520 = vmatpush.bf16.msra.mxu0 %v2331
  %3521 = vmatpush.bf16.msra.mxu0 %v2327
  %3522 = vmatpush.bf16.msra.mxu0 %v2323
  %3523 = vmatpush.bf16.msra.mxu0 %v2319
  %3524 = vmatpush.bf16.msra.mxu0 %v2315
  %3525 = vmatpush.bf16.msra.mxu0 %v2311
  %3526 = vmatpush.bf16.msra.mxu0 %v2307
  %3527 = vmatmul.bf16.gmra.mxu0 %v211
  %v3528 = vpop.f32.mrf.mxu0
  %v3529 = vadd.f32 %v3516, %v3528
  %v3530 = vpop.f32.mrf.mxu0
  %3531 = vdwg.mxu0
  %3532 = vmatpush.bf16.msra.mxu0 %v2367
  %3533 = vmatpush.bf16.msra.mxu0 %v2363
  %3534 = vmatpush.bf16.msra.mxu0 %v2359
  %3535 = vmatpush.bf16.msra.mxu0 %v2355
  %3536 = vmatpush.bf16.msra.mxu0 %v2351
  %3537 = vmatpush.bf16.msra.mxu0 %v2347
  %3538 = vmatpush.bf16.msra.mxu0 %v2343
  %3539 = vmatpush.bf16.msra.mxu0 %v2339
  %3540 = vmatmul.bf16.gmra.mxu0 %v212
  %v3541 = vpop.f32.mrf.mxu0
  %v3542 = vadd.f32 %v3529, %v3541
  %v3543 = vpop.f32.mrf.mxu0
  %3544 = vdwg.mxu0
  %3545 = vmatpush.bf16.msra.mxu0 %v2399
  %3546 = vmatpush.bf16.msra.mxu0 %v2395
  %3547 = vmatpush.bf16.msra.mxu0 %v2391
  %3548 = vmatpush.bf16.msra.mxu0 %v2387
  %3549 = vmatpush.bf16.msra.mxu0 %v2383
  %3550 = vmatpush.bf16.msra.mxu0 %v2379
  %3551 = vmatpush.bf16.msra.mxu0 %v2375
  %3552 = vmatpush.bf16.msra.mxu0 %v2371
  %3553 = vmatmul.bf16.gmra.mxu0 %v213
  %v3554 = vpop.f32.mrf.mxu0
  %v3555 = vadd.f32 %v3542, %v3554
  %v3556 = vpop.f32.mrf.mxu0
  %3557 = vdwg.mxu0
  %3558 = vmatpush.bf16.msra.mxu0 %v2431
  %3559 = vmatpush.bf16.msra.mxu0 %v2427
  %3560 = vmatpush.bf16.msra.mxu0 %v2423
  %3561 = vmatpush.bf16.msra.mxu0 %v2419
  %3562 = vmatpush.bf16.msra.mxu0 %v2415
  %3563 = vmatpush.bf16.msra.mxu0 %v2411
  %3564 = vmatpush.bf16.msra.mxu0 %v2407
  %3565 = vmatpush.bf16.msra.mxu0 %v2403
  %3566 = vmatmul.bf16.gmra.mxu0 %v214
  %v3567 = vpop.f32.mrf.mxu0
  %v3568 = vadd.f32 %v3555, %v3567
  %v3569 = vpop.f32.mrf.mxu0
  %3570 = vdwg.mxu0
  %3571 = vmatpush.bf16.msra.mxu0 %v2463
  %3572 = vmatpush.bf16.msra.mxu0 %v2459
  %3573 = vmatpush.bf16.msra.mxu0 %v2455
  %3574 = vmatpush.bf16.msra.mxu0 %v2451
  %3575 = vmatpush.bf16.msra.mxu0 %v2447
  %3576 = vmatpush.bf16.msra.mxu0 %v2443
  %3577 = vmatpush.bf16.msra.mxu0 %v2439
  %3578 = vmatpush.bf16.msra.mxu0 %v2435
  %3579 = vmatmul.bf16.gmra.mxu0 %v215
  %v3580 = vpop.f32.mrf.mxu0
  %v3581 = vadd.f32 %v3568, %v3580
  %v3582 = vpop.f32.mrf.mxu0
  %3583 = vdwg.mxu0
  %3584 = vmatpush.bf16.msra.mxu0 %v2495
  %3585 = vmatpush.bf16.msra.mxu0 %v2491
  %3586 = vmatpush.bf16.msra.mxu0 %v2487
  %3587 = vmatpush.bf16.msra.mxu0 %v2483
  %3588 = vmatpush.bf16.msra.mxu0 %v2479
  %3589 = vmatpush.bf16.msra.mxu0 %v2475
  %3590 = vmatpush.bf16.msra.mxu0 %v2471
  %3591 = vmatpush.bf16.msra.mxu0 %v2467
  %3592 = vmatmul.bf16.gmra.mxu0 %v216
  %v3593 = vpop.f32.mrf.mxu0
  %v3594 = vadd.f32 %v3581, %v3593
  %v3595 = vpop.f32.mrf.mxu0
  %3596 = vdwg.mxu0
  %3597 = vmatpush.bf16.msra.mxu0 %v2527
  %3598 = vmatpush.bf16.msra.mxu0 %v2523
  %3599 = vmatpush.bf16.msra.mxu0 %v2519
  %3600 = vmatpush.bf16.msra.mxu0 %v2515
  %3601 = vmatpush.bf16.msra.mxu0 %v2511
  %3602 = vmatpush.bf16.msra.mxu0 %v2507
  %3603 = vmatpush.bf16.msra.mxu0 %v2503
  %3604 = vmatpush.bf16.msra.mxu0 %v2499
  %3605 = vmatmul.bf16.gmra.mxu0 %v217
  %v3606 = vpop.f32.mrf.mxu0
  %v3607 = vadd.f32 %v3594, %v3606
  %v3608 = vpop.f32.mrf.mxu0
  %3609 = vdwg.mxu0
  %3610 = vmatpush.bf16.msra.mxu0 %v2559
  %3611 = vmatpush.bf16.msra.mxu0 %v2555
  %3612 = vmatpush.bf16.msra.mxu0 %v2551
  %3613 = vmatpush.bf16.msra.mxu0 %v2547
  %3614 = vmatpush.bf16.msra.mxu0 %v2543
  %3615 = vmatpush.bf16.msra.mxu0 %v2539
  %3616 = vmatpush.bf16.msra.mxu0 %v2535
  %3617 = vmatpush.bf16.msra.mxu0 %v2531
  %3618 = vmatmul.bf16.gmra.mxu0 %v218
  %v3619 = vpop.f32.mrf.mxu0
  %v3620 = vadd.f32 %v3607, %v3619
  %v3621 = vpop.f32.mrf.mxu0
  %3622 = vdwg.mxu0
  %3623 = vmatpush.bf16.msra.mxu0 %v2591
  %3624 = vmatpush.bf16.msra.mxu0 %v2587
  %3625 = vmatpush.bf16.msra.mxu0 %v2583
  %3626 = vmatpush.bf16.msra.mxu0 %v2579
  %3627 = vmatpush.bf16.msra.mxu0 %v2575
  %3628 = vmatpush.bf16.msra.mxu0 %v2571
  %3629 = vmatpush.bf16.msra.mxu0 %v2567
  %3630 = vmatpush.bf16.msra.mxu0 %v2563
  %3631 = vmatmul.bf16.gmra.mxu0 %v219
  %v3632 = vpop.f32.mrf.mxu0
  %v3633 = vadd.f32 %v3620, %v3632
  %v3634 = vpop.f32.mrf.mxu0
  %3635 = vdwg.mxu0
  %3636 = vmatpush.bf16.msra.mxu0 %v2623
  %3637 = vmatpush.bf16.msra.mxu0 %v2619
  %3638 = vmatpush.bf16.msra.mxu0 %v2615
  %3639 = vmatpush.bf16.msra.mxu0 %v2611
  %3640 = vmatpush.bf16.msra.mxu0 %v2607
  %3641 = vmatpush.bf16.msra.mxu0 %v2603
  %3642 = vmatpush.bf16.msra.mxu0 %v2599
  %3643 = vmatpush.bf16.msra.mxu0 %v2595
  %3644 = vmatmul.bf16.gmra.mxu0 %v220
  %v3645 = vpop.f32.mrf.mxu0
  %v3646 = vadd.f32 %v3633, %v3645
  %v3647 = vpop.f32.mrf.mxu0
  %3648 = vdwg.mxu0
  %3649 = vmatpush.bf16.msra.mxu0 %v2655
  %3650 = vmatpush.bf16.msra.mxu0 %v2651
  %3651 = vmatpush.bf16.msra.mxu0 %v2647
  %3652 = vmatpush.bf16.msra.mxu0 %v2643
  %3653 = vmatpush.bf16.msra.mxu0 %v2639
  %3654 = vmatpush.bf16.msra.mxu0 %v2635
  %3655 = vmatpush.bf16.msra.mxu0 %v2631
  %3656 = vmatpush.bf16.msra.mxu0 %v2627
  %3657 = vmatmul.bf16.gmra.mxu0 %v221
  %v3658 = vpop.f32.mrf.mxu0
  %v3659 = vadd.f32 %v3646, %v3658
  %v3660 = vpop.f32.mrf.mxu0
  %3661 = vdwg.mxu0
  %3662 = vmatpush.bf16.msra.mxu0 %v2687
  %3663 = vmatpush.bf16.msra.mxu0 %v2683
  %3664 = vmatpush.bf16.msra.mxu0 %v2679
  %3665 = vmatpush.bf16.msra.mxu0 %v2675
  %3666 = vmatpush.bf16.msra.mxu0 %v2671
  %3667 = vmatpush.bf16.msra.mxu0 %v2667
  %3668 = vmatpush.bf16.msra.mxu0 %v2663
  %3669 = vmatpush.bf16.msra.mxu0 %v2659
  %3670 = vmatmul.bf16.gmra.mxu0 %v222
  %v3671 = vpop.f32.mrf.mxu0
  %v3672 = vadd.f32 %v3659, %v3671
  %v3673 = vpop.f32.mrf.mxu0
  %3674 = vdwg.mxu0
  %3675 = vmatpush.bf16.msra.mxu0 %v2719
  %3676 = vmatpush.bf16.msra.mxu0 %v2715
  %3677 = vmatpush.bf16.msra.mxu0 %v2711
  %3678 = vmatpush.bf16.msra.mxu0 %v2707
  %3679 = vmatpush.bf16.msra.mxu0 %v2703
  %3680 = vmatpush.bf16.msra.mxu0 %v2699
  %3681 = vmatpush.bf16.msra.mxu0 %v2695
  %3682 = vmatpush.bf16.msra.mxu0 %v2691
  %3683 = vmatmul.bf16.gmra.mxu0 %v223
  %v3684 = vpop.f32.mrf.mxu0
  %v3685 = vadd.f32 %v3672, %v3684
  %v3686 = vpop.f32.mrf.mxu0
  %3687 = vdwg.mxu0
  %3688 = vmatpush.bf16.msra.mxu0 %v2751
  %3689 = vmatpush.bf16.msra.mxu0 %v2747
  %3690 = vmatpush.bf16.msra.mxu0 %v2743
  %3691 = vmatpush.bf16.msra.mxu0 %v2739
  %3692 = vmatpush.bf16.msra.mxu0 %v2735
  %3693 = vmatpush.bf16.msra.mxu0 %v2731
  %3694 = vmatpush.bf16.msra.mxu0 %v2727
  %3695 = vmatpush.bf16.msra.mxu0 %v2723
  %3696 = vmatmul.bf16.gmra.mxu0 %v224
  %v3697 = vpop.f32.mrf.mxu0
  %v3698 = vadd.f32 %v3685, %v3697
  %v3699 = vpop.f32.mrf.mxu0
  %3700 = vdwg.mxu0
  %3701 = vmatpush.bf16.msra.mxu0 %v2783
  %3702 = vmatpush.bf16.msra.mxu0 %v2779
  %3703 = vmatpush.bf16.msra.mxu0 %v2775
  %3704 = vmatpush.bf16.msra.mxu0 %v2771
  %3705 = vmatpush.bf16.msra.mxu0 %v2767
  %3706 = vmatpush.bf16.msra.mxu0 %v2763
  %3707 = vmatpush.bf16.msra.mxu0 %v2759
  %3708 = vmatpush.bf16.msra.mxu0 %v2755
  %3709 = vmatmul.bf16.gmra.mxu0 %v225
  %v3710 = vpop.f32.mrf.mxu0
  %v3711 = vadd.f32 %v3698, %v3710
  %v3712 = vpop.f32.mrf.mxu0
  %3713 = vdwg.mxu0
  %3714 = vmatpush.bf16.msra.mxu0 %v2304
  %3715 = vmatpush.bf16.msra.mxu0 %v2300
  %3716 = vmatpush.bf16.msra.mxu0 %v2296
  %3717 = vmatpush.bf16.msra.mxu0 %v2292
  %3718 = vmatpush.bf16.msra.mxu0 %v2288
  %3719 = vmatpush.bf16.msra.mxu0 %v2284
  %3720 = vmatpush.bf16.msra.mxu0 %v2280
  %3721 = vmatpush.bf16.msra.mxu0 %v2276
  %3722 = vmatmul.bf16.gmra.mxu0 %v210
  %v3723 = vpop.f32.mrf.mxu0
  %v3724 = vadd.f32 0.0, %v3723
  %v3725 = vpop.f32.mrf.mxu0
  %3726 = vdwg.mxu0
  %3727 = vmatpush.bf16.msra.mxu0 %v2336
  %3728 = vmatpush.bf16.msra.mxu0 %v2332
  %3729 = vmatpush.bf16.msra.mxu0 %v2328
  %3730 = vmatpush.bf16.msra.mxu0 %v2324
  %3731 = vmatpush.bf16.msra.mxu0 %v2320
  %3732 = vmatpush.bf16.msra.mxu0 %v2316
  %3733 = vmatpush.bf16.msra.mxu0 %v2312
  %3734 = vmatpush.bf16.msra.mxu0 %v2308
  %3735 = vmatmul.bf16.gmra.mxu0 %v211
  %v3736 = vpop.f32.mrf.mxu0
  %v3737 = vadd.f32 %v3724, %v3736
  %v3738 = vpop.f32.mrf.mxu0
  %3739 = vdwg.mxu0
  %3740 = vmatpush.bf16.msra.mxu0 %v2368
  %3741 = vmatpush.bf16.msra.mxu0 %v2364
  %3742 = vmatpush.bf16.msra.mxu0 %v2360
  %3743 = vmatpush.bf16.msra.mxu0 %v2356
  %3744 = vmatpush.bf16.msra.mxu0 %v2352
  %3745 = vmatpush.bf16.msra.mxu0 %v2348
  %3746 = vmatpush.bf16.msra.mxu0 %v2344
  %3747 = vmatpush.bf16.msra.mxu0 %v2340
  %3748 = vmatmul.bf16.gmra.mxu0 %v212
  %v3749 = vpop.f32.mrf.mxu0
  %v3750 = vadd.f32 %v3737, %v3749
  %v3751 = vpop.f32.mrf.mxu0
  %3752 = vdwg.mxu0
  %3753 = vmatpush.bf16.msra.mxu0 %v2400
  %3754 = vmatpush.bf16.msra.mxu0 %v2396
  %3755 = vmatpush.bf16.msra.mxu0 %v2392
  %3756 = vmatpush.bf16.msra.mxu0 %v2388
  %3757 = vmatpush.bf16.msra.mxu0 %v2384
  %3758 = vmatpush.bf16.msra.mxu0 %v2380
  %3759 = vmatpush.bf16.msra.mxu0 %v2376
  %3760 = vmatpush.bf16.msra.mxu0 %v2372
  %3761 = vmatmul.bf16.gmra.mxu0 %v213
  %v3762 = vpop.f32.mrf.mxu0
  %v3763 = vadd.f32 %v3750, %v3762
  %v3764 = vpop.f32.mrf.mxu0
  %3765 = vdwg.mxu0
  %3766 = vmatpush.bf16.msra.mxu0 %v2432
  %3767 = vmatpush.bf16.msra.mxu0 %v2428
  %3768 = vmatpush.bf16.msra.mxu0 %v2424
  %3769 = vmatpush.bf16.msra.mxu0 %v2420
  %3770 = vmatpush.bf16.msra.mxu0 %v2416
  %3771 = vmatpush.bf16.msra.mxu0 %v2412
  %3772 = vmatpush.bf16.msra.mxu0 %v2408
  %3773 = vmatpush.bf16.msra.mxu0 %v2404
  %3774 = vmatmul.bf16.gmra.mxu0 %v214
  %v3775 = vpop.f32.mrf.mxu0
  %v3776 = vadd.f32 %v3763, %v3775
  %v3777 = vpop.f32.mrf.mxu0
  %3778 = vdwg.mxu0
  %3779 = vmatpush.bf16.msra.mxu0 %v2464
  %3780 = vmatpush.bf16.msra.mxu0 %v2460
  %3781 = vmatpush.bf16.msra.mxu0 %v2456
  %3782 = vmatpush.bf16.msra.mxu0 %v2452
  %3783 = vmatpush.bf16.msra.mxu0 %v2448
  %3784 = vmatpush.bf16.msra.mxu0 %v2444
  %3785 = vmatpush.bf16.msra.mxu0 %v2440
  %3786 = vmatpush.bf16.msra.mxu0 %v2436
  %3787 = vmatmul.bf16.gmra.mxu0 %v215
  %v3788 = vpop.f32.mrf.mxu0
  %v3789 = vadd.f32 %v3776, %v3788
  %v3790 = vpop.f32.mrf.mxu0
  %3791 = vdwg.mxu0
  %3792 = vmatpush.bf16.msra.mxu0 %v2496
  %3793 = vmatpush.bf16.msra.mxu0 %v2492
  %3794 = vmatpush.bf16.msra.mxu0 %v2488
  %3795 = vmatpush.bf16.msra.mxu0 %v2484
  %3796 = vmatpush.bf16.msra.mxu0 %v2480
  %3797 = vmatpush.bf16.msra.mxu0 %v2476
  %3798 = vmatpush.bf16.msra.mxu0 %v2472
  %3799 = vmatpush.bf16.msra.mxu0 %v2468
  %3800 = vmatmul.bf16.gmra.mxu0 %v216
  %v3801 = vpop.f32.mrf.mxu0
  %v3802 = vadd.f32 %v3789, %v3801
  %v3803 = vpop.f32.mrf.mxu0
  %3804 = vdwg.mxu0
  %3805 = vmatpush.bf16.msra.mxu0 %v2528
  %3806 = vmatpush.bf16.msra.mxu0 %v2524
  %3807 = vmatpush.bf16.msra.mxu0 %v2520
  %3808 = vmatpush.bf16.msra.mxu0 %v2516
  %3809 = vmatpush.bf16.msra.mxu0 %v2512
  %3810 = vmatpush.bf16.msra.mxu0 %v2508
  %3811 = vmatpush.bf16.msra.mxu0 %v2504
  %3812 = vmatpush.bf16.msra.mxu0 %v2500
  %3813 = vmatmul.bf16.gmra.mxu0 %v217
  %v3814 = vpop.f32.mrf.mxu0
  %v3815 = vadd.f32 %v3802, %v3814
  %v3816 = vpop.f32.mrf.mxu0
  %3817 = vdwg.mxu0
  %3818 = vmatpush.bf16.msra.mxu0 %v2560
  %3819 = vmatpush.bf16.msra.mxu0 %v2556
  %3820 = vmatpush.bf16.msra.mxu0 %v2552
  %3821 = vmatpush.bf16.msra.mxu0 %v2548
  %3822 = vmatpush.bf16.msra.mxu0 %v2544
  %3823 = vmatpush.bf16.msra.mxu0 %v2540
  %3824 = vmatpush.bf16.msra.mxu0 %v2536
  %3825 = vmatpush.bf16.msra.mxu0 %v2532
  %3826 = vmatmul.bf16.gmra.mxu0 %v218
  %v3827 = vpop.f32.mrf.mxu0
  %v3828 = vadd.f32 %v3815, %v3827
  %v3829 = vpop.f32.mrf.mxu0
  %3830 = vdwg.mxu0
  %3831 = vmatpush.bf16.msra.mxu0 %v2592
  %3832 = vmatpush.bf16.msra.mxu0 %v2588
  %3833 = vmatpush.bf16.msra.mxu0 %v2584
  %3834 = vmatpush.bf16.msra.mxu0 %v2580
  %3835 = vmatpush.bf16.msra.mxu0 %v2576
  %3836 = vmatpush.bf16.msra.mxu0 %v2572
  %3837 = vmatpush.bf16.msra.mxu0 %v2568
  %3838 = vmatpush.bf16.msra.mxu0 %v2564
  %3839 = vmatmul.bf16.gmra.mxu0 %v219
  %v3840 = vpop.f32.mrf.mxu0
  %v3841 = vadd.f32 %v3828, %v3840
  %v3842 = vpop.f32.mrf.mxu0
  %3843 = vdwg.mxu0
  %3844 = vmatpush.bf16.msra.mxu0 %v2624
  %3845 = vmatpush.bf16.msra.mxu0 %v2620
  %3846 = vmatpush.bf16.msra.mxu0 %v2616
  %3847 = vmatpush.bf16.msra.mxu0 %v2612
  %3848 = vmatpush.bf16.msra.mxu0 %v2608
  %3849 = vmatpush.bf16.msra.mxu0 %v2604
  %3850 = vmatpush.bf16.msra.mxu0 %v2600
  %3851 = vmatpush.bf16.msra.mxu0 %v2596
  %3852 = vmatmul.bf16.gmra.mxu0 %v220
  %v3853 = vpop.f32.mrf.mxu0
  %v3854 = vadd.f32 %v3841, %v3853
  %v3855 = vpop.f32.mrf.mxu0
  %3856 = vdwg.mxu0
  %3857 = vmatpush.bf16.msra.mxu0 %v2656
  %3858 = vmatpush.bf16.msra.mxu0 %v2652
  %3859 = vmatpush.bf16.msra.mxu0 %v2648
  %3860 = vmatpush.bf16.msra.mxu0 %v2644
  %3861 = vmatpush.bf16.msra.mxu0 %v2640
  %3862 = vmatpush.bf16.msra.mxu0 %v2636
  %3863 = vmatpush.bf16.msra.mxu0 %v2632
  %3864 = vmatpush.bf16.msra.mxu0 %v2628
  %3865 = vmatmul.bf16.gmra.mxu0 %v221
  %v3866 = vpop.f32.mrf.mxu0
  %v3867 = vadd.f32 %v3854, %v3866
  %v3868 = vpop.f32.mrf.mxu0
  %3869 = vdwg.mxu0
  %3870 = vmatpush.bf16.msra.mxu0 %v2688
  %3871 = vmatpush.bf16.msra.mxu0 %v2684
  %3872 = vmatpush.bf16.msra.mxu0 %v2680
  %3873 = vmatpush.bf16.msra.mxu0 %v2676
  %3874 = vmatpush.bf16.msra.mxu0 %v2672
  %3875 = vmatpush.bf16.msra.mxu0 %v2668
  %3876 = vmatpush.bf16.msra.mxu0 %v2664
  %3877 = vmatpush.bf16.msra.mxu0 %v2660
  %3878 = vmatmul.bf16.gmra.mxu0 %v222
  %v3879 = vpop.f32.mrf.mxu0
  %v3880 = vadd.f32 %v3867, %v3879
  %v3881 = vpop.f32.mrf.mxu0
  %3882 = vdwg.mxu0
  %3883 = vmatpush.bf16.msra.mxu0 %v2720
  %3884 = vmatpush.bf16.msra.mxu0 %v2716
  %3885 = vmatpush.bf16.msra.mxu0 %v2712
  %3886 = vmatpush.bf16.msra.mxu0 %v2708
  %3887 = vmatpush.bf16.msra.mxu0 %v2704
  %3888 = vmatpush.bf16.msra.mxu0 %v2700
  %3889 = vmatpush.bf16.msra.mxu0 %v2696
  %3890 = vmatpush.bf16.msra.mxu0 %v2692
  %3891 = vmatmul.bf16.gmra.mxu0 %v223
  %v3892 = vpop.f32.mrf.mxu0
  %v3893 = vadd.f32 %v3880, %v3892
  %v3894 = vpop.f32.mrf.mxu0
  %3895 = vdwg.mxu0
  %3896 = vmatpush.bf16.msra.mxu0 %v2752
  %3897 = vmatpush.bf16.msra.mxu0 %v2748
  %3898 = vmatpush.bf16.msra.mxu0 %v2744
  %3899 = vmatpush.bf16.msra.mxu0 %v2740
  %3900 = vmatpush.bf16.msra.mxu0 %v2736
  %3901 = vmatpush.bf16.msra.mxu0 %v2732
  %3902 = vmatpush.bf16.msra.mxu0 %v2728
  %3903 = vmatpush.bf16.msra.mxu0 %v2724
  %3904 = vmatmul.bf16.gmra.mxu0 %v224
  %v3905 = vpop.f32.mrf.mxu0
  %v3906 = vadd.f32 %v3893, %v3905
  %v3907 = vpop.f32.mrf.mxu0
  %3908 = vdwg.mxu0
  %3909 = vmatpush.bf16.msra.mxu0 %v2784
  %3910 = vmatpush.bf16.msra.mxu0 %v2780
  %3911 = vmatpush.bf16.msra.mxu0 %v2776
  %3912 = vmatpush.bf16.msra.mxu0 %v2772
  %3913 = vmatpush.bf16.msra.mxu0 %v2768
  %3914 = vmatpush.bf16.msra.mxu0 %v2764
  %3915 = vmatpush.bf16.msra.mxu0 %v2760
  %3916 = vmatpush.bf16.msra.mxu0 %v2756
  %3917 = vmatmul.bf16.gmra.mxu0 %v225
  %v3918 = vpop.f32.mrf.mxu0
  %v3919 = vadd.f32 %v3906, %v3918
  %v3920 = vpop.f32.mrf.mxu0
  %3921 = vdwg.mxu0
  %3922 = vmatpush.bf16.msra.mxu0 %v2305
  %3923 = vmatpush.bf16.msra.mxu0 %v2301
  %3924 = vmatpush.bf16.msra.mxu0 %v2297
  %3925 = vmatpush.bf16.msra.mxu0 %v2293
  %3926 = vmatpush.bf16.msra.mxu0 %v2289
  %3927 = vmatpush.bf16.msra.mxu0 %v2285
  %3928 = vmatpush.bf16.msra.mxu0 %v2281
  %3929 = vmatpush.bf16.msra.mxu0 %v2277
  %3930 = vmatmul.bf16.gmra.mxu0 %v210
  %v3931 = vpop.f32.mrf.mxu0
  %v3932 = vadd.f32 0.0, %v3931
  %v3933 = vpop.f32.mrf.mxu0
  %3934 = vdwg.mxu0
  %3935 = vmatpush.bf16.msra.mxu0 %v2337
  %3936 = vmatpush.bf16.msra.mxu0 %v2333
  %3937 = vmatpush.bf16.msra.mxu0 %v2329
  %3938 = vmatpush.bf16.msra.mxu0 %v2325
  %3939 = vmatpush.bf16.msra.mxu0 %v2321
  %3940 = vmatpush.bf16.msra.mxu0 %v2317
  %3941 = vmatpush.bf16.msra.mxu0 %v2313
  %3942 = vmatpush.bf16.msra.mxu0 %v2309
  %3943 = vmatmul.bf16.gmra.mxu0 %v211
  %v3944 = vpop.f32.mrf.mxu0
  %v3945 = vadd.f32 %v3932, %v3944
  %v3946 = vpop.f32.mrf.mxu0
  %3947 = vdwg.mxu0
  %3948 = vmatpush.bf16.msra.mxu0 %v2369
  %3949 = vmatpush.bf16.msra.mxu0 %v2365
  %3950 = vmatpush.bf16.msra.mxu0 %v2361
  %3951 = vmatpush.bf16.msra.mxu0 %v2357
  %3952 = vmatpush.bf16.msra.mxu0 %v2353
  %3953 = vmatpush.bf16.msra.mxu0 %v2349
  %3954 = vmatpush.bf16.msra.mxu0 %v2345
  %3955 = vmatpush.bf16.msra.mxu0 %v2341
  %3956 = vmatmul.bf16.gmra.mxu0 %v212
  %v3957 = vpop.f32.mrf.mxu0
  %v3958 = vadd.f32 %v3945, %v3957
  %v3959 = vpop.f32.mrf.mxu0
  %3960 = vdwg.mxu0
  %3961 = vmatpush.bf16.msra.mxu0 %v2401
  %3962 = vmatpush.bf16.msra.mxu0 %v2397
  %3963 = vmatpush.bf16.msra.mxu0 %v2393
  %3964 = vmatpush.bf16.msra.mxu0 %v2389
  %3965 = vmatpush.bf16.msra.mxu0 %v2385
  %3966 = vmatpush.bf16.msra.mxu0 %v2381
  %3967 = vmatpush.bf16.msra.mxu0 %v2377
  %3968 = vmatpush.bf16.msra.mxu0 %v2373
  %3969 = vmatmul.bf16.gmra.mxu0 %v213
  %v3970 = vpop.f32.mrf.mxu0
  %v3971 = vadd.f32 %v3958, %v3970
  %v3972 = vpop.f32.mrf.mxu0
  %3973 = vdwg.mxu0
  %3974 = vmatpush.bf16.msra.mxu0 %v2433
  %3975 = vmatpush.bf16.msra.mxu0 %v2429
  %3976 = vmatpush.bf16.msra.mxu0 %v2425
  %3977 = vmatpush.bf16.msra.mxu0 %v2421
  %3978 = vmatpush.bf16.msra.mxu0 %v2417
  %3979 = vmatpush.bf16.msra.mxu0 %v2413
  %3980 = vmatpush.bf16.msra.mxu0 %v2409
  %3981 = vmatpush.bf16.msra.mxu0 %v2405
  %3982 = vmatmul.bf16.gmra.mxu0 %v214
  %v3983 = vpop.f32.mrf.mxu0
  %v3984 = vadd.f32 %v3971, %v3983
  %v3985 = vpop.f32.mrf.mxu0
  %3986 = vdwg.mxu0
  %3987 = vmatpush.bf16.msra.mxu0 %v2465
  %3988 = vmatpush.bf16.msra.mxu0 %v2461
  %3989 = vmatpush.bf16.msra.mxu0 %v2457
  %3990 = vmatpush.bf16.msra.mxu0 %v2453
  %3991 = vmatpush.bf16.msra.mxu0 %v2449
  %3992 = vmatpush.bf16.msra.mxu0 %v2445
  %3993 = vmatpush.bf16.msra.mxu0 %v2441
  %3994 = vmatpush.bf16.msra.mxu0 %v2437
  %3995 = vmatmul.bf16.gmra.mxu0 %v215
  %v3996 = vpop.f32.mrf.mxu0
  %v3997 = vadd.f32 %v3984, %v3996
  %v3998 = vpop.f32.mrf.mxu0
  %3999 = vdwg.mxu0
  %4000 = vmatpush.bf16.msra.mxu0 %v2497
  %4001 = vmatpush.bf16.msra.mxu0 %v2493
  %4002 = vmatpush.bf16.msra.mxu0 %v2489
  %4003 = vmatpush.bf16.msra.mxu0 %v2485
  %4004 = vmatpush.bf16.msra.mxu0 %v2481
  %4005 = vmatpush.bf16.msra.mxu0 %v2477
  %4006 = vmatpush.bf16.msra.mxu0 %v2473
  %4007 = vmatpush.bf16.msra.mxu0 %v2469
  %4008 = vmatmul.bf16.gmra.mxu0 %v216
  %v4009 = vpop.f32.mrf.mxu0
  %v4010 = vadd.f32 %v3997, %v4009
  %v4011 = vpop.f32.mrf.mxu0
  %4012 = vdwg.mxu0
  %4013 = vmatpush.bf16.msra.mxu0 %v2529
  %4014 = vmatpush.bf16.msra.mxu0 %v2525
  %4015 = vmatpush.bf16.msra.mxu0 %v2521
  %4016 = vmatpush.bf16.msra.mxu0 %v2517
  %4017 = vmatpush.bf16.msra.mxu0 %v2513
  %4018 = vmatpush.bf16.msra.mxu0 %v2509
  %4019 = vmatpush.bf16.msra.mxu0 %v2505
  %4020 = vmatpush.bf16.msra.mxu0 %v2501
  %4021 = vmatmul.bf16.gmra.mxu0 %v217
  %v4022 = vpop.f32.mrf.mxu0
  %v4023 = vadd.f32 %v4010, %v4022
  %v4024 = vpop.f32.mrf.mxu0
  %4025 = vdwg.mxu0
  %4026 = vmatpush.bf16.msra.mxu0 %v2561
  %4027 = vmatpush.bf16.msra.mxu0 %v2557
  %4028 = vmatpush.bf16.msra.mxu0 %v2553
  %4029 = vmatpush.bf16.msra.mxu0 %v2549
  %4030 = vmatpush.bf16.msra.mxu0 %v2545
  %4031 = vmatpush.bf16.msra.mxu0 %v2541
  %4032 = vmatpush.bf16.msra.mxu0 %v2537
  %4033 = vmatpush.bf16.msra.mxu0 %v2533
  %4034 = vmatmul.bf16.gmra.mxu0 %v218
  %v4035 = vpop.f32.mrf.mxu0
  %v4036 = vadd.f32 %v4023, %v4035
  %v4037 = vpop.f32.mrf.mxu0
  %4038 = vdwg.mxu0
  %4039 = vmatpush.bf16.msra.mxu0 %v2593
  %4040 = vmatpush.bf16.msra.mxu0 %v2589
  %4041 = vmatpush.bf16.msra.mxu0 %v2585
  %4042 = vmatpush.bf16.msra.mxu0 %v2581
  %4043 = vmatpush.bf16.msra.mxu0 %v2577
  %4044 = vmatpush.bf16.msra.mxu0 %v2573
  %4045 = vmatpush.bf16.msra.mxu0 %v2569
  %4046 = vmatpush.bf16.msra.mxu0 %v2565
  %4047 = vmatmul.bf16.gmra.mxu0 %v219
  %v4048 = vpop.f32.mrf.mxu0
  %v4049 = vadd.f32 %v4036, %v4048
  %v4050 = vpop.f32.mrf.mxu0
  %4051 = vdwg.mxu0
  %4052 = vmatpush.bf16.msra.mxu0 %v2625
  %4053 = vmatpush.bf16.msra.mxu0 %v2621
  %4054 = vmatpush.bf16.msra.mxu0 %v2617
  %4055 = vmatpush.bf16.msra.mxu0 %v2613
  %4056 = vmatpush.bf16.msra.mxu0 %v2609
  %4057 = vmatpush.bf16.msra.mxu0 %v2605
  %4058 = vmatpush.bf16.msra.mxu0 %v2601
  %4059 = vmatpush.bf16.msra.mxu0 %v2597
  %4060 = vmatmul.bf16.gmra.mxu0 %v220
  %v4061 = vpop.f32.mrf.mxu0
  %v4062 = vadd.f32 %v4049, %v4061
  %v4063 = vpop.f32.mrf.mxu0
  %4064 = vdwg.mxu0
  %4065 = vmatpush.bf16.msra.mxu0 %v2657
  %4066 = vmatpush.bf16.msra.mxu0 %v2653
  %4067 = vmatpush.bf16.msra.mxu0 %v2649
  %4068 = vmatpush.bf16.msra.mxu0 %v2645
  %4069 = vmatpush.bf16.msra.mxu0 %v2641
  %4070 = vmatpush.bf16.msra.mxu0 %v2637
  %4071 = vmatpush.bf16.msra.mxu0 %v2633
  %4072 = vmatpush.bf16.msra.mxu0 %v2629
  %4073 = vmatmul.bf16.gmra.mxu0 %v221
  %v4074 = vpop.f32.mrf.mxu0
  %v4075 = vadd.f32 %v4062, %v4074
  %v4076 = vpop.f32.mrf.mxu0
  %4077 = vdwg.mxu0
  %4078 = vmatpush.bf16.msra.mxu0 %v2689
  %4079 = vmatpush.bf16.msra.mxu0 %v2685
  %4080 = vmatpush.bf16.msra.mxu0 %v2681
  %4081 = vmatpush.bf16.msra.mxu0 %v2677
  %4082 = vmatpush.bf16.msra.mxu0 %v2673
  %4083 = vmatpush.bf16.msra.mxu0 %v2669
  %4084 = vmatpush.bf16.msra.mxu0 %v2665
  %4085 = vmatpush.bf16.msra.mxu0 %v2661
  %4086 = vmatmul.bf16.gmra.mxu0 %v222
  %v4087 = vpop.f32.mrf.mxu0
  %v4088 = vadd.f32 %v4075, %v4087
  %v4089 = vpop.f32.mrf.mxu0
  %4090 = vdwg.mxu0
  %4091 = vmatpush.bf16.msra.mxu0 %v2721
  %4092 = vmatpush.bf16.msra.mxu0 %v2717
  %4093 = vmatpush.bf16.msra.mxu0 %v2713
  %4094 = vmatpush.bf16.msra.mxu0 %v2709
  %4095 = vmatpush.bf16.msra.mxu0 %v2705
  %4096 = vmatpush.bf16.msra.mxu0 %v2701
  %4097 = vmatpush.bf16.msra.mxu0 %v2697
  %4098 = vmatpush.bf16.msra.mxu0 %v2693
  %4099 = vmatmul.bf16.gmra.mxu0 %v223
  %v4100 = vpop.f32.mrf.mxu0
  %v4101 = vadd.f32 %v4088, %v4100
  %v4102 = vpop.f32.mrf.mxu0
  %4103 = vdwg.mxu0
  %4104 = vmatpush.bf16.msra.mxu0 %v2753
  %4105 = vmatpush.bf16.msra.mxu0 %v2749
  %4106 = vmatpush.bf16.msra.mxu0 %v2745
  %4107 = vmatpush.bf16.msra.mxu0 %v2741
  %4108 = vmatpush.bf16.msra.mxu0 %v2737
  %4109 = vmatpush.bf16.msra.mxu0 %v2733
  %4110 = vmatpush.bf16.msra.mxu0 %v2729
  %4111 = vmatpush.bf16.msra.mxu0 %v2725
  %4112 = vmatmul.bf16.gmra.mxu0 %v224
  %v4113 = vpop.f32.mrf.mxu0
  %v4114 = vadd.f32 %v4101, %v4113
  %v4115 = vpop.f32.mrf.mxu0
  %4116 = vdwg.mxu0
  %4117 = vmatpush.bf16.msra.mxu0 %v2785
  %4118 = vmatpush.bf16.msra.mxu0 %v2781
  %4119 = vmatpush.bf16.msra.mxu0 %v2777
  %4120 = vmatpush.bf16.msra.mxu0 %v2773
  %4121 = vmatpush.bf16.msra.mxu0 %v2769
  %4122 = vmatpush.bf16.msra.mxu0 %v2765
  %4123 = vmatpush.bf16.msra.mxu0 %v2761
  %4124 = vmatpush.bf16.msra.mxu0 %v2757
  %4125 = vmatmul.bf16.gmra.mxu0 %v225
  %v4126 = vpop.f32.mrf.mxu0
  %v4127 = vadd.f32 %v4114, %v4126
  %v4128 = vpop.f32.mrf.mxu0
  %4129 = vdwg.mxu0
  %v4130 = vld [vmem:[%s2] sm:$0xf]
  %v4131 = vld [vmem:[%s2 + $0x4] sm:$0xf]
  %v4132 = vrot.slane %v3503, 4
  %v4133 = vadd.f32 %v3503, %v4132
  %v4134 = vrot.slane %v4133, 2
  %v4135 = vadd.f32 %v4133, %v4134
  %v4136 = vrot.slane %v4135, 1
  %v4137 = vadd.f32 %v4135, %v4136
  %v4138 = vrot.slane %v3711, 4
  %v4139 = vadd.f32 %v3711, %v4138
  %v4140 = vrot.slane %v4139, 2
  %v4141 = vadd.f32 %v4139, %v4140
  %v4142 = vrot.slane %v4141, 1
  %v4143 = vadd.f32 %v4141, %v4142
  %v4144 = vrot.slane %v3919, 4
  %v4145 = vadd.f32 %v3919, %v4144
  %v4146 = vrot.slane %v4145, 2
  %v4147 = vadd.f32 %v4145, %v4146
  %v4148 = vrot.slane %v4147, 1
  %v4149 = vadd.f32 %v4147, %v4148
  %v4150 = vrot.slane %v4127, 4
  %v4151 = vadd.f32 %v4127, %v4150
  %v4152 = vrot.slane %v4151, 2
  %v4153 = vadd.f32 %v4151, %v4152
  %v4154 = vrot.slane %v4153, 1
  %v4155 = vadd.f32 %v4153, %v4154
  %v4156 = vrcp.pop 8.0
  %v4157 = vmul.f32 8.0, %v4156
  %v4158 = vsub.f32 1.0, %v4157
  %v4159 = vmul.f32 %v4156, %v4158
  %v4160 = vadd.f32 %v4156, %v4159
  %vm4161 = vweird.f32 %v4156
  %v4162 = vsel %vm4161, %v4156, %v4160
  %v4163 = vmul.f32 %v4137, %v4162
  %v4164 = vmul.f32 %v4143, %v4162
  %v4165 = vmul.f32 %v4149, %v4162
  %v4166 = vmul.f32 %v4155, %v4162
  %v4167 = vsub.f32 %v3503, %v4163
  %v4168 = vsub.f32 %v3711, %v4164
  %v4169 = vsub.f32 %v3919, %v4165
  %v4170 = vsub.f32 %v4127, %v4166
  %v4171 = vmul.f32 %v4167, %v4167
  %v4172 = vmul.f32 %v4168, %v4168
  %v4173 = vmul.f32 %v4169, %v4169
  %v4174 = vmul.f32 %v4170, %v4170
  %v4175 = vrot.slane %v4171, 4
  %v4176 = vadd.f32 %v4171, %v4175
  %v4177 = vrot.slane %v4176, 2
  %v4178 = vadd.f32 %v4176, %v4177
  %v4179 = vrot.slane %v4178, 1
  %v4180 = vadd.f32 %v4178, %v4179
  %v4181 = vrot.slane %v4172, 4
  %v4182 = vadd.f32 %v4172, %v4181
  %v4183 = vrot.slane %v4182, 2
  %v4184 = vadd.f32 %v4182, %v4183
  %v4185 = vrot.slane %v4184, 1
  %v4186 = vadd.f32 %v4184, %v4185
  %v4187 = vrot.slane %v4173, 4
  %v4188 = vadd.f32 %v4173, %v4187
  %v4189 = vrot.slane %v4188, 2
  %v4190 = vadd.f32 %v4188, %v4189
  %v4191 = vrot.slane %v4190, 1
  %v4192 = vadd.f32 %v4190, %v4191
  %v4193 = vrot.slane %v4174, 4
  %v4194 = vadd.f32 %v4174, %v4193
  %v4195 = vrot.slane %v4194, 2
  %v4196 = vadd.f32 %v4194, %v4195
  %v4197 = vrot.slane %v4196, 1
  %v4198 = vadd.f32 %v4196, %v4197
  %v4199 = vmul.f32 %v4180, %v4162
  %v4200 = vmul.f32 %v4186, %v4162
  %v4201 = vmul.f32 %v4192, %v4162
  %v4202 = vmul.f32 %v4198, %v4162
  %v4203 = vadd.f32 %v4199, 1e-05
  %v4204 = vadd.f32 %v4200, 1e-05
  %v4205 = vadd.f32 %v4201, 1e-05
  %v4206 = vadd.f32 %v4202, 1e-05
  %v4207 = vrsqrt.pop %v4203
  %v4208 = vmul.f32 %v4207, %v4203
  %v4209 = vmul.f32 %v4208, %v4207
  %v4210 = vmul.f32 0.5, %v4209
  %v4211 = vsub.f32 1.5, %v4210
  %v4212 = vmul.f32 %v4207, %v4211
  %vm4213 = vweird.f32 %v4203
  %vm4214 = vweird.f32 %v4207
  %vm4215 = vmor %vm4213, %vm4214
  %v4216 = vsel %vm4215, %v4207, %v4212
  %v4217 = vrsqrt.pop %v4204
  %v4218 = vmul.f32 %v4217, %v4204
  %v4219 = vmul.f32 %v4218, %v4217
  %v4220 = vmul.f32 0.5, %v4219
  %v4221 = vsub.f32 1.5, %v4220
  %v4222 = vmul.f32 %v4217, %v4221
  %vm4223 = vweird.f32 %v4204
  %vm4224 = vweird.f32 %v4217
  %vm4225 = vmor %vm4223, %vm4224
  %v4226 = vsel %vm4225, %v4217, %v4222
  %v4227 = vrsqrt.pop %v4205
  %v4228 = vmul.f32 %v4227, %v4205
  %v4229 = vmul.f32 %v4228, %v4227
  %v4230 = vmul.f32 0.5, %v4229
  %v4231 = vsub.f32 1.5, %v4230
  %v4232 = vmul.f32 %v4227, %v4231
  %vm4233 = vweird.f32 %v4205
  %vm4234 = vweird.f32 %v4227
  %vm4235 = vmor %vm4233, %vm4234
  %v4236 = vsel %vm4235, %v4227, %v4232
  %v4237 = vrsqrt.pop %v4206
  %v4238 = vmul.f32 %v4237, %v4206
  %v4239 = vmul.f32 %v4238, %v4237
  %v4240 = vmul.f32 0.5, %v4239
  %v4241 = vsub.f32 1.5, %v4240
  %v4242 = vmul.f32 %v4237, %v4241
  %vm4243 = vweird.f32 %v4206
  %vm4244 = vweird.f32 %v4237
  %vm4245 = vmor %vm4243, %vm4244
  %v4246 = vsel %vm4245, %v4237, %v4242
  %v4247 = vmul.f32 %v4167, %v4216
  %v4248 = vmul.f32 %v4168, %v4226
  %v4249 = vmul.f32 %v4169, %v4236
  %v4250 = vmul.f32 %v4170, %v4246
  %v4252 = vperm.slane %v4130, 0
  %v4253 = vperm.slane %v4130, 1
  %v4254 = vperm.slane %v4130, 2
  %v4255 = vperm.slane %v4130, 3
  %v4260 = vmul.f32 %v4247, %v4252
  %v4261 = vmul.f32 %v4248, %v4253
  %v4262 = vmul.f32 %v4249, %v4254
  %v4263 = vmul.f32 %v4250, %v4255
  %v4265 = vperm.slane %v4131, 0
  %v4266 = vperm.slane %v4131, 1
  %v4267 = vperm.slane %v4131, 2
  %v4268 = vperm.slane %v4131, 3
  %v4273 = vadd.f32 %v4260, %v4265
  %v4274 = vadd.f32 %v4261, %v4266
  %v4275 = vadd.f32 %v4262, %v4267
  %v4276 = vadd.f32 %v4263, %v4268
  %v4277 = vmax.f32 %v4273, 0.0
  %v4278 = vmax.f32 %v4274, 0.0
  %v4279 = vmax.f32 %v4275, 0.0
  %v4280 = vmax.f32 %v4276, 0.0
  %s4281 = smul.u32 4, 64
  %s4282 = smul.u32 %s4281, 2
  %s4283 = sshll.u32 %s4282, 4
  %4284 = dma.done [#allocation6], %s4283
  %v4285 = vpack.c.bf16 %v4277, %v4277
  %v4286 = vpack.c.bf16 %v4278, %v4278
  %v4287 = vpack.c.bf16 %v4279, %v4279
  %v4288 = vpack.c.bf16 %v4280, %v4280
  %v4289 = vld [vmem:[#allocation2] sm:$0xff]
  %v4290 = vld [vmem:[#allocation2 + $0x8] sm:$0xff]
  %v4291 = vld [vmem:[#allocation2 + $0x10] sm:$0xff]
  %v4292 = vld [vmem:[#allocation2 + $0x18] sm:$0xff]
  %v4293 = vld [vmem:[#allocation2 + $0x20] sm:$0xff]
  %v4294 = vld [vmem:[#allocation2 + $0x28] sm:$0xff]
  %v4295 = vld [vmem:[#allocation2 + $0x30] sm:$0xff]
  %v4296 = vld [vmem:[#allocation2 + $0x38] sm:$0xff]
  %v4297 = vld [vmem:[#allocation2 + $0x40] sm:$0xff]
  %v4298 = vld [vmem:[#allocation2 + $0x48] sm:$0xff]
  %v4299 = vld [vmem:[#allocation2 + $0x50] sm:$0xff]
  %v4300 = vld [vmem:[#allocation2 + $0x58] sm:$0xff]
  %v4301 = vld [vmem:[#allocation2 + $0x60] sm:$0xff]
  %v4302 = vld [vmem:[#allocation2 + $0x68] sm:$0xff]
  %v4303 = vld [vmem:[#allocation2 + $0x70] sm:$0xff]
  %v4304 = vld [vmem:[#allocation2 + $0x78] sm:$0xff]
  %v4305 = vld [vmem:[#allocation2 + $0x80] sm:$0xff]
  %v4306 = vld [vmem:[#allocation2 + $0x88] sm:$0xff]
  %v4307 = vld [vmem:[#allocation2 + $0x90] sm:$0xff]
  %v4308 = vld [vmem:[#allocation2 + $0x98] sm:$0xff]
  %v4309 = vld [vmem:[#allocation2 + $0xa0] sm:$0xff]
  %v4310 = vld [vmem:[#allocation2 + $0xa8] sm:$0xff]
  %v4311 = vld [vmem:[#allocation2 + $0xb0] sm:$0xff]
  %v4312 = vld [vmem:[#allocation2 + $0xb8] sm:$0xff]
  %v4313 = vld [vmem:[#allocation2 + $0xc0] sm:$0xff]
  %v4314 = vld [vmem:[#allocation2 + $0xc8] sm:$0xff]
  %v4315 = vld [vmem:[#allocation2 + $0xd0] sm:$0xff]
  %v4316 = vld [vmem:[#allocation2 + $0xd8] sm:$0xff]
  %v4317 = vld [vmem:[#allocation2 + $0xe0] sm:$0xff]
  %v4318 = vld [vmem:[#allocation2 + $0xe8] sm:$0xff]
  %v4319 = vld [vmem:[#allocation2 + $0xf0] sm:$0xff]
  %v4320 = vld [vmem:[#allocation2 + $0xf8] sm:$0xff]
  %v4321 = vld [vmem:[#allocation2 + $0x100] sm:$0xff]
  %v4322 = vld [vmem:[#allocation2 + $0x108] sm:$0xff]
  %v4323 = vld [vmem:[#allocation2 + $0x110] sm:$0xff]
  %v4324 = vld [vmem:[#allocation2 + $0x118] sm:$0xff]
  %v4325 = vld [vmem:[#allocation2 + $0x120] sm:$0xff]
  %v4326 = vld [vmem:[#allocation2 + $0x128] sm:$0xff]
  %v4327 = vld [vmem:[#allocation2 + $0x130] sm:$0xff]
  %v4328 = vld [vmem:[#allocation2 + $0x138] sm:$0xff]
  %v4329 = vld [vmem:[#allocation2 + $0x140] sm:$0xff]
  %v4330 = vld [vmem:[#allocation2 + $0x148] sm:$0xff]
  %v4331 = vld [vmem:[#allocation2 + $0x150] sm:$0xff]
  %v4332 = vld [vmem:[#allocation2 + $0x158] sm:$0xff]
  %v4333 = vld [vmem:[#allocation2 + $0x160] sm:$0xff]
  %v4334 = vld [vmem:[#allocation2 + $0x168] sm:$0xff]
  %v4335 = vld [vmem:[#allocation2 + $0x170] sm:$0xff]
  %v4336 = vld [vmem:[#allocation2 + $0x178] sm:$0xff]
  %v4337 = vld [vmem:[#allocation2 + $0x180] sm:$0xff]
  %v4338 = vld [vmem:[#allocation2 + $0x188] sm:$0xff]
  %v4339 = vld [vmem:[#allocation2 + $0x190] sm:$0xff]
  %v4340 = vld [vmem:[#allocation2 + $0x198] sm:$0xff]
  %v4341 = vld [vmem:[#allocation2 + $0x1a0] sm:$0xff]
  %v4342 = vld [vmem:[#allocation2 + $0x1a8] sm:$0xff]
  %v4343 = vld [vmem:[#allocation2 + $0x1b0] sm:$0xff]
  %v4344 = vld [vmem:[#allocation2 + $0x1b8] sm:$0xff]
  %v4345 = vld [vmem:[#allocation2 + $0x1c0] sm:$0xff]
  %v4346 = vld [vmem:[#allocation2 + $0x1c8] sm:$0xff]
  %v4347 = vld [vmem:[#allocation2 + $0x1d0] sm:$0xff]
  %v4348 = vld [vmem:[#allocation2 + $0x1d8] sm:$0xff]
  %v4349 = vld [vmem:[#allocation2 + $0x1e0] sm:$0xff]
  %v4350 = vld [vmem:[#allocation2 + $0x1e8] sm:$0xff]
  %v4351 = vld [vmem:[#allocation2 + $0x1f0] sm:$0xff]
  %v4352 = vld [vmem:[#allocation2 + $0x1f8] sm:$0xff]
  %v4417 = vunpack.c.l.b16 %v4289
  %v4418 = vunpack.c.h.b16 %v4289
  %v4419 = vunpack.c.l.b16 %v4290
  %v4420 = vunpack.c.h.b16 %v4290
  %v4421 = vunpack.c.l.b16 %v4291
  %v4422 = vunpack.c.h.b16 %v4291
  %v4423 = vunpack.c.l.b16 %v4292
  %v4424 = vunpack.c.h.b16 %v4292
  %v4425 = vunpack.c.l.b16 %v4293
  %v4426 = vunpack.c.h.b16 %v4293
  %v4427 = vunpack.c.l.b16 %v4294
  %v4428 = vunpack.c.h.b16 %v4294
  %v4429 = vunpack.c.l.b16 %v4295
  %v4430 = vunpack.c.h.b16 %v4295
  %v4431 = vunpack.c.l.b16 %v4296
  %v4432 = vunpack.c.h.b16 %v4296
  %v4433 = vunpack.c.l.b16 %v4297
  %v4434 = vunpack.c.h.b16 %v4297
  %v4435 = vunpack.c.l.b16 %v4298
  %v4436 = vunpack.c.h.b16 %v4298
  %v4437 = vunpack.c.l.b16 %v4299
  %v4438 = vunpack.c.h.b16 %v4299
  %v4439 = vunpack.c.l.b16 %v4300
  %v4440 = vunpack.c.h.b16 %v4300
  %v4441 = vunpack.c.l.b16 %v4301
  %v4442 = vunpack.c.h.b16 %v4301
  %v4443 = vunpack.c.l.b16 %v4302
  %v4444 = vunpack.c.h.b16 %v4302
  %v4445 = vunpack.c.l.b16 %v4303
  %v4446 = vunpack.c.h.b16 %v4303
  %v4447 = vunpack.c.l.b16 %v4304
  %v4448 = vunpack.c.h.b16 %v4304
  %v4449 = vunpack.c.l.b16 %v4305
  %v4450 = vunpack.c.h.b16 %v4305
  %v4451 = vunpack.c.l.b16 %v4306
  %v4452 = vunpack.c.h.b16 %v4306
  %v4453 = vunpack.c.l.b16 %v4307
  %v4454 = vunpack.c.h.b16 %v4307
  %v4455 = vunpack.c.l.b16 %v4308
  %v4456 = vunpack.c.h.b16 %v4308
  %v4457 = vunpack.c.l.b16 %v4309
  %v4458 = vunpack.c.h.b16 %v4309
  %v4459 = vunpack.c.l.b16 %v4310
  %v4460 = vunpack.c.h.b16 %v4310
  %v4461 = vunpack.c.l.b16 %v4311
  %v4462 = vunpack.c.h.b16 %v4311
  %v4463 = vunpack.c.l.b16 %v4312
  %v4464 = vunpack.c.h.b16 %v4312
  %v4465 = vunpack.c.l.b16 %v4313
  %v4466 = vunpack.c.h.b16 %v4313
  %v4467 = vunpack.c.l.b16 %v4314
  %v4468 = vunpack.c.h.b16 %v4314
  %v4469 = vunpack.c.l.b16 %v4315
  %v4470 = vunpack.c.h.b16 %v4315
  %v4471 = vunpack.c.l.b16 %v4316
  %v4472 = vunpack.c.h.b16 %v4316
  %v4473 = vunpack.c.l.b16 %v4317
  %v4474 = vunpack.c.h.b16 %v4317
  %v4475 = vunpack.c.l.b16 %v4318
  %v4476 = vunpack.c.h.b16 %v4318
  %v4477 = vunpack.c.l.b16 %v4319
  %v4478 = vunpack.c.h.b16 %v4319
  %v4479 = vunpack.c.l.b16 %v4320
  %v4480 = vunpack.c.h.b16 %v4320
  %v4481 = vunpack.c.l.b16 %v4321
  %v4482 = vunpack.c.h.b16 %v4321
  %v4483 = vunpack.c.l.b16 %v4322
  %v4484 = vunpack.c.h.b16 %v4322
  %v4485 = vunpack.c.l.b16 %v4323
  %v4486 = vunpack.c.h.b16 %v4323
  %v4487 = vunpack.c.l.b16 %v4324
  %v4488 = vunpack.c.h.b16 %v4324
  %v4489 = vunpack.c.l.b16 %v4325
  %v4490 = vunpack.c.h.b16 %v4325
  %v4491 = vunpack.c.l.b16 %v4326
  %v4492 = vunpack.c.h.b16 %v4326
  %v4493 = vunpack.c.l.b16 %v4327
  %v4494 = vunpack.c.h.b16 %v4327
  %v4495 = vunpack.c.l.b16 %v4328
  %v4496 = vunpack.c.h.b16 %v4328
  %v4497 = vunpack.c.l.b16 %v4329
  %v4498 = vunpack.c.h.b16 %v4329
  %v4499 = vunpack.c.l.b16 %v4330
  %v4500 = vunpack.c.h.b16 %v4330
  %v4501 = vunpack.c.l.b16 %v4331
  %v4502 = vunpack.c.h.b16 %v4331
  %v4503 = vunpack.c.l.b16 %v4332
  %v4504 = vunpack.c.h.b16 %v4332
  %v4505 = vunpack.c.l.b16 %v4333
  %v4506 = vunpack.c.h.b16 %v4333
  %v4507 = vunpack.c.l.b16 %v4334
  %v4508 = vunpack.c.h.b16 %v4334
  %v4509 = vunpack.c.l.b16 %v4335
  %v4510 = vunpack.c.h.b16 %v4335
  %v4511 = vunpack.c.l.b16 %v4336
  %v4512 = vunpack.c.h.b16 %v4336
  %v4513 = vunpack.c.l.b16 %v4337
  %v4514 = vunpack.c.h.b16 %v4337
  %v4515 = vunpack.c.l.b16 %v4338
  %v4516 = vunpack.c.h.b16 %v4338
  %v4517 = vunpack.c.l.b16 %v4339
  %v4518 = vunpack.c.h.b16 %v4339
  %v4519 = vunpack.c.l.b16 %v4340
  %v4520 = vunpack.c.h.b16 %v4340
  %v4521 = vunpack.c.l.b16 %v4341
  %v4522 = vunpack.c.h.b16 %v4341
  %v4523 = vunpack.c.l.b16 %v4342
  %v4524 = vunpack.c.h.b16 %v4342
  %v4525 = vunpack.c.l.b16 %v4343
  %v4526 = vunpack.c.h.b16 %v4343
  %v4527 = vunpack.c.l.b16 %v4344
  %v4528 = vunpack.c.h.b16 %v4344
  %v4529 = vunpack.c.l.b16 %v4345
  %v4530 = vunpack.c.h.b16 %v4345
  %v4531 = vunpack.c.l.b16 %v4346
  %v4532 = vunpack.c.h.b16 %v4346
  %v4533 = vunpack.c.l.b16 %v4347
  %v4534 = vunpack.c.h.b16 %v4347
  %v4535 = vunpack.c.l.b16 %v4348
  %v4536 = vunpack.c.h.b16 %v4348
  %v4537 = vunpack.c.l.b16 %v4349
  %v4538 = vunpack.c.h.b16 %v4349
  %v4539 = vunpack.c.l.b16 %v4350
  %v4540 = vunpack.c.h.b16 %v4350
  %v4541 = vunpack.c.l.b16 %v4351
  %v4542 = vunpack.c.h.b16 %v4351
  %v4543 = vunpack.c.l.b16 %v4352
  %v4544 = vunpack.c.h.b16 %v4352
  %v4545 = vpack.c.b16 %v4419, %v4417
  %v4546 = vpack.c.b16 %v4420, %v4418
  %v4547 = vpack.c.b16 %v4423, %v4421
  %v4548 = vpack.c.b16 %v4424, %v4422
  %v4549 = vpack.c.b16 %v4427, %v4425
  %v4550 = vpack.c.b16 %v4428, %v4426
  %v4551 = vpack.c.b16 %v4431, %v4429
  %v4552 = vpack.c.b16 %v4432, %v4430
  %v4553 = vpack.c.b16 %v4435, %v4433
  %v4554 = vpack.c.b16 %v4436, %v4434
  %v4555 = vpack.c.b16 %v4439, %v4437
  %v4556 = vpack.c.b16 %v4440, %v4438
  %v4557 = vpack.c.b16 %v4443, %v4441
  %v4558 = vpack.c.b16 %v4444, %v4442
  %v4559 = vpack.c.b16 %v4447, %v4445
  %v4560 = vpack.c.b16 %v4448, %v4446
  %v4561 = vpack.c.b16 %v4451, %v4449
  %v4562 = vpack.c.b16 %v4452, %v4450
  %v4563 = vpack.c.b16 %v4455, %v4453
  %v4564 = vpack.c.b16 %v4456, %v4454
  %v4565 = vpack.c.b16 %v4459, %v4457
  %v4566 = vpack.c.b16 %v4460, %v4458
  %v4567 = vpack.c.b16 %v4463, %v4461
  %v4568 = vpack.c.b16 %v4464, %v4462
  %v4569 = vpack.c.b16 %v4467, %v4465
  %v4570 = vpack.c.b16 %v4468, %v4466
  %v4571 = vpack.c.b16 %v4471, %v4469
  %v4572 = vpack.c.b16 %v4472, %v4470
  %v4573 = vpack.c.b16 %v4475, %v4473
  %v4574 = vpack.c.b16 %v4476, %v4474
  %v4575 = vpack.c.b16 %v4479, %v4477
  %v4576 = vpack.c.b16 %v4480, %v4478
  %v4577 = vpack.c.b16 %v4483, %v4481
  %v4578 = vpack.c.b16 %v4484, %v4482
  %v4579 = vpack.c.b16 %v4487, %v4485
  %v4580 = vpack.c.b16 %v4488, %v4486
  %v4581 = vpack.c.b16 %v4491, %v4489
  %v4582 = vpack.c.b16 %v4492, %v4490
  %v4583 = vpack.c.b16 %v4495, %v4493
  %v4584 = vpack.c.b16 %v4496, %v4494
  %v4585 = vpack.c.b16 %v4499, %v4497
  %v4586 = vpack.c.b16 %v4500, %v4498
  %v4587 = vpack.c.b16 %v4503, %v4501
  %v4588 = vpack.c.b16 %v4504, %v4502
  %v4589 = vpack.c.b16 %v4507, %v4505
  %v4590 = vpack.c.b16 %v4508, %v4506
  %v4591 = vpack.c.b16 %v4511, %v4509
  %v4592 = vpack.c.b16 %v4512, %v4510
  %v4593 = vpack.c.b16 %v4515, %v4513
  %v4594 = vpack.c.b16 %v4516, %v4514
  %v4595 = vpack.c.b16 %v4519, %v4517
  %v4596 = vpack.c.b16 %v4520, %v4518
  %v4597 = vpack.c.b16 %v4523, %v4521
  %v4598 = vpack.c.b16 %v4524, %v4522
  %v4599 = vpack.c.b16 %v4527, %v4525
  %v4600 = vpack.c.b16 %v4528, %v4526
  %v4601 = vpack.c.b16 %v4531, %v4529
  %v4602 = vpack.c.b16 %v4532, %v4530
  %v4603 = vpack.c.b16 %v4535, %v4533
  %v4604 = vpack.c.b16 %v4536, %v4534
  %v4605 = vpack.c.b16 %v4539, %v4537
  %v4606 = vpack.c.b16 %v4540, %v4538
  %v4607 = vpack.c.b16 %v4543, %v4541
  %v4608 = vpack.c.b16 %v4544, %v4542
  %4673 = vmatpush.bf16.msra.mxu0 %v4559
  %4674 = vmatpush.bf16.msra.mxu0 %v4557
  %4675 = vmatpush.bf16.msra.mxu0 %v4555
  %4676 = vmatpush.bf16.msra.mxu0 %v4553
  %4677 = vmatpush.bf16.msra.mxu0 %v4551
  %4678 = vmatpush.bf16.msra.mxu0 %v4549
  %4679 = vmatpush.bf16.msra.mxu0 %v4547
  %4680 = vmatpush.bf16.msra.mxu0 %v4545
  %4681 = vmatmul.bf16.gmra.mxu0 %v4285
  %v4682 = vpop.f32.mrf.mxu0
  %v4683 = vadd.f32 0.0, %v4682
  %v4684 = vpop.f32.mrf.mxu0
  %4685 = vdwg.mxu0
  %4686 = vmatpush.bf16.msra.mxu0 %v4575
  %4687 = vmatpush.bf16.msra.mxu0 %v4573
  %4688 = vmatpush.bf16.msra.mxu0 %v4571
  %4689 = vmatpush.bf16.msra.mxu0 %v4569
  %4690 = vmatpush.bf16.msra.mxu0 %v4567
  %4691 = vmatpush.bf16.msra.mxu0 %v4565
  %4692 = vmatpush.bf16.msra.mxu0 %v4563
  %4693 = vmatpush.bf16.msra.mxu0 %v4561
  %4694 = vmatmul.bf16.gmra.mxu0 %v4286
  %v4695 = vpop.f32.mrf.mxu0
  %v4696 = vadd.f32 %v4683, %v4695
  %v4697 = vpop.f32.mrf.mxu0
  %4698 = vdwg.mxu0
  %4699 = vmatpush.bf16.msra.mxu0 %v4591
  %4700 = vmatpush.bf16.msra.mxu0 %v4589
  %4701 = vmatpush.bf16.msra.mxu0 %v4587
  %4702 = vmatpush.bf16.msra.mxu0 %v4585
  %4703 = vmatpush.bf16.msra.mxu0 %v4583
  %4704 = vmatpush.bf16.msra.mxu0 %v4581
  %4705 = vmatpush.bf16.msra.mxu0 %v4579
  %4706 = vmatpush.bf16.msra.mxu0 %v4577
  %4707 = vmatmul.bf16.gmra.mxu0 %v4287
  %v4708 = vpop.f32.mrf.mxu0
  %v4709 = vadd.f32 %v4696, %v4708
  %v4710 = vpop.f32.mrf.mxu0
  %4711 = vdwg.mxu0
  %4712 = vmatpush.bf16.msra.mxu0 %v4607
  %4713 = vmatpush.bf16.msra.mxu0 %v4605
  %4714 = vmatpush.bf16.msra.mxu0 %v4603
  %4715 = vmatpush.bf16.msra.mxu0 %v4601
  %4716 = vmatpush.bf16.msra.mxu0 %v4599
  %4717 = vmatpush.bf16.msra.mxu0 %v4597
  %4718 = vmatpush.bf16.msra.mxu0 %v4595
  %4719 = vmatpush.bf16.msra.mxu0 %v4593
  %4720 = vmatmul.bf16.gmra.mxu0 %v4288
  %v4721 = vpop.f32.mrf.mxu0
  %v4722 = vadd.f32 %v4709, %v4721
  %v4723 = vpop.f32.mrf.mxu0
  %4724 = vdwg.mxu0
  %4725 = vmatpush.bf16.msra.mxu0 %v4560
  %4726 = vmatpush.bf16.msra.mxu0 %v4558
  %4727 = vmatpush.bf16.msra.mxu0 %v4556
  %4728 = vmatpush.bf16.msra.mxu0 %v4554
  %4729 = vmatpush.bf16.msra.mxu0 %v4552
  %4730 = vmatpush.bf16.msra.mxu0 %v4550
  %4731 = vmatpush.bf16.msra.mxu0 %v4548
  %4732 = vmatpush.bf16.msra.mxu0 %v4546
  %4733 = vmatmul.bf16.gmra.mxu0 %v4285
  %v4734 = vpop.f32.mrf.mxu0
  %v4735 = vadd.f32 0.0, %v4734
  %v4736 = vpop.f32.mrf.mxu0
  %4737 = vdwg.mxu0
  %4738 = vmatpush.bf16.msra.mxu0 %v4576
  %4739 = vmatpush.bf16.msra.mxu0 %v4574
  %4740 = vmatpush.bf16.msra.mxu0 %v4572
  %4741 = vmatpush.bf16.msra.mxu0 %v4570
  %4742 = vmatpush.bf16.msra.mxu0 %v4568
  %4743 = vmatpush.bf16.msra.mxu0 %v4566
  %4744 = vmatpush.bf16.msra.mxu0 %v4564
  %4745 = vmatpush.bf16.msra.mxu0 %v4562
  %4746 = vmatmul.bf16.gmra.mxu0 %v4286
  %v4747 = vpop.f32.mrf.mxu0
  %v4748 = vadd.f32 %v4735, %v4747
  %v4749 = vpop.f32.mrf.mxu0
  %4750 = vdwg.mxu0
  %4751 = vmatpush.bf16.msra.mxu0 %v4592
  %4752 = vmatpush.bf16.msra.mxu0 %v4590
  %4753 = vmatpush.bf16.msra.mxu0 %v4588
  %4754 = vmatpush.bf16.msra.mxu0 %v4586
  %4755 = vmatpush.bf16.msra.mxu0 %v4584
  %4756 = vmatpush.bf16.msra.mxu0 %v4582
  %4757 = vmatpush.bf16.msra.mxu0 %v4580
  %4758 = vmatpush.bf16.msra.mxu0 %v4578
  %4759 = vmatmul.bf16.gmra.mxu0 %v4287
  %v4760 = vpop.f32.mrf.mxu0
  %v4761 = vadd.f32 %v4748, %v4760
  %v4762 = vpop.f32.mrf.mxu0
  %4763 = vdwg.mxu0
  %4764 = vmatpush.bf16.msra.mxu0 %v4608
  %4765 = vmatpush.bf16.msra.mxu0 %v4606
  %4766 = vmatpush.bf16.msra.mxu0 %v4604
  %4767 = vmatpush.bf16.msra.mxu0 %v4602
  %4768 = vmatpush.bf16.msra.mxu0 %v4600
  %4769 = vmatpush.bf16.msra.mxu0 %v4598
  %4770 = vmatpush.bf16.msra.mxu0 %v4596
  %4771 = vmatpush.bf16.msra.mxu0 %v4594
  %4772 = vmatmul.bf16.gmra.mxu0 %v4288
  %v4773 = vpop.f32.mrf.mxu0
  %v4774 = vadd.f32 %v4761, %v4773
  %v4775 = vpop.f32.mrf.mxu0
  %4776 = vdwg.mxu0
  %v4777 = vld [vmem:[%s2 + $0x8] sm:$0x3]
  %v4778 = vld [vmem:[%s2 + $0xa] sm:$0x3]
  %v4779 = vrot.slane %v4722, 4
  %v4780 = vadd.f32 %v4722, %v4779
  %v4781 = vrot.slane %v4780, 2
  %v4782 = vadd.f32 %v4780, %v4781
  %v4783 = vrot.slane %v4782, 1
  %v4784 = vadd.f32 %v4782, %v4783
  %v4785 = vrot.slane %v4774, 4
  %v4786 = vadd.f32 %v4774, %v4785
  %v4787 = vrot.slane %v4786, 2
  %v4788 = vadd.f32 %v4786, %v4787
  %v4789 = vrot.slane %v4788, 1
  %v4790 = vadd.f32 %v4788, %v4789
  %v4791 = vmul.f32 %v4784, %v4162
  %v4792 = vmul.f32 %v4790, %v4162
  %v4793 = vsub.f32 %v4722, %v4791
  %v4794 = vsub.f32 %v4774, %v4792
  %v4795 = vmul.f32 %v4793, %v4793
  %v4796 = vmul.f32 %v4794, %v4794
  %v4797 = vrot.slane %v4795, 4
  %v4798 = vadd.f32 %v4795, %v4797
  %v4799 = vrot.slane %v4798, 2
  %v4800 = vadd.f32 %v4798, %v4799
  %v4801 = vrot.slane %v4800, 1
  %v4802 = vadd.f32 %v4800, %v4801
  %v4803 = vrot.slane %v4796, 4
  %v4804 = vadd.f32 %v4796, %v4803
  %v4805 = vrot.slane %v4804, 2
  %v4806 = vadd.f32 %v4804, %v4805
  %v4807 = vrot.slane %v4806, 1
  %v4808 = vadd.f32 %v4806, %v4807
  %v4809 = vmul.f32 %v4802, %v4162
  %v4810 = vmul.f32 %v4808, %v4162
  %v4811 = vadd.f32 %v4809, 1e-05
  %v4812 = vadd.f32 %v4810, 1e-05
  %v4813 = vrsqrt.pop %v4811
  %v4814 = vmul.f32 %v4813, %v4811
  %v4815 = vmul.f32 %v4814, %v4813
  %v4816 = vmul.f32 0.5, %v4815
  %v4817 = vsub.f32 1.5, %v4816
  %v4818 = vmul.f32 %v4813, %v4817
  %vm4819 = vweird.f32 %v4811
  %vm4820 = vweird.f32 %v4813
  %vm4821 = vmor %vm4819, %vm4820
  %v4822 = vsel %vm4821, %v4813, %v4818
  %v4823 = vrsqrt.pop %v4812
  %v4824 = vmul.f32 %v4823, %v4812
  %v4825 = vmul.f32 %v4824, %v4823
  %v4826 = vmul.f32 0.5, %v4825
  %v4827 = vsub.f32 1.5, %v4826
  %v4828 = vmul.f32 %v4823, %v4827
  %vm4829 = vweird.f32 %v4812
  %vm4830 = vweird.f32 %v4823
  %vm4831 = vmor %vm4829, %vm4830
  %v4832 = vsel %vm4831, %v4823, %v4828
  %v4833 = vmul.f32 %v4793, %v4822
  %v4834 = vmul.f32 %v4794, %v4832
  %v4836 = vperm.slane %v4777, 0
  %v4837 = vperm.slane %v4777, 1
  %v4840 = vmul.f32 %v4833, %v4836
  %v4841 = vmul.f32 %v4834, %v4837
  %v4843 = vperm.slane %v4778, 0
  %v4844 = vperm.slane %v4778, 1
  %v4847 = vadd.f32 %v4840, %v4843
  %v4848 = vadd.f32 %v4841, %v4844
  %v4849 = vmax.f32 %v4847, 0.0
  %v4850 = vmax.f32 %v4848, 0.0
  %s4851 = smul.u32 4, 32
  %s4852 = smul.u32 %s4851, 2
  %s4853 = sshll.u32 %s4852, 4
  %4854 = dma.done %s31, %s4853
  %v4855 = vpack.c.bf16 %v4849, %v4849
  %v4856 = vpack.c.bf16 %v4850, %v4850
  %v4857 = vld [vmem:[#allocation3] sm:$0xff]
  %v4858 = vld [vmem:[#allocation3 + $0x8] sm:$0xff]
  %v4859 = vld [vmem:[#allocation3 + $0x10] sm:$0xff]
  %v4860 = vld [vmem:[#allocation3 + $0x18] sm:$0xff]
  %v4861 = vld [vmem:[#allocation3 + $0x20] sm:$0xff]
  %v4862 = vld [vmem:[#allocation3 + $0x28] sm:$0xff]
  %v4863 = vld [vmem:[#allocation3 + $0x30] sm:$0xff]
  %v4864 = vld [vmem:[#allocation3 + $0x38] sm:$0xff]
  %v4865 = vld [vmem:[#allocation3 + $0x40] sm:$0xff]
  %v4866 = vld [vmem:[#allocation3 + $0x48] sm:$0xff]
  %v4867 = vld [vmem:[#allocation3 + $0x50] sm:$0xff]
  %v4868 = vld [vmem:[#allocation3 + $0x58] sm:$0xff]
  %v4869 = vld [vmem:[#allocation3 + $0x60] sm:$0xff]
  %v4870 = vld [vmem:[#allocation3 + $0x68] sm:$0xff]
  %v4871 = vld [vmem:[#allocation3 + $0x70] sm:$0xff]
  %v4872 = vld [vmem:[#allocation3 + $0x78] sm:$0xff]
  %v4873 = vld [vmem:[#allocation3 + $0x80] sm:$0xff]
  %v4874 = vld [vmem:[#allocation3 + $0x88] sm:$0xff]
  %v4875 = vld [vmem:[#allocation3 + $0x90] sm:$0xff]
  %v4876 = vld [vmem:[#allocation3 + $0x98] sm:$0xff]
  %v4877 = vld [vmem:[#allocation3 + $0xa0] sm:$0xff]
  %v4878 = vld [vmem:[#allocation3 + $0xa8] sm:$0xff]
  %v4879 = vld [vmem:[#allocation3 + $0xb0] sm:$0xff]
  %v4880 = vld [vmem:[#allocation3 + $0xb8] sm:$0xff]
  %v4881 = vld [vmem:[#allocation3 + $0xc0] sm:$0xff]
  %v4882 = vld [vmem:[#allocation3 + $0xc8] sm:$0xff]
  %v4883 = vld [vmem:[#allocation3 + $0xd0] sm:$0xff]
  %v4884 = vld [vmem:[#allocation3 + $0xd8] sm:$0xff]
  %v4885 = vld [vmem:[#allocation3 + $0xe0] sm:$0xff]
  %v4886 = vld [vmem:[#allocation3 + $0xe8] sm:$0xff]
  %v4887 = vld [vmem:[#allocation3 + $0xf0] sm:$0xff]
  %v4888 = vld [vmem:[#allocation3 + $0xf8] sm:$0xff]
  %v4921 = vunpack.c.l.b16 %v4857
  %v4922 = vunpack.c.h.b16 %v4857
  %v4923 = vunpack.c.l.b16 %v4858
  %v4924 = vunpack.c.h.b16 %v4858
  %v4925 = vunpack.c.l.b16 %v4859
  %v4926 = vunpack.c.h.b16 %v4859
  %v4927 = vunpack.c.l.b16 %v4860
  %v4928 = vunpack.c.h.b16 %v4860
  %v4929 = vunpack.c.l.b16 %v4861
  %v4930 = vunpack.c.h.b16 %v4861
  %v4931 = vunpack.c.l.b16 %v4862
  %v4932 = vunpack.c.h.b16 %v4862
  %v4933 = vunpack.c.l.b16 %v4863
  %v4934 = vunpack.c.h.b16 %v4863
  %v4935 = vunpack.c.l.b16 %v4864
  %v4936 = vunpack.c.h.b16 %v4864
  %v4937 = vunpack.c.l.b16 %v4865
  %v4938 = vunpack.c.h.b16 %v4865
  %v4939 = vunpack.c.l.b16 %v4866
  %v4940 = vunpack.c.h.b16 %v4866
  %v4941 = vunpack.c.l.b16 %v4867
  %v4942 = vunpack.c.h.b16 %v4867
  %v4943 = vunpack.c.l.b16 %v4868
  %v4944 = vunpack.c.h.b16 %v4868
  %v4945 = vunpack.c.l.b16 %v4869
  %v4946 = vunpack.c.h.b16 %v4869
  %v4947 = vunpack.c.l.b16 %v4870
  %v4948 = vunpack.c.h.b16 %v4870
  %v4949 = vunpack.c.l.b16 %v4871
  %v4950 = vunpack.c.h.b16 %v4871
  %v4951 = vunpack.c.l.b16 %v4872
  %v4952 = vunpack.c.h.b16 %v4872
  %v4953 = vunpack.c.l.b16 %v4873
  %v4954 = vunpack.c.h.b16 %v4873
  %v4955 = vunpack.c.l.b16 %v4874
  %v4956 = vunpack.c.h.b16 %v4874
  %v4957 = vunpack.c.l.b16 %v4875
  %v4958 = vunpack.c.h.b16 %v4875
  %v4959 = vunpack.c.l.b16 %v4876
  %v4960 = vunpack.c.h.b16 %v4876
  %v4961 = vunpack.c.l.b16 %v4877
  %v4962 = vunpack.c.h.b16 %v4877
  %v4963 = vunpack.c.l.b16 %v4878
  %v4964 = vunpack.c.h.b16 %v4878
  %v4965 = vunpack.c.l.b16 %v4879
  %v4966 = vunpack.c.h.b16 %v4879
  %v4967 = vunpack.c.l.b16 %v4880
  %v4968 = vunpack.c.h.b16 %v4880
  %v4969 = vunpack.c.l.b16 %v4881
  %v4970 = vunpack.c.h.b16 %v4881
  %v4971 = vunpack.c.l.b16 %v4882
  %v4972 = vunpack.c.h.b16 %v4882
  %v4973 = vunpack.c.l.b16 %v4883
  %v4974 = vunpack.c.h.b16 %v4883
  %v4975 = vunpack.c.l.b16 %v4884
  %v4976 = vunpack.c.h.b16 %v4884
  %v4977 = vunpack.c.l.b16 %v4885
  %v4978 = vunpack.c.h.b16 %v4885
  %v4979 = vunpack.c.l.b16 %v4886
  %v4980 = vunpack.c.h.b16 %v4886
  %v4981 = vunpack.c.l.b16 %v4887
  %v4982 = vunpack.c.h.b16 %v4887
  %v4983 = vunpack.c.l.b16 %v4888
  %v4984 = vunpack.c.h.b16 %v4888
  %v4985 = vpack.c.b16 %v4923, %v4921
  %v4986 = vpack.c.b16 %v4924, %v4922
  %v4987 = vpack.c.b16 %v4927, %v4925
  %v4988 = vpack.c.b16 %v4928, %v4926
  %v4989 = vpack.c.b16 %v4931, %v4929
  %v4990 = vpack.c.b16 %v4932, %v4930
  %v4991 = vpack.c.b16 %v4935, %v4933
  %v4992 = vpack.c.b16 %v4936, %v4934
  %v4993 = vpack.c.b16 %v4939, %v4937
  %v4994 = vpack.c.b16 %v4940, %v4938
  %v4995 = vpack.c.b16 %v4943, %v4941
  %v4996 = vpack.c.b16 %v4944, %v4942
  %v4997 = vpack.c.b16 %v4947, %v4945
  %v4998 = vpack.c.b16 %v4948, %v4946
  %v4999 = vpack.c.b16 %v4951, %v4949
  %v5000 = vpack.c.b16 %v4952, %v4950
  %v5001 = vpack.c.b16 %v4955, %v4953
  %v5002 = vpack.c.b16 %v4956, %v4954
  %v5003 = vpack.c.b16 %v4959, %v4957
  %v5004 = vpack.c.b16 %v4960, %v4958
  %v5005 = vpack.c.b16 %v4963, %v4961
  %v5006 = vpack.c.b16 %v4964, %v4962
  %v5007 = vpack.c.b16 %v4967, %v4965
  %v5008 = vpack.c.b16 %v4968, %v4966
  %v5009 = vpack.c.b16 %v4971, %v4969
  %v5010 = vpack.c.b16 %v4972, %v4970
  %v5011 = vpack.c.b16 %v4975, %v4973
  %v5012 = vpack.c.b16 %v4976, %v4974
  %v5013 = vpack.c.b16 %v4979, %v4977
  %v5014 = vpack.c.b16 %v4980, %v4978
  %v5015 = vpack.c.b16 %v4983, %v4981
  %v5016 = vpack.c.b16 %v4984, %v4982
  %5049 = vmatpush.bf16.msra.mxu0 %v4999
  %5050 = vmatpush.bf16.msra.mxu0 %v4997
  %5051 = vmatpush.bf16.msra.mxu0 %v4995
  %5052 = vmatpush.bf16.msra.mxu0 %v4993
  %5053 = vmatpush.bf16.msra.mxu0 %v4991
  %5054 = vmatpush.bf16.msra.mxu0 %v4989
  %5055 = vmatpush.bf16.msra.mxu0 %v4987
  %5056 = vmatpush.bf16.msra.mxu0 %v4985
  %5057 = vmatmul.bf16.gmra.mxu0 %v4855
  %v5058 = vpop.f32.mrf.mxu0
  %v5059 = vadd.f32 0.0, %v5058
  %v5060 = vpop.f32.mrf.mxu0
  %5061 = vdwg.mxu0
  %5062 = vmatpush.bf16.msra.mxu0 %v5015
  %5063 = vmatpush.bf16.msra.mxu0 %v5013
  %5064 = vmatpush.bf16.msra.mxu0 %v5011
  %5065 = vmatpush.bf16.msra.mxu0 %v5009
  %5066 = vmatpush.bf16.msra.mxu0 %v5007
  %5067 = vmatpush.bf16.msra.mxu0 %v5005
  %5068 = vmatpush.bf16.msra.mxu0 %v5003
  %5069 = vmatpush.bf16.msra.mxu0 %v5001
  %5070 = vmatmul.bf16.gmra.mxu0 %v4856
  %v5071 = vpop.f32.mrf.mxu0
  %v5072 = vadd.f32 %v5059, %v5071
  %v5073 = vpop.f32.mrf.mxu0
  %5074 = vdwg.mxu0
  %5075 = vmatpush.bf16.msra.mxu0 %v5000
  %5076 = vmatpush.bf16.msra.mxu0 %v4998
  %5077 = vmatpush.bf16.msra.mxu0 %v4996
  %5078 = vmatpush.bf16.msra.mxu0 %v4994
  %5079 = vmatpush.bf16.msra.mxu0 %v4992
  %5080 = vmatpush.bf16.msra.mxu0 %v4990
  %5081 = vmatpush.bf16.msra.mxu0 %v4988
  %5082 = vmatpush.bf16.msra.mxu0 %v4986
  %5083 = vmatmul.bf16.gmra.mxu0 %v4855
  %v5084 = vpop.f32.mrf.mxu0
  %v5085 = vadd.f32 0.0, %v5084
  %v5086 = vpop.f32.mrf.mxu0
  %5087 = vdwg.mxu0
  %5088 = vmatpush.bf16.msra.mxu0 %v5016
  %5089 = vmatpush.bf16.msra.mxu0 %v5014
  %5090 = vmatpush.bf16.msra.mxu0 %v5012
  %5091 = vmatpush.bf16.msra.mxu0 %v5010
  %5092 = vmatpush.bf16.msra.mxu0 %v5008
  %5093 = vmatpush.bf16.msra.mxu0 %v5006
  %5094 = vmatpush.bf16.msra.mxu0 %v5004
  %5095 = vmatpush.bf16.msra.mxu0 %v5002
  %5096 = vmatmul.bf16.gmra.mxu0 %v4856
  %v5097 = vpop.f32.mrf.mxu0
  %v5098 = vadd.f32 %v5085, %v5097
  %v5099 = vpop.f32.mrf.mxu0
  %5100 = vdwg.mxu0
  %v5101 = vld [vmem:[%s2 + $0xc] sm:$0x3]
  %v5102 = vld [vmem:[%s2 + $0xe] sm:$0x3]
  %v5103 = vrot.slane %v5072, 4
  %v5104 = vadd.f32 %v5072, %v5103
  %v5105 = vrot.slane %v5104, 2
  %v5106 = vadd.f32 %v5104, %v5105
  %v5107 = vrot.slane %v5106, 1
  %v5108 = vadd.f32 %v5106, %v5107
  %v5109 = vrot.slane %v5098, 4
  %v5110 = vadd.f32 %v5098, %v5109
  %v5111 = vrot.slane %v5110, 2
  %v5112 = vadd.f32 %v5110, %v5111
  %v5113 = vrot.slane %v5112, 1
  %v5114 = vadd.f32 %v5112, %v5113
  %v5115 = vmul.f32 %v5108, %v4162
  %v5116 = vmul.f32 %v5114, %v4162
  %v5117 = vsub.f32 %v5072, %v5115
  %v5118 = vsub.f32 %v5098, %v5116
  %v5119 = vmul.f32 %v5117, %v5117
  %v5120 = vmul.f32 %v5118, %v5118
  %v5121 = vrot.slane %v5119, 4
  %v5122 = vadd.f32 %v5119, %v5121
  %v5123 = vrot.slane %v5122, 2
  %v5124 = vadd.f32 %v5122, %v5123
  %v5125 = vrot.slane %v5124, 1
  %v5126 = vadd.f32 %v5124, %v5125
  %v5127 = vrot.slane %v5120, 4
  %v5128 = vadd.f32 %v5120, %v5127
  %v5129 = vrot.slane %v5128, 2
  %v5130 = vadd.f32 %v5128, %v5129
  %v5131 = vrot.slane %v5130, 1
  %v5132 = vadd.f32 %v5130, %v5131
  %v5133 = vmul.f32 %v5126, %v4162
  %v5134 = vmul.f32 %v5132, %v4162
  %v5135 = vadd.f32 %v5133, 1e-05
  %v5136 = vadd.f32 %v5134, 1e-05
  %v5137 = vrsqrt.pop %v5135
  %v5138 = vmul.f32 %v5137, %v5135
  %v5139 = vmul.f32 %v5138, %v5137
  %v5140 = vmul.f32 0.5, %v5139
  %v5141 = vsub.f32 1.5, %v5140
  %v5142 = vmul.f32 %v5137, %v5141
  %vm5143 = vweird.f32 %v5135
  %vm5144 = vweird.f32 %v5137
  %vm5145 = vmor %vm5143, %vm5144
  %v5146 = vsel %vm5145, %v5137, %v5142
  %v5147 = vrsqrt.pop %v5136
  %v5148 = vmul.f32 %v5147, %v5136
  %v5149 = vmul.f32 %v5148, %v5147
  %v5150 = vmul.f32 0.5, %v5149
  %v5151 = vsub.f32 1.5, %v5150
  %v5152 = vmul.f32 %v5147, %v5151
  %vm5153 = vweird.f32 %v5136
  %vm5154 = vweird.f32 %v5147
  %vm5155 = vmor %vm5153, %vm5154
  %v5156 = vsel %vm5155, %v5147, %v5152
  %v5157 = vmul.f32 %v5117, %v5146
  %v5158 = vmul.f32 %v5118, %v5156
  %v5160 = vperm.slane %v5101, 0
  %v5161 = vperm.slane %v5101, 1
  %v5164 = vmul.f32 %v5157, %v5160
  %v5165 = vmul.f32 %v5158, %v5161
  %v5167 = vperm.slane %v5102, 0
  %v5168 = vperm.slane %v5102, 1
  %v5171 = vadd.f32 %v5164, %v5167
  %v5172 = vadd.f32 %v5165, %v5168
  %v5173 = vmax.f32 %v5171, 0.0
  %v5174 = vmax.f32 %v5172, 0.0
  %s5175 = smul.u32 %s4851, 1
  %s5176 = sshll.u32 %s5175, 4
  %5177 = dma.done %s112, %s5176
  %v5178 = vpack.c.bf16 %v5173, %v5173
  %v5179 = vpack.c.bf16 %v5174, %v5174
  %v5180 = vld [vmem:[#allocation4] sm:$0xf]
  %v5181 = vld [vmem:[#allocation4 + $0x4] sm:$0xf]
  %v5182 = vld [vmem:[#allocation4 + $0x8] sm:$0xf]
  %v5183 = vld [vmem:[#allocation4 + $0xc] sm:$0xf]
  %v5184 = vld [vmem:[#allocation4 + $0x10] sm:$0xf]
  %v5185 = vld [vmem:[#allocation4 + $0x14] sm:$0xf]
  %v5186 = vld [vmem:[#allocation4 + $0x18] sm:$0xf]
  %v5187 = vld [vmem:[#allocation4 + $0x1c] sm:$0xf]
  %v5188 = vld [vmem:[#allocation4 + $0x20] sm:$0xf]
  %v5189 = vld [vmem:[#allocation4 + $0x24] sm:$0xf]
  %v5190 = vld [vmem:[#allocation4 + $0x28] sm:$0xf]
  %v5191 = vld [vmem:[#allocation4 + $0x2c] sm:$0xf]
  %v5192 = vld [vmem:[#allocation4 + $0x30] sm:$0xf]
  %v5193 = vld [vmem:[#allocation4 + $0x34] sm:$0xf]
  %v5194 = vld [vmem:[#allocation4 + $0x38] sm:$0xf]
  %v5195 = vld [vmem:[#allocation4 + $0x3c] sm:$0xf]
  %v5196 = vld [vmem:[#allocation4 + $0x40] sm:$0xf]
  %v5197 = vld [vmem:[#allocation4 + $0x44] sm:$0xf]
  %v5198 = vld [vmem:[#allocation4 + $0x48] sm:$0xf]
  %v5199 = vld [vmem:[#allocation4 + $0x4c] sm:$0xf]
  %v5200 = vld [vmem:[#allocation4 + $0x50] sm:$0xf]
  %v5201 = vld [vmem:[#allocation4 + $0x54] sm:$0xf]
  %v5202 = vld [vmem:[#allocation4 + $0x58] sm:$0xf]
  %v5203 = vld [vmem:[#allocation4 + $0x5c] sm:$0xf]
  %v5204 = vld [vmem:[#allocation4 + $0x60] sm:$0xf]
  %v5205 = vld [vmem:[#allocation4 + $0x64] sm:$0xf]
  %v5206 = vld [vmem:[#allocation4 + $0x68] sm:$0xf]
  %v5207 = vld [vmem:[#allocation4 + $0x6c] sm:$0xf]
  %v5208 = vld [vmem:[#allocation4 + $0x70] sm:$0xf]
  %v5209 = vld [vmem:[#allocation4 + $0x74] sm:$0xf]
  %v5210 = vld [vmem:[#allocation4 + $0x78] sm:$0xf]
  %v5211 = vld [vmem:[#allocation4 + $0x7c] sm:$0xf]
  %v5244 = vunpack.c.l.b16 %v5180
  %v5245 = vunpack.c.l.b16 %v5181
  %v5246 = vunpack.c.l.b16 %v5182
  %v5247 = vunpack.c.l.b16 %v5183
  %v5248 = vunpack.c.l.b16 %v5184
  %v5249 = vunpack.c.l.b16 %v5185
  %v5250 = vunpack.c.l.b16 %v5186
  %v5251 = vunpack.c.l.b16 %v5187
  %v5252 = vunpack.c.l.b16 %v5188
  %v5253 = vunpack.c.l.b16 %v5189
  %v5254 = vunpack.c.l.b16 %v5190
  %v5255 = vunpack.c.l.b16 %v5191
  %v5256 = vunpack.c.l.b16 %v5192
  %v5257 = vunpack.c.l.b16 %v5193
  %v5258 = vunpack.c.l.b16 %v5194
  %v5259 = vunpack.c.l.b16 %v5195
  %v5260 = vunpack.c.l.b16 %v5196
  %v5261 = vunpack.c.l.b16 %v5197
  %v5262 = vunpack.c.l.b16 %v5198
  %v5263 = vunpack.c.l.b16 %v5199
  %v5264 = vunpack.c.l.b16 %v5200
  %v5265 = vunpack.c.l.b16 %v5201
  %v5266 = vunpack.c.l.b16 %v5202
  %v5267 = vunpack.c.l.b16 %v5203
  %v5268 = vunpack.c.l.b16 %v5204
  %v5269 = vunpack.c.l.b16 %v5205
  %v5270 = vunpack.c.l.b16 %v5206
  %v5271 = vunpack.c.l.b16 %v5207
  %v5272 = vunpack.c.l.b16 %v5208
  %v5273 = vunpack.c.l.b16 %v5209
  %v5274 = vunpack.c.l.b16 %v5210
  %v5275 = vunpack.c.l.b16 %v5211
  %v5276 = vpack.c.b16 %v5245, %v5244
  %v5277 = vpack.c.b16 %v5247, %v5246
  %v5278 = vpack.c.b16 %v5249, %v5248
  %v5279 = vpack.c.b16 %v5251, %v5250
  %v5280 = vpack.c.b16 %v5253, %v5252
  %v5281 = vpack.c.b16 %v5255, %v5254
  %v5282 = vpack.c.b16 %v5257, %v5256
  %v5283 = vpack.c.b16 %v5259, %v5258
  %v5284 = vpack.c.b16 %v5261, %v5260
  %v5285 = vpack.c.b16 %v5263, %v5262
  %v5286 = vpack.c.b16 %v5265, %v5264
  %v5287 = vpack.c.b16 %v5267, %v5266
  %v5288 = vpack.c.b16 %v5269, %v5268
  %v5289 = vpack.c.b16 %v5271, %v5270
  %v5290 = vpack.c.b16 %v5273, %v5272
  %v5291 = vpack.c.b16 %v5275, %v5274
  %5308 = vmatpush.bf16.msra.mxu0 %v5283
  %5309 = vmatpush.bf16.msra.mxu0 %v5282
  %5310 = vmatpush.bf16.msra.mxu0 %v5281
  %5311 = vmatpush.bf16.msra.mxu0 %v5280
  %5312 = vmatpush.bf16.msra.mxu0 %v5279
  %5313 = vmatpush.bf16.msra.mxu0 %v5278
  %5314 = vmatpush.bf16.msra.mxu0 %v5277
  %5315 = vmatpush.bf16.msra.mxu0 %v5276
  %5316 = vmatmul.bf16.gmra.mxu0 %v5178
  %v5317 = vpop.f32.mrf.mxu0
  %v5318 = vadd.f32 0.0, %v5317
  %v5319 = vpop.f32.mrf.mxu0
  %5320 = vdwg.mxu0
  %5321 = vmatpush.bf16.msra.mxu0 %v5291
  %5322 = vmatpush.bf16.msra.mxu0 %v5290
  %5323 = vmatpush.bf16.msra.mxu0 %v5289
  %5324 = vmatpush.bf16.msra.mxu0 %v5288
  %5325 = vmatpush.bf16.msra.mxu0 %v5287
  %5326 = vmatpush.bf16.msra.mxu0 %v5286
  %5327 = vmatpush.bf16.msra.mxu0 %v5285
  %5328 = vmatpush.bf16.msra.mxu0 %v5284
  %5329 = vmatmul.bf16.gmra.mxu0 %v5179
  %v5330 = vpop.f32.mrf.mxu0
  %v5331 = vadd.f32 %v5318, %v5330
  %v5332 = vpop.f32.mrf.mxu0
  %5333 = vdwg.mxu0
  %v5334 = vld [vmem:[%s2 + $0x10] sm:$0x1]
  %v5335 = vld [vmem:[%s2 + $0x11] sm:$0x1]
  %v5336 = vrot.slane %v5331, 4
  %v5337 = vadd.f32 %v5331, %v5336
  %v5338 = vrot.slane %v5337, 2
  %v5339 = vadd.f32 %v5337, %v5338
  %v5340 = vrot.slane %v5339, 1
  %v5341 = vadd.f32 %v5339, %v5340
  %v5342 = vmul.f32 %v5341, %v4162
  %v5343 = vsub.f32 %v5331, %v5342
  %v5344 = vmul.f32 %v5343, %v5343
  %v5345 = vrot.slane %v5344, 4
  %v5346 = vadd.f32 %v5344, %v5345
  %v5347 = vrot.slane %v5346, 2
  %v5348 = vadd.f32 %v5346, %v5347
  %v5349 = vrot.slane %v5348, 1
  %v5350 = vadd.f32 %v5348, %v5349
  %v5351 = vmul.f32 %v5350, %v4162
  %v5352 = vadd.f32 %v5351, 1e-05
  %v5353 = vrsqrt.pop %v5352
  %v5354 = vmul.f32 %v5353, %v5352
  %v5355 = vmul.f32 %v5354, %v5353
  %v5356 = vmul.f32 0.5, %v5355
  %v5357 = vsub.f32 1.5, %v5356
  %v5358 = vmul.f32 %v5353, %v5357
  %vm5359 = vweird.f32 %v5352
  %vm5360 = vweird.f32 %v5353
  %vm5361 = vmor %vm5359, %vm5360
  %v5362 = vsel %vm5361, %v5353, %v5358
  %v5363 = vmul.f32 %v5343, %v5362
  %v5365 = vperm.slane %v5334, 0
  %v5367 = vmul.f32 %v5363, %v5365
  %v5369 = vperm.slane %v5335, 0
  %v5371 = vadd.f32 %v5367, %v5369
  %v5372 = vmax.f32 %v5371, 0.0
  %s5373 = smul.u32 4, 16
  %s5374 = smul.u32 %s5373, 1
  %s5375 = sshll.u32 %s5374, 4
  %5376 = dma.done %s161, %s5375
  %v5377 = vpack.c.bf16 %v5372, %v5372
  %v5378 = vld [vmem:[#allocation5] sm:$0xf]
  %v5379 = vld [vmem:[#allocation5 + $0x4] sm:$0xf]
  %v5380 = vld [vmem:[#allocation5 + $0x8] sm:$0xf]
  %v5381 = vld [vmem:[#allocation5 + $0xc] sm:$0xf]
  %v5382 = vld [vmem:[#allocation5 + $0x10] sm:$0xf]
  %v5383 = vld [vmem:[#allocation5 + $0x14] sm:$0xf]
  %v5384 = vld [vmem:[#allocation5 + $0x18] sm:$0xf]
  %v5385 = vld [vmem:[#allocation5 + $0x1c] sm:$0xf]
  %v5386 = vld [vmem:[#allocation5 + $0x20] sm:$0xf]
  %v5387 = vld [vmem:[#allocation5 + $0x24] sm:$0xf]
  %v5388 = vld [vmem:[#allocation5 + $0x28] sm:$0xf]
  %v5389 = vld [vmem:[#allocation5 + $0x2c] sm:$0xf]
  %v5390 = vld [vmem:[#allocation5 + $0x30] sm:$0xf]
  %v5391 = vld [vmem:[#allocation5 + $0x34] sm:$0xf]
  %v5392 = vld [vmem:[#allocation5 + $0x38] sm:$0xf]
  %v5393 = vld [vmem:[#allocation5 + $0x3c] sm:$0xf]
  %v5394 = vld [vmem:[%s2 + $0x12] sm:$0x1]
  %v5396 = vperm.slane %v5394, 0
  %v5414 = vunpack.c.l.b16 %v5378
  %v5415 = vunpack.c.l.b16 %v5379
  %v5416 = vunpack.c.l.b16 %v5380
  %v5417 = vunpack.c.l.b16 %v5381
  %v5418 = vunpack.c.l.b16 %v5382
  %v5419 = vunpack.c.l.b16 %v5383
  %v5420 = vunpack.c.l.b16 %v5384
  %v5421 = vunpack.c.l.b16 %v5385
  %v5422 = vunpack.c.l.b16 %v5386
  %v5423 = vunpack.c.l.b16 %v5387
  %v5424 = vunpack.c.l.b16 %v5388
  %v5425 = vunpack.c.l.b16 %v5389
  %v5426 = vunpack.c.l.b16 %v5390
  %v5427 = vunpack.c.l.b16 %v5391
  %v5428 = vunpack.c.l.b16 %v5392
  %v5429 = vunpack.c.l.b16 %v5393
  %v5430 = vpack.c.b16 %v5415, %v5414
  %v5431 = vpack.c.b16 %v5417, %v5416
  %v5432 = vpack.c.b16 %v5419, %v5418
  %v5433 = vpack.c.b16 %v5421, %v5420
  %v5434 = vpack.c.b16 %v5423, %v5422
  %v5435 = vpack.c.b16 %v5425, %v5424
  %v5436 = vpack.c.b16 %v5427, %v5426
  %v5437 = vpack.c.b16 %v5429, %v5428
  %5446 = vmatpush.bf16.msra.mxu0 %v5437
  %5447 = vmatpush.bf16.msra.mxu0 %v5436
  %5448 = vmatpush.bf16.msra.mxu0 %v5435
  %5449 = vmatpush.bf16.msra.mxu0 %v5434
  %5450 = vmatpush.bf16.msra.mxu0 %v5433
  %5451 = vmatpush.bf16.msra.mxu0 %v5432
  %5452 = vmatpush.bf16.msra.mxu0 %v5431
  %5453 = vmatpush.bf16.msra.mxu0 %v5430
  %5454 = vmatmul.bf16.gmra.mxu0 %v5377
  %v5455 = vpop.f32.mrf.mxu0
  %v5456 = vadd.f32 %v5396, %v5455
  %v5457 = vpop.f32.mrf.mxu0
  %5458 = vdwg.mxu0
  %5459 = vst [vmem:[%s7] sm:$0xff] %v5456
  // Predicated region
  $region75: #{domain_classifier_forward.1} parent=0 // pred_check
    _
  $region76: #{domain_classifier_forward.1} parent=0 // pred_check_branch
    %5461 = sbr.rel (0) target = $region78
  $region77: #{domain_classifier_forward.1} parent=0 // pred_region
    _
  $region78: #{domain_classifier_forward.1} parent=0 // pred_fallthru
    _
  // Predicated region
  $region79: #{domain_classifier_forward.1} parent=0 // pred_check
    _
  $region80: #{domain_classifier_forward.1} parent=0 // pred_check_branch
    %5463 = sbr.rel (0) target = $region82
  $region81: #{domain_classifier_forward.1} parent=0 // pred_region
    _
  $region82: #{domain_classifier_forward.1} parent=0 // pred_fallthru
    _
  %5464 = vsyncmov [#allocation6]
  %s5465 = vpop.sfrf %5464
  %p5466 = scmp.eq.s32.totalorder %s5465, 0
  %p5467 = pneg %p5466
  %5469 = shalt.err (%p5467)
  %s5470 = scalar_lea.sflag [#allocation6], 1
  %5471 = vsyncmov %s5470
  %s5472 = vpop.sfrf %5471
  %p5473 = scmp.eq.s32.totalorder %s5472, 0
  %p5474 = pneg %p5473
  %5476 = shalt.err (%p5474)
  %s5477 = scalar_lea.sflag [#allocation6], 2
  %5478 = vsyncmov %s5477
  %s5479 = vpop.sfrf %5478
  %p5480 = scmp.eq.s32.totalorder %s5479, 0
  %p5481 = pneg %p5480
  %5483 = shalt.err (%p5481)
  %s5484 = scalar_lea.sflag [#allocation6], 3
  %5485 = vsyncmov %s5484
  %s5486 = vpop.sfrf %5485
  %p5487 = scmp.eq.s32.totalorder %s5486, 0
  %p5488 = pneg %p5487
  %5490 = shalt.err (%p5488)

</llo_original>
